<compile_context>
chip_gen: v7x
topology: tpu7x:2x2x1
jax: 0.10.0
libtpu: 0.0.40
codegen_flags: <defaults>
</compile_context>

<pallas_src>
import functools

import jax
import jax.numpy as jnp
from jax.experimental import pallas as pl
from jax.experimental.pallas import tpu as pltpu

HEADS = 4


def _vmem_spec():
    return pl.BlockSpec(memory_space=pltpu.MemorySpace.VMEM)


# ---------------------------------------------------------------- kernel ----

def fused_gat_kernel(x_ref, adj_bias_ref, head_mask_ref,
                     w_in_ref, b_in_ref,
                     w_all_ref, asrc_all_ref, adst_all_ref,
                     bias_all_ref, gamma_all_ref, beta_all_ref,
                     w_out_ref, b_out_ref,
                     o_ref, *, num_layers, heads, inv_n):
    """Whole GATGraphTransGeo++ forward in one VMEM-resident kernel."""
    x = x_ref[...]                       # [N, input_dim]
    adj_bias = adj_bias_ref[...]         # [N, N]: 0 on edges, -1e30 off edges
    n = x.shape[0]

    # ---- input Linear + ReLU (dropout = identity in eval mode) --------------
    h = jnp.maximum(
        jnp.dot(x, w_in_ref[...], preferred_element_type=jnp.float32)
        + b_in_ref[...], 0.0)                                     # [N, hidden]

    # ---- GAT layers (statically unrolled) ------------------------------------
    for l in range(num_layers):
        # Shared linear transform (PyG GATConv lin, no bias).
        hw = jnp.dot(h, w_all_ref[l], preferred_element_type=jnp.float32)

        # Attention logits via MXU: block-structured [hidden, heads] matrices
        # give a_src[i, k] = <h_k(i), att_src_k>, a_dst[i, k] = <h_k(i), att_dst_k>.
        a_src = jnp.dot(hw, asrc_all_ref[l], preferred_element_type=jnp.float32)
        a_dst = jnp.dot(hw, adst_all_ref[l], preferred_element_type=jnp.float32)
        a_src_t = jnp.transpose(a_src)   # [heads, N] — single XLU transpose/layer

        gat = jnp.zeros_like(hw)         # [N, hidden] accumulator
        for k in range(heads):           # statically unrolled, heads = 4
            # e[i, j] = a_dst[i, k] + a_src[j, k]
            e = a_dst[:, k:k + 1] + a_src_t[k:k + 1, :]           # [N, N]
            e = jnp.where(e > 0, e, 0.2 * e)                      # LeakyReLU(0.2)
            e = e + adj_bias                                      # mask non-edges
            e = e - jnp.max(e, axis=-1, keepdims=True)
            p = jnp.exp(e)                                        # non-edges -> 0
            attn = p * pl.reciprocal(jnp.sum(p, axis=-1, keepdims=True),
                                     approx=True)                 # row softmax
            # Aggregate against the full-width hw (32 MXU output lanes), then
            # keep only head k's lane block — no concat, no 8-wide slices of hw.
            gat = gat + (jnp.dot(attn, hw, preferred_element_type=jnp.float32)
                         * head_mask_ref[k])

        y = gat + bias_all_ref[l] + h    # GATConv bias + identity residual
        # LayerNorm over the feature axis (eps = 1e-5) + ReLU.
        mu = jnp.mean(y, axis=-1, keepdims=True)
        var = jnp.mean(jnp.square(y - mu), axis=-1, keepdims=True)
        yn = (y - mu) * jax.lax.rsqrt(var + 1e-5)
        h = jnp.maximum(yn * gamma_all_ref[l] + beta_all_ref[l], 0.0)

    # ---- global mean pool (ones-row matmul on MXU) + output Linear -----------
    pooled = jnp.dot(jnp.full((1, n), inv_n, dtype=jnp.float32), h,
                     preferred_element_type=jnp.float32)          # [1, hidden]
    o_ref[...] = (jnp.dot(pooled, w_out_ref[...],
                          preferred_element_type=jnp.float32) + b_out_ref[...])


# --------------------------------------------------------------- wrapper ----

def gat_graphtransgeo_forward(x, adj, params):
    n_nodes = x.shape[0]
    hidden = params["w_in"].shape[1]
    out_dim = params["w_out"].shape[1]
    heads = HEADS
    head_dim = hidden // heads
    num_layers = len(params["gat_layers"])

    # --- host-side (trace-time) packing so the kernel sees matmul-friendly data
    adj_bias = jnp.where(adj > 0, 0.0, -1e30).astype(jnp.float32)     # [N, N]

    def block_att(att):
        """[heads, head_dim] -> [hidden, heads] block-column matrix."""
        m = jnp.zeros((hidden, heads), jnp.float32)
        for k in range(heads):
            m = m.at[k * head_dim:(k + 1) * head_dim, k].set(att[k])
        return m

    w_all = jnp.stack([lp["w"] for lp in params["gat_layers"]])
    asrc_all = jnp.stack([block_att(lp["att_src"]) for lp in params["gat_layers"]])
    adst_all = jnp.stack([block_att(lp["att_dst"]) for lp in params["gat_layers"]])
    bias_all = jnp.stack([lp["bias"] for lp in params["gat_layers"]])    # [L,1,H]
    gamma_all = jnp.stack([lp["gamma"] for lp in params["gat_layers"]])  # [L,1,H]
    beta_all = jnp.stack([lp["beta"] for lp in params["gat_layers"]])    # [L,1,H]

    col_head = jnp.arange(hidden) // head_dim
    head_mask = (col_head[None, None, :]
                 == jnp.arange(heads)[:, None, None]).astype(jnp.float32)  # [heads,1,H]

    kernel = functools.partial(fused_gat_kernel, num_layers=num_layers,
                               heads=heads, inv_n=1.0 / n_nodes)

    return pl.pallas_call(
        kernel,
        out_shape=jax.ShapeDtypeStruct((1, out_dim), jnp.float32),
        in_specs=[_vmem_spec() for _ in range(13)],
        out_specs=_vmem_spec(),
    )(x, adj_bias, head_mask,
      params["w_in"], params["b_in"],
      w_all, asrc_all, adst_all, bias_all, gamma_all, beta_all,
      params["w_out"], params["b_out"])


# ------------------------------------------------------------------ setup ---

def init_params(key, input_dim, hidden_dim, output_dim, num_layers, heads):
    head_dim = hidden_dim // heads
    ks = jax.random.split(key, 2 + 3 * num_layers)
    params = {
        "w_in": 0.1 * jax.random.normal(ks[0], (input_dim, hidden_dim), jnp.float32),
        "b_in": jnp.zeros((1, hidden_dim), jnp.float32),
        "w_out": 0.1 * jax.random.normal(ks[1], (hidden_dim, output_dim), jnp.float32),
        "b_out": jnp.zeros((1, output_dim), jnp.float32),
        "gat_layers": [],
    }
    for i in range(num_layers):
        k0, k1, k2 = ks[2 + 3 * i], ks[3 + 3 * i], ks[4 + 3 * i]
        params["gat_layers"].append({
            "w": 0.1 * jax.random.normal(k0, (hidden_dim, heads * head_dim), jnp.float32),
            "att_src": 0.1 * jax.random.normal(k1, (heads, head_dim), jnp.float32),
            "att_dst": 0.1 * jax.random.normal(k2, (heads, head_dim), jnp.float32),
            "bias": jnp.zeros((1, heads * head_dim), jnp.float32),
            "gamma": jnp.ones((1, heads * head_dim), jnp.float32),
            "beta": jnp.zeros((1, heads * head_dim), jnp.float32),
        })
    return params


def build_adjacency(edge_index, num_nodes):
    """adj[i, j] = 1 iff edge j -> i exists; self-loops added (PyG default)."""
    src, dst = edge_index[0], edge_index[1]
    adj = jnp.zeros((num_nodes, num_nodes), jnp.float32)
    adj = adj.at[dst, src].set(1.0)
    adj = adj.at[jnp.arange(num_nodes), jnp.arange(num_nodes)].set(1.0)
    return adj


if __name__ == "__main__":
    input_dim, hidden_dim, output_dim = 16, 32, 2
    num_layers, heads = 3, HEADS
    num_nodes, num_edges = 16, 32

    key = jax.random.PRNGKey(0)
    k_param, k_x, k_e = jax.random.split(key, 3)

    params = init_params(k_param, input_dim, hidden_dim, output_dim,
                         num_layers, heads)

    x = jax.random.normal(k_x, (num_nodes, input_dim), jnp.float32)
    edge_index = jax.random.randint(k_e, (2, num_edges), 0, num_nodes,
                                    dtype=jnp.int32)
    adj = build_adjacency(edge_index, num_nodes)

    pred = gat_graphtransgeo_forward(x, adj, params)
    pred = jax.block_until_ready(pred)
    assert pred.shape == (1, output_dim)
    assert bool(jnp.all(jnp.isfinite(pred)))
    print("KERNEL_OK")
</pallas_src>

<mosaic_0001>
module attributes {stable_mosaic.version = 11 : i64} {
  func.func @fused_gat_kernel(%arg0: memref<16x16xf32, #tpu.memory_space<vmem>>, %arg1: memref<16x16xf32, #tpu.memory_space<vmem>>, %arg2: memref<4x1x32xf32, #tpu.memory_space<vmem>>, %arg3: memref<16x32xf32, #tpu.memory_space<vmem>>, %arg4: memref<1x32xf32, #tpu.memory_space<vmem>>, %arg5: memref<3x32x32xf32, #tpu.memory_space<vmem>>, %arg6: memref<3x32x4xf32, #tpu.memory_space<vmem>>, %arg7: memref<3x32x4xf32, #tpu.memory_space<vmem>>, %arg8: memref<3x1x32xf32, #tpu.memory_space<vmem>>, %arg9: memref<3x1x32xf32, #tpu.memory_space<vmem>>, %arg10: memref<3x1x32xf32, #tpu.memory_space<vmem>>, %arg11: memref<32x2xf32, #tpu.memory_space<vmem>>, %arg12: memref<1x2xf32, #tpu.memory_space<vmem>>, %arg13: memref<1x2xf32, #tpu.memory_space<vmem>>) attributes {dimension_semantics = [], scalar_prefetch = 0 : i64, scratch_operands = 0 : i64, tpu.core_type = #tpu.core_type<tc>} {
    %c0 = arith.constant 0 : index
    %c0_0 = arith.constant 0 : index
    %0 = vector.load %arg0[%c0, %c0_0] : memref<16x16xf32, #tpu.memory_space<vmem>>, vector<16x16xf32>
    %c0_1 = arith.constant 0 : index
    %c0_2 = arith.constant 0 : index
    %1 = vector.load %arg1[%c0_1, %c0_2] : memref<16x16xf32, #tpu.memory_space<vmem>>, vector<16x16xf32>
    %c0_3 = arith.constant 0 : index
    %c0_4 = arith.constant 0 : index
    %2 = vector.load %arg3[%c0_3, %c0_4] : memref<16x32xf32, #tpu.memory_space<vmem>>, vector<16x32xf32>
    %cst = arith.constant dense<0.000000e+00> : vector<16x32xf32>
    %3 = tpu.matmul %0, %2, %cst {dimension_numbers = #tpu.dot_dimension_numbers<[1], [0], [0], [1], [0, 0, 1, 1], [], []>} : vector<16x16xf32>, vector<16x32xf32>, vector<16x32xf32> -> vector<16x32xf32>
    %c0_5 = arith.constant 0 : index
    %c0_6 = arith.constant 0 : index
    %4 = vector.load %arg4[%c0_5, %c0_6] : memref<1x32xf32, #tpu.memory_space<vmem>>, vector<1x32xf32>
    %5 = vector.broadcast %4 : vector<1x32xf32> to vector<16x32xf32>
    %6 = arith.addf %3, %5 : vector<16x32xf32>
    %cst_7 = arith.constant 0.000000e+00 : f32
    %7 = vector.broadcast %cst_7 : f32 to vector<16x32xf32>
    %8 = arith.maximumf %6, %7 : vector<16x32xf32>
    %c0_8 = arith.constant 0 : index
    %c0_9 = arith.constant 0 : index
    %c0_10 = arith.constant 0 : index
    %9 = vector.load %arg5[%c0_8, %c0_9, %c0_10] : memref<3x32x32xf32, #tpu.memory_space<vmem>>, vector<1x32x32xf32>
    %10 = vector.shape_cast %9 : vector<1x32x32xf32> to vector<32x32xf32>
    %cst_11 = arith.constant dense<0.000000e+00> : vector<16x32xf32>
    %11 = tpu.matmul %8, %10, %cst_11 {dimension_numbers = #tpu.dot_dimension_numbers<[1], [0], [0], [1], [0, 0, 1, 1], [], []>} : vector<16x32xf32>, vector<32x32xf32>, vector<16x32xf32> -> vector<16x32xf32>
    %c0_12 = arith.constant 0 : index
    %c0_13 = arith.constant 0 : index
    %c0_14 = arith.constant 0 : index
    %12 = vector.load %arg6[%c0_12, %c0_13, %c0_14] : memref<3x32x4xf32, #tpu.memory_space<vmem>>, vector<1x32x4xf32>
    %13 = vector.shape_cast %12 : vector<1x32x4xf32> to vector<32x4xf32>
    %cst_15 = arith.constant dense<0.000000e+00> : vector<16x4xf32>
    %14 = tpu.matmul %11, %13, %cst_15 {dimension_numbers = #tpu.dot_dimension_numbers<[1], [0], [0], [1], [0, 0, 1, 1], [], []>} : vector<16x32xf32>, vector<32x4xf32>, vector<16x4xf32> -> vector<16x4xf32>
    %c0_16 = arith.constant 0 : index
    %c0_17 = arith.constant 0 : index
    %c0_18 = arith.constant 0 : index
    %15 = vector.load %arg7[%c0_16, %c0_17, %c0_18] : memref<3x32x4xf32, #tpu.memory_space<vmem>>, vector<1x32x4xf32>
    %16 = vector.shape_cast %15 : vector<1x32x4xf32> to vector<32x4xf32>
    %cst_19 = arith.constant dense<0.000000e+00> : vector<16x4xf32>
    %17 = tpu.matmul %11, %16, %cst_19 {dimension_numbers = #tpu.dot_dimension_numbers<[1], [0], [0], [1], [0, 0, 1, 1], [], []>} : vector<16x32xf32>, vector<32x4xf32>, vector<16x4xf32> -> vector<16x4xf32>
    %18 = tpu.transpose %14, [1, 0] : vector<16x4xf32> -> vector<4x16xf32>
    %cst_20 = arith.constant 0.000000e+00 : f32
    %19 = vector.broadcast %cst_20 : f32 to vector<16x32xf32>
    %20 = vector.extract_strided_slice %17 {offsets = [0, 0], sizes = [16, 1], strides = [1, 1]} : vector<16x4xf32> to vector<16x1xf32>
    %21 = vector.extract_strided_slice %18 {offsets = [0, 0], sizes = [1, 16], strides = [1, 1]} : vector<4x16xf32> to vector<1x16xf32>
    %22 = vector.broadcast %20 : vector<16x1xf32> to vector<16x16xf32>
    %23 = vector.broadcast %21 : vector<1x16xf32> to vector<16x16xf32>
    %24 = arith.addf %22, %23 : vector<16x16xf32>
    %cst_21 = arith.constant 0.000000e+00 : f32
    %25 = vector.broadcast %cst_21 : f32 to vector<16x16xf32>
    %26 = arith.cmpf ogt, %24, %25 : vector<16x16xf32>
    %cst_22 = arith.constant 2.000000e-01 : f32
    %27 = vector.broadcast %cst_22 : f32 to vector<16x16xf32>
    %28 = arith.mulf %27, %24 : vector<16x16xf32>
    %29 = arith.select %26, %24, %28 : vector<16x16xi1>, vector<16x16xf32>
    %30 = arith.addf %29, %1 : vector<16x16xf32>
    %cst_23 = arith.constant dense<0xFF800000> : vector<16xf32>
    %31 = vector.multi_reduction <maximumf>, %30, %cst_23 [1] : vector<16x16xf32> to vector<16xf32>
    %32 = vector.shape_cast %31 : vector<16xf32> to vector<16x1xf32>
    %33 = vector.broadcast %32 : vector<16x1xf32> to vector<16x16xf32>
    %34 = arith.subf %30, %33 : vector<16x16xf32>
    %35 = math.exp %34 : vector<16x16xf32>
    %cst_24 = arith.constant dense<0.000000e+00> : vector<16xf32>
    %36 = vector.multi_reduction <add>, %35, %cst_24 [1] : vector<16x16xf32> to vector<16xf32>
    %37 = vector.shape_cast %36 : vector<16xf32> to vector<16x1xf32>
    %38 = tpu.reciprocal %37 {approx = true} : vector<16x1xf32> -> vector<16x1xf32>
    %39 = vector.broadcast %38 : vector<16x1xf32> to vector<16x16xf32>
    %40 = arith.mulf %35, %39 : vector<16x16xf32>
    %cst_25 = arith.constant dense<0.000000e+00> : vector<16x32xf32>
    %41 = tpu.matmul %40, %11, %cst_25 {dimension_numbers = #tpu.dot_dimension_numbers<[1], [0], [0], [1], [0, 0, 1, 1], [], []>} : vector<16x16xf32>, vector<16x32xf32>, vector<16x32xf32> -> vector<16x32xf32>
    %c0_26 = arith.constant 0 : index
    %c0_27 = arith.constant 0 : index
    %c0_28 = arith.constant 0 : index
    %42 = vector.load %arg2[%c0_26, %c0_27, %c0_28] : memref<4x1x32xf32, #tpu.memory_space<vmem>>, vector<1x1x32xf32>
    %43 = vector.shape_cast %42 : vector<1x1x32xf32> to vector<1x32xf32>
    %44 = vector.broadcast %43 : vector<1x32xf32> to vector<16x32xf32>
    %45 = arith.mulf %41, %44 : vector<16x32xf32>
    %46 = arith.addf %19, %45 : vector<16x32xf32>
    %47 = vector.extract_strided_slice %17 {offsets = [0, 1], sizes = [16, 1], strides = [1, 1]} : vector<16x4xf32> to vector<16x1xf32>
    %48 = vector.extract_strided_slice %18 {offsets = [1, 0], sizes = [1, 16], strides = [1, 1]} : vector<4x16xf32> to vector<1x16xf32>
    %49 = vector.broadcast %47 : vector<16x1xf32> to vector<16x16xf32>
    %50 = vector.broadcast %48 : vector<1x16xf32> to vector<16x16xf32>
    %51 = arith.addf %49, %50 : vector<16x16xf32>
    %cst_29 = arith.constant 0.000000e+00 : f32
    %52 = vector.broadcast %cst_29 : f32 to vector<16x16xf32>
    %53 = arith.cmpf ogt, %51, %52 : vector<16x16xf32>
    %cst_30 = arith.constant 2.000000e-01 : f32
    %54 = vector.broadcast %cst_30 : f32 to vector<16x16xf32>
    %55 = arith.mulf %54, %51 : vector<16x16xf32>
    %56 = arith.select %53, %51, %55 : vector<16x16xi1>, vector<16x16xf32>
    %57 = arith.addf %56, %1 : vector<16x16xf32>
    %cst_31 = arith.constant dense<0xFF800000> : vector<16xf32>
    %58 = vector.multi_reduction <maximumf>, %57, %cst_31 [1] : vector<16x16xf32> to vector<16xf32>
    %59 = vector.shape_cast %58 : vector<16xf32> to vector<16x1xf32>
    %60 = vector.broadcast %59 : vector<16x1xf32> to vector<16x16xf32>
    %61 = arith.subf %57, %60 : vector<16x16xf32>
    %62 = math.exp %61 : vector<16x16xf32>
    %cst_32 = arith.constant dense<0.000000e+00> : vector<16xf32>
    %63 = vector.multi_reduction <add>, %62, %cst_32 [1] : vector<16x16xf32> to vector<16xf32>
    %64 = vector.shape_cast %63 : vector<16xf32> to vector<16x1xf32>
    %65 = tpu.reciprocal %64 {approx = true} : vector<16x1xf32> -> vector<16x1xf32>
    %66 = vector.broadcast %65 : vector<16x1xf32> to vector<16x16xf32>
    %67 = arith.mulf %62, %66 : vector<16x16xf32>
    %cst_33 = arith.constant dense<0.000000e+00> : vector<16x32xf32>
    %68 = tpu.matmul %67, %11, %cst_33 {dimension_numbers = #tpu.dot_dimension_numbers<[1], [0], [0], [1], [0, 0, 1, 1], [], []>} : vector<16x16xf32>, vector<16x32xf32>, vector<16x32xf32> -> vector<16x32xf32>
    %c1 = arith.constant 1 : index
    %c0_34 = arith.constant 0 : index
    %c0_35 = arith.constant 0 : index
    %69 = vector.load %arg2[%c1, %c0_34, %c0_35] : memref<4x1x32xf32, #tpu.memory_space<vmem>>, vector<1x1x32xf32>
    %70 = vector.shape_cast %69 : vector<1x1x32xf32> to vector<1x32xf32>
    %71 = vector.broadcast %70 : vector<1x32xf32> to vector<16x32xf32>
    %72 = arith.mulf %68, %71 : vector<16x32xf32>
    %73 = arith.addf %46, %72 : vector<16x32xf32>
    %74 = vector.extract_strided_slice %17 {offsets = [0, 2], sizes = [16, 1], strides = [1, 1]} : vector<16x4xf32> to vector<16x1xf32>
    %75 = vector.extract_strided_slice %18 {offsets = [2, 0], sizes = [1, 16], strides = [1, 1]} : vector<4x16xf32> to vector<1x16xf32>
    %76 = vector.broadcast %74 : vector<16x1xf32> to vector<16x16xf32>
    %77 = vector.broadcast %75 : vector<1x16xf32> to vector<16x16xf32>
    %78 = arith.addf %76, %77 : vector<16x16xf32>
    %cst_36 = arith.constant 0.000000e+00 : f32
    %79 = vector.broadcast %cst_36 : f32 to vector<16x16xf32>
    %80 = arith.cmpf ogt, %78, %79 : vector<16x16xf32>
    %cst_37 = arith.constant 2.000000e-01 : f32
    %81 = vector.broadcast %cst_37 : f32 to vector<16x16xf32>
    %82 = arith.mulf %81, %78 : vector<16x16xf32>
    %83 = arith.select %80, %78, %82 : vector<16x16xi1>, vector<16x16xf32>
    %84 = arith.addf %83, %1 : vector<16x16xf32>
    %cst_38 = arith.constant dense<0xFF800000> : vector<16xf32>
    %85 = vector.multi_reduction <maximumf>, %84, %cst_38 [1] : vector<16x16xf32> to vector<16xf32>
    %86 = vector.shape_cast %85 : vector<16xf32> to vector<16x1xf32>
    %87 = vector.broadcast %86 : vector<16x1xf32> to vector<16x16xf32>
    %88 = arith.subf %84, %87 : vector<16x16xf32>
    %89 = math.exp %88 : vector<16x16xf32>
    %cst_39 = arith.constant dense<0.000000e+00> : vector<16xf32>
    %90 = vector.multi_reduction <add>, %89, %cst_39 [1] : vector<16x16xf32> to vector<16xf32>
    %91 = vector.shape_cast %90 : vector<16xf32> to vector<16x1xf32>
    %92 = tpu.reciprocal %91 {approx = true} : vector<16x1xf32> -> vector<16x1xf32>
    %93 = vector.broadcast %92 : vector<16x1xf32> to vector<16x16xf32>
    %94 = arith.mulf %89, %93 : vector<16x16xf32>
    %cst_40 = arith.constant dense<0.000000e+00> : vector<16x32xf32>
    %95 = tpu.matmul %94, %11, %cst_40 {dimension_numbers = #tpu.dot_dimension_numbers<[1], [0], [0], [1], [0, 0, 1, 1], [], []>} : vector<16x16xf32>, vector<16x32xf32>, vector<16x32xf32> -> vector<16x32xf32>
    %c2 = arith.constant 2 : index
    %c0_41 = arith.constant 0 : index
    %c0_42 = arith.constant 0 : index
    %96 = vector.load %arg2[%c2, %c0_41, %c0_42] : memref<4x1x32xf32, #tpu.memory_space<vmem>>, vector<1x1x32xf32>
    %97 = vector.shape_cast %96 : vector<1x1x32xf32> to vector<1x32xf32>
    %98 = vector.broadcast %97 : vector<1x32xf32> to vector<16x32xf32>
    %99 = arith.mulf %95, %98 : vector<16x32xf32>
    %100 = arith.addf %73, %99 : vector<16x32xf32>
    %101 = vector.extract_strided_slice %17 {offsets = [0, 3], sizes = [16, 1], strides = [1, 1]} : vector<16x4xf32> to vector<16x1xf32>
    %102 = vector.extract_strided_slice %18 {offsets = [3, 0], sizes = [1, 16], strides = [1, 1]} : vector<4x16xf32> to vector<1x16xf32>
    %103 = vector.broadcast %101 : vector<16x1xf32> to vector<16x16xf32>
    %104 = vector.broadcast %102 : vector<1x16xf32> to vector<16x16xf32>
    %105 = arith.addf %103, %104 : vector<16x16xf32>
    %cst_43 = arith.constant 0.000000e+00 : f32
    %106 = vector.broadcast %cst_43 : f32 to vector<16x16xf32>
    %107 = arith.cmpf ogt, %105, %106 : vector<16x16xf32>
    %cst_44 = arith.constant 2.000000e-01 : f32
    %108 = vector.broadcast %cst_44 : f32 to vector<16x16xf32>
    %109 = arith.mulf %108, %105 : vector<16x16xf32>
    %110 = arith.select %107, %105, %109 : vector<16x16xi1>, vector<16x16xf32>
    %111 = arith.addf %110, %1 : vector<16x16xf32>
    %cst_45 = arith.constant dense<0xFF800000> : vector<16xf32>
    %112 = vector.multi_reduction <maximumf>, %111, %cst_45 [1] : vector<16x16xf32> to vector<16xf32>
    %113 = vector.shape_cast %112 : vector<16xf32> to vector<16x1xf32>
    %114 = vector.broadcast %113 : vector<16x1xf32> to vector<16x16xf32>
    %115 = arith.subf %111, %114 : vector<16x16xf32>
    %116 = math.exp %115 : vector<16x16xf32>
    %cst_46 = arith.constant dense<0.000000e+00> : vector<16xf32>
    %117 = vector.multi_reduction <add>, %116, %cst_46 [1] : vector<16x16xf32> to vector<16xf32>
    %118 = vector.shape_cast %117 : vector<16xf32> to vector<16x1xf32>
    %119 = tpu.reciprocal %118 {approx = true} : vector<16x1xf32> -> vector<16x1xf32>
    %120 = vector.broadcast %119 : vector<16x1xf32> to vector<16x16xf32>
    %121 = arith.mulf %116, %120 : vector<16x16xf32>
    %cst_47 = arith.constant dense<0.000000e+00> : vector<16x32xf32>
    %122 = tpu.matmul %121, %11, %cst_47 {dimension_numbers = #tpu.dot_dimension_numbers<[1], [0], [0], [1], [0, 0, 1, 1], [], []>} : vector<16x16xf32>, vector<16x32xf32>, vector<16x32xf32> -> vector<16x32xf32>
    %c3 = arith.constant 3 : index
    %c0_48 = arith.constant 0 : index
    %c0_49 = arith.constant 0 : index
    %123 = vector.load %arg2[%c3, %c0_48, %c0_49] : memref<4x1x32xf32, #tpu.memory_space<vmem>>, vector<1x1x32xf32>
    %124 = vector.shape_cast %123 : vector<1x1x32xf32> to vector<1x32xf32>
    %125 = vector.broadcast %124 : vector<1x32xf32> to vector<16x32xf32>
    %126 = arith.mulf %122, %125 : vector<16x32xf32>
    %127 = arith.addf %100, %126 : vector<16x32xf32>
    %c0_50 = arith.constant 0 : index
    %c0_51 = arith.constant 0 : index
    %c0_52 = arith.constant 0 : index
    %128 = vector.load %arg8[%c0_50, %c0_51, %c0_52] : memref<3x1x32xf32, #tpu.memory_space<vmem>>, vector<1x1x32xf32>
    %129 = vector.shape_cast %128 : vector<1x1x32xf32> to vector<1x32xf32>
    %130 = vector.broadcast %129 : vector<1x32xf32> to vector<16x32xf32>
    %131 = arith.addf %127, %130 : vector<16x32xf32>
    %132 = arith.addf %131, %8 : vector<16x32xf32>
    %cst_53 = arith.constant dense<0.000000e+00> : vector<16xf32>
    %133 = vector.multi_reduction <add>, %132, %cst_53 [1] : vector<16x32xf32> to vector<16xf32>
    %134 = vector.shape_cast %133 : vector<16xf32> to vector<16x1xf32>
    %cst_54 = arith.constant 3.200000e+01 : f32
    %135 = vector.broadcast %cst_54 : f32 to vector<16x1xf32>
    %136 = arith.divf %134, %135 : vector<16x1xf32>
    %137 = vector.broadcast %136 : vector<16x1xf32> to vector<16x32xf32>
    %138 = arith.subf %132, %137 : vector<16x32xf32>
    %139 = arith.mulf %138, %138 : vector<16x32xf32>
    %cst_55 = arith.constant dense<0.000000e+00> : vector<16xf32>
    %140 = vector.multi_reduction <add>, %139, %cst_55 [1] : vector<16x32xf32> to vector<16xf32>
    %141 = vector.shape_cast %140 : vector<16xf32> to vector<16x1xf32>
    %cst_56 = arith.constant 3.200000e+01 : f32
    %142 = vector.broadcast %cst_56 : f32 to vector<16x1xf32>
    %143 = arith.divf %141, %142 : vector<16x1xf32>
    %144 = vector.broadcast %136 : vector<16x1xf32> to vector<16x32xf32>
    %145 = arith.subf %132, %144 : vector<16x32xf32>
    %cst_57 = arith.constant 9.99999974E-6 : f32
    %146 = vector.broadcast %cst_57 : f32 to vector<16x1xf32>
    %147 = arith.addf %143, %146 : vector<16x1xf32>
    %148 = math.rsqrt %147 : vector<16x1xf32>
    %149 = vector.broadcast %148 : vector<16x1xf32> to vector<16x32xf32>
    %150 = arith.mulf %145, %149 : vector<16x32xf32>
    %c0_58 = arith.constant 0 : index
    %c0_59 = arith.constant 0 : index
    %c0_60 = arith.constant 0 : index
    %151 = vector.load %arg9[%c0_58, %c0_59, %c0_60] : memref<3x1x32xf32, #tpu.memory_space<vmem>>, vector<1x1x32xf32>
    %152 = vector.shape_cast %151 : vector<1x1x32xf32> to vector<1x32xf32>
    %153 = vector.broadcast %152 : vector<1x32xf32> to vector<16x32xf32>
    %154 = arith.mulf %150, %153 : vector<16x32xf32>
    %c0_61 = arith.constant 0 : index
    %c0_62 = arith.constant 0 : index
    %c0_63 = arith.constant 0 : index
    %155 = vector.load %arg10[%c0_61, %c0_62, %c0_63] : memref<3x1x32xf32, #tpu.memory_space<vmem>>, vector<1x1x32xf32>
    %156 = vector.shape_cast %155 : vector<1x1x32xf32> to vector<1x32xf32>
    %157 = vector.broadcast %156 : vector<1x32xf32> to vector<16x32xf32>
    %158 = arith.addf %154, %157 : vector<16x32xf32>
    %cst_64 = arith.constant 0.000000e+00 : f32
    %159 = vector.broadcast %cst_64 : f32 to vector<16x32xf32>
    %160 = arith.maximumf %158, %159 : vector<16x32xf32>
    %c1_65 = arith.constant 1 : index
    %c0_66 = arith.constant 0 : index
    %c0_67 = arith.constant 0 : index
    %161 = vector.load %arg5[%c1_65, %c0_66, %c0_67] : memref<3x32x32xf32, #tpu.memory_space<vmem>>, vector<1x32x32xf32>
    %162 = vector.shape_cast %161 : vector<1x32x32xf32> to vector<32x32xf32>
    %cst_68 = arith.constant dense<0.000000e+00> : vector<16x32xf32>
    %163 = tpu.matmul %160, %162, %cst_68 {dimension_numbers = #tpu.dot_dimension_numbers<[1], [0], [0], [1], [0, 0, 1, 1], [], []>} : vector<16x32xf32>, vector<32x32xf32>, vector<16x32xf32> -> vector<16x32xf32>
    %c1_69 = arith.constant 1 : index
    %c0_70 = arith.constant 0 : index
    %c0_71 = arith.constant 0 : index
    %164 = vector.load %arg6[%c1_69, %c0_70, %c0_71] : memref<3x32x4xf32, #tpu.memory_space<vmem>>, vector<1x32x4xf32>
    %165 = vector.shape_cast %164 : vector<1x32x4xf32> to vector<32x4xf32>
    %cst_72 = arith.constant dense<0.000000e+00> : vector<16x4xf32>
    %166 = tpu.matmul %163, %165, %cst_72 {dimension_numbers = #tpu.dot_dimension_numbers<[1], [0], [0], [1], [0, 0, 1, 1], [], []>} : vector<16x32xf32>, vector<32x4xf32>, vector<16x4xf32> -> vector<16x4xf32>
    %c1_73 = arith.constant 1 : index
    %c0_74 = arith.constant 0 : index
    %c0_75 = arith.constant 0 : index
    %167 = vector.load %arg7[%c1_73, %c0_74, %c0_75] : memref<3x32x4xf32, #tpu.memory_space<vmem>>, vector<1x32x4xf32>
    %168 = vector.shape_cast %167 : vector<1x32x4xf32> to vector<32x4xf32>
    %cst_76 = arith.constant dense<0.000000e+00> : vector<16x4xf32>
    %169 = tpu.matmul %163, %168, %cst_76 {dimension_numbers = #tpu.dot_dimension_numbers<[1], [0], [0], [1], [0, 0, 1, 1], [], []>} : vector<16x32xf32>, vector<32x4xf32>, vector<16x4xf32> -> vector<16x4xf32>
    %170 = tpu.transpose %166, [1, 0] : vector<16x4xf32> -> vector<4x16xf32>
    %cst_77 = arith.constant 0.000000e+00 : f32
    %171 = vector.broadcast %cst_77 : f32 to vector<16x32xf32>
    %172 = vector.extract_strided_slice %169 {offsets = [0, 0], sizes = [16, 1], strides = [1, 1]} : vector<16x4xf32> to vector<16x1xf32>
    %173 = vector.extract_strided_slice %170 {offsets = [0, 0], sizes = [1, 16], strides = [1, 1]} : vector<4x16xf32> to vector<1x16xf32>
    %174 = vector.broadcast %172 : vector<16x1xf32> to vector<16x16xf32>
    %175 = vector.broadcast %173 : vector<1x16xf32> to vector<16x16xf32>
    %176 = arith.addf %174, %175 : vector<16x16xf32>
    %cst_78 = arith.constant 0.000000e+00 : f32
    %177 = vector.broadcast %cst_78 : f32 to vector<16x16xf32>
    %178 = arith.cmpf ogt, %176, %177 : vector<16x16xf32>
    %cst_79 = arith.constant 2.000000e-01 : f32
    %179 = vector.broadcast %cst_79 : f32 to vector<16x16xf32>
    %180 = arith.mulf %179, %176 : vector<16x16xf32>
    %181 = arith.select %178, %176, %180 : vector<16x16xi1>, vector<16x16xf32>
    %182 = arith.addf %181, %1 : vector<16x16xf32>
    %cst_80 = arith.constant dense<0xFF800000> : vector<16xf32>
    %183 = vector.multi_reduction <maximumf>, %182, %cst_80 [1] : vector<16x16xf32> to vector<16xf32>
    %184 = vector.shape_cast %183 : vector<16xf32> to vector<16x1xf32>
    %185 = vector.broadcast %184 : vector<16x1xf32> to vector<16x16xf32>
    %186 = arith.subf %182, %185 : vector<16x16xf32>
    %187 = math.exp %186 : vector<16x16xf32>
    %cst_81 = arith.constant dense<0.000000e+00> : vector<16xf32>
    %188 = vector.multi_reduction <add>, %187, %cst_81 [1] : vector<16x16xf32> to vector<16xf32>
    %189 = vector.shape_cast %188 : vector<16xf32> to vector<16x1xf32>
    %190 = tpu.reciprocal %189 {approx = true} : vector<16x1xf32> -> vector<16x1xf32>
    %191 = vector.broadcast %190 : vector<16x1xf32> to vector<16x16xf32>
    %192 = arith.mulf %187, %191 : vector<16x16xf32>
    %cst_82 = arith.constant dense<0.000000e+00> : vector<16x32xf32>
    %193 = tpu.matmul %192, %163, %cst_82 {dimension_numbers = #tpu.dot_dimension_numbers<[1], [0], [0], [1], [0, 0, 1, 1], [], []>} : vector<16x16xf32>, vector<16x32xf32>, vector<16x32xf32> -> vector<16x32xf32>
    %c0_83 = arith.constant 0 : index
    %c0_84 = arith.constant 0 : index
    %c0_85 = arith.constant 0 : index
    %194 = vector.load %arg2[%c0_83, %c0_84, %c0_85] : memref<4x1x32xf32, #tpu.memory_space<vmem>>, vector<1x1x32xf32>
    %195 = vector.shape_cast %194 : vector<1x1x32xf32> to vector<1x32xf32>
    %196 = vector.broadcast %195 : vector<1x32xf32> to vector<16x32xf32>
    %197 = arith.mulf %193, %196 : vector<16x32xf32>
    %198 = arith.addf %171, %197 : vector<16x32xf32>
    %199 = vector.extract_strided_slice %169 {offsets = [0, 1], sizes = [16, 1], strides = [1, 1]} : vector<16x4xf32> to vector<16x1xf32>
    %200 = vector.extract_strided_slice %170 {offsets = [1, 0], sizes = [1, 16], strides = [1, 1]} : vector<4x16xf32> to vector<1x16xf32>
    %201 = vector.broadcast %199 : vector<16x1xf32> to vector<16x16xf32>
    %202 = vector.broadcast %200 : vector<1x16xf32> to vector<16x16xf32>
    %203 = arith.addf %201, %202 : vector<16x16xf32>
    %cst_86 = arith.constant 0.000000e+00 : f32
    %204 = vector.broadcast %cst_86 : f32 to vector<16x16xf32>
    %205 = arith.cmpf ogt, %203, %204 : vector<16x16xf32>
    %cst_87 = arith.constant 2.000000e-01 : f32
    %206 = vector.broadcast %cst_87 : f32 to vector<16x16xf32>
    %207 = arith.mulf %206, %203 : vector<16x16xf32>
    %208 = arith.select %205, %203, %207 : vector<16x16xi1>, vector<16x16xf32>
    %209 = arith.addf %208, %1 : vector<16x16xf32>
    %cst_88 = arith.constant dense<0xFF800000> : vector<16xf32>
    %210 = vector.multi_reduction <maximumf>, %209, %cst_88 [1] : vector<16x16xf32> to vector<16xf32>
    %211 = vector.shape_cast %210 : vector<16xf32> to vector<16x1xf32>
    %212 = vector.broadcast %211 : vector<16x1xf32> to vector<16x16xf32>
    %213 = arith.subf %209, %212 : vector<16x16xf32>
    %214 = math.exp %213 : vector<16x16xf32>
    %cst_89 = arith.constant dense<0.000000e+00> : vector<16xf32>
    %215 = vector.multi_reduction <add>, %214, %cst_89 [1] : vector<16x16xf32> to vector<16xf32>
    %216 = vector.shape_cast %215 : vector<16xf32> to vector<16x1xf32>
    %217 = tpu.reciprocal %216 {approx = true} : vector<16x1xf32> -> vector<16x1xf32>
    %218 = vector.broadcast %217 : vector<16x1xf32> to vector<16x16xf32>
    %219 = arith.mulf %214, %218 : vector<16x16xf32>
    %cst_90 = arith.constant dense<0.000000e+00> : vector<16x32xf32>
    %220 = tpu.matmul %219, %163, %cst_90 {dimension_numbers = #tpu.dot_dimension_numbers<[1], [0], [0], [1], [0, 0, 1, 1], [], []>} : vector<16x16xf32>, vector<16x32xf32>, vector<16x32xf32> -> vector<16x32xf32>
    %c1_91 = arith.constant 1 : index
    %c0_92 = arith.constant 0 : index
    %c0_93 = arith.constant 0 : index
    %221 = vector.load %arg2[%c1_91, %c0_92, %c0_93] : memref<4x1x32xf32, #tpu.memory_space<vmem>>, vector<1x1x32xf32>
    %222 = vector.shape_cast %221 : vector<1x1x32xf32> to vector<1x32xf32>
    %223 = vector.broadcast %222 : vector<1x32xf32> to vector<16x32xf32>
    %224 = arith.mulf %220, %223 : vector<16x32xf32>
    %225 = arith.addf %198, %224 : vector<16x32xf32>
    %226 = vector.extract_strided_slice %169 {offsets = [0, 2], sizes = [16, 1], strides = [1, 1]} : vector<16x4xf32> to vector<16x1xf32>
    %227 = vector.extract_strided_slice %170 {offsets = [2, 0], sizes = [1, 16], strides = [1, 1]} : vector<4x16xf32> to vector<1x16xf32>
    %228 = vector.broadcast %226 : vector<16x1xf32> to vector<16x16xf32>
    %229 = vector.broadcast %227 : vector<1x16xf32> to vector<16x16xf32>
    %230 = arith.addf %228, %229 : vector<16x16xf32>
    %cst_94 = arith.constant 0.000000e+00 : f32
    %231 = vector.broadcast %cst_94 : f32 to vector<16x16xf32>
    %232 = arith.cmpf ogt, %230, %231 : vector<16x16xf32>
    %cst_95 = arith.constant 2.000000e-01 : f32
    %233 = vector.broadcast %cst_95 : f32 to vector<16x16xf32>
    %234 = arith.mulf %233, %230 : vector<16x16xf32>
    %235 = arith.select %232, %230, %234 : vector<16x16xi1>, vector<16x16xf32>
    %236 = arith.addf %235, %1 : vector<16x16xf32>
    %cst_96 = arith.constant dense<0xFF800000> : vector<16xf32>
    %237 = vector.multi_reduction <maximumf>, %236, %cst_96 [1] : vector<16x16xf32> to vector<16xf32>
    %238 = vector.shape_cast %237 : vector<16xf32> to vector<16x1xf32>
    %239 = vector.broadcast %238 : vector<16x1xf32> to vector<16x16xf32>
    %240 = arith.subf %236, %239 : vector<16x16xf32>
    %241 = math.exp %240 : vector<16x16xf32>
    %cst_97 = arith.constant dense<0.000000e+00> : vector<16xf32>
    %242 = vector.multi_reduction <add>, %241, %cst_97 [1] : vector<16x16xf32> to vector<16xf32>
    %243 = vector.shape_cast %242 : vector<16xf32> to vector<16x1xf32>
    %244 = tpu.reciprocal %243 {approx = true} : vector<16x1xf32> -> vector<16x1xf32>
    %245 = vector.broadcast %244 : vector<16x1xf32> to vector<16x16xf32>
    %246 = arith.mulf %241, %245 : vector<16x16xf32>
    %cst_98 = arith.constant dense<0.000000e+00> : vector<16x32xf32>
    %247 = tpu.matmul %246, %163, %cst_98 {dimension_numbers = #tpu.dot_dimension_numbers<[1], [0], [0], [1], [0, 0, 1, 1], [], []>} : vector<16x16xf32>, vector<16x32xf32>, vector<16x32xf32> -> vector<16x32xf32>
    %c2_99 = arith.constant 2 : index
    %c0_100 = arith.constant 0 : index
    %c0_101 = arith.constant 0 : index
    %248 = vector.load %arg2[%c2_99, %c0_100, %c0_101] : memref<4x1x32xf32, #tpu.memory_space<vmem>>, vector<1x1x32xf32>
    %249 = vector.shape_cast %248 : vector<1x1x32xf32> to vector<1x32xf32>
    %250 = vector.broadcast %249 : vector<1x32xf32> to vector<16x32xf32>
    %251 = arith.mulf %247, %250 : vector<16x32xf32>
    %252 = arith.addf %225, %251 : vector<16x32xf32>
    %253 = vector.extract_strided_slice %169 {offsets = [0, 3], sizes = [16, 1], strides = [1, 1]} : vector<16x4xf32> to vector<16x1xf32>
    %254 = vector.extract_strided_slice %170 {offsets = [3, 0], sizes = [1, 16], strides = [1, 1]} : vector<4x16xf32> to vector<1x16xf32>
    %255 = vector.broadcast %253 : vector<16x1xf32> to vector<16x16xf32>
    %256 = vector.broadcast %254 : vector<1x16xf32> to vector<16x16xf32>
    %257 = arith.addf %255, %256 : vector<16x16xf32>
    %cst_102 = arith.constant 0.000000e+00 : f32
    %258 = vector.broadcast %cst_102 : f32 to vector<16x16xf32>
    %259 = arith.cmpf ogt, %257, %258 : vector<16x16xf32>
    %cst_103 = arith.constant 2.000000e-01 : f32
    %260 = vector.broadcast %cst_103 : f32 to vector<16x16xf32>
    %261 = arith.mulf %260, %257 : vector<16x16xf32>
    %262 = arith.select %259, %257, %261 : vector<16x16xi1>, vector<16x16xf32>
    %263 = arith.addf %262, %1 : vector<16x16xf32>
    %cst_104 = arith.constant dense<0xFF800000> : vector<16xf32>
    %264 = vector.multi_reduction <maximumf>, %263, %cst_104 [1] : vector<16x16xf32> to vector<16xf32>
    %265 = vector.shape_cast %264 : vector<16xf32> to vector<16x1xf32>
    %266 = vector.broadcast %265 : vector<16x1xf32> to vector<16x16xf32>
    %267 = arith.subf %263, %266 : vector<16x16xf32>
    %268 = math.exp %267 : vector<16x16xf32>
    %cst_105 = arith.constant dense<0.000000e+00> : vector<16xf32>
    %269 = vector.multi_reduction <add>, %268, %cst_105 [1] : vector<16x16xf32> to vector<16xf32>
    %270 = vector.shape_cast %269 : vector<16xf32> to vector<16x1xf32>
    %271 = tpu.reciprocal %270 {approx = true} : vector<16x1xf32> -> vector<16x1xf32>
    %272 = vector.broadcast %271 : vector<16x1xf32> to vector<16x16xf32>
    %273 = arith.mulf %268, %272 : vector<16x16xf32>
    %cst_106 = arith.constant dense<0.000000e+00> : vector<16x32xf32>
    %274 = tpu.matmul %273, %163, %cst_106 {dimension_numbers = #tpu.dot_dimension_numbers<[1], [0], [0], [1], [0, 0, 1, 1], [], []>} : vector<16x16xf32>, vector<16x32xf32>, vector<16x32xf32> -> vector<16x32xf32>
    %c3_107 = arith.constant 3 : index
    %c0_108 = arith.constant 0 : index
    %c0_109 = arith.constant 0 : index
    %275 = vector.load %arg2[%c3_107, %c0_108, %c0_109] : memref<4x1x32xf32, #tpu.memory_space<vmem>>, vector<1x1x32xf32>
    %276 = vector.shape_cast %275 : vector<1x1x32xf32> to vector<1x32xf32>
    %277 = vector.broadcast %276 : vector<1x32xf32> to vector<16x32xf32>
    %278 = arith.mulf %274, %277 : vector<16x32xf32>
    %279 = arith.addf %252, %278 : vector<16x32xf32>
    %c1_110 = arith.constant 1 : index
    %c0_111 = arith.constant 0 : index
    %c0_112 = arith.constant 0 : index
    %280 = vector.load %arg8[%c1_110, %c0_111, %c0_112] : memref<3x1x32xf32, #tpu.memory_space<vmem>>, vector<1x1x32xf32>
    %281 = vector.shape_cast %280 : vector<1x1x32xf32> to vector<1x32xf32>
    %282 = vector.broadcast %281 : vector<1x32xf32> to vector<16x32xf32>
    %283 = arith.addf %279, %282 : vector<16x32xf32>
    %284 = arith.addf %283, %160 : vector<16x32xf32>
    %cst_113 = arith.constant dense<0.000000e+00> : vector<16xf32>
    %285 = vector.multi_reduction <add>, %284, %cst_113 [1] : vector<16x32xf32> to vector<16xf32>
    %286 = vector.shape_cast %285 : vector<16xf32> to vector<16x1xf32>
    %cst_114 = arith.constant 3.200000e+01 : f32
    %287 = vector.broadcast %cst_114 : f32 to vector<16x1xf32>
    %288 = arith.divf %286, %287 : vector<16x1xf32>
    %289 = vector.broadcast %288 : vector<16x1xf32> to vector<16x32xf32>
    %290 = arith.subf %284, %289 : vector<16x32xf32>
    %291 = arith.mulf %290, %290 : vector<16x32xf32>
    %cst_115 = arith.constant dense<0.000000e+00> : vector<16xf32>
    %292 = vector.multi_reduction <add>, %291, %cst_115 [1] : vector<16x32xf32> to vector<16xf32>
    %293 = vector.shape_cast %292 : vector<16xf32> to vector<16x1xf32>
    %cst_116 = arith.constant 3.200000e+01 : f32
    %294 = vector.broadcast %cst_116 : f32 to vector<16x1xf32>
    %295 = arith.divf %293, %294 : vector<16x1xf32>
    %296 = vector.broadcast %288 : vector<16x1xf32> to vector<16x32xf32>
    %297 = arith.subf %284, %296 : vector<16x32xf32>
    %cst_117 = arith.constant 9.99999974E-6 : f32
    %298 = vector.broadcast %cst_117 : f32 to vector<16x1xf32>
    %299 = arith.addf %295, %298 : vector<16x1xf32>
    %300 = math.rsqrt %299 : vector<16x1xf32>
    %301 = vector.broadcast %300 : vector<16x1xf32> to vector<16x32xf32>
    %302 = arith.mulf %297, %301 : vector<16x32xf32>
    %c1_118 = arith.constant 1 : index
    %c0_119 = arith.constant 0 : index
    %c0_120 = arith.constant 0 : index
    %303 = vector.load %arg9[%c1_118, %c0_119, %c0_120] : memref<3x1x32xf32, #tpu.memory_space<vmem>>, vector<1x1x32xf32>
    %304 = vector.shape_cast %303 : vector<1x1x32xf32> to vector<1x32xf32>
    %305 = vector.broadcast %304 : vector<1x32xf32> to vector<16x32xf32>
    %306 = arith.mulf %302, %305 : vector<16x32xf32>
    %c1_121 = arith.constant 1 : index
    %c0_122 = arith.constant 0 : index
    %c0_123 = arith.constant 0 : index
    %307 = vector.load %arg10[%c1_121, %c0_122, %c0_123] : memref<3x1x32xf32, #tpu.memory_space<vmem>>, vector<1x1x32xf32>
    %308 = vector.shape_cast %307 : vector<1x1x32xf32> to vector<1x32xf32>
    %309 = vector.broadcast %308 : vector<1x32xf32> to vector<16x32xf32>
    %310 = arith.addf %306, %309 : vector<16x32xf32>
    %cst_124 = arith.constant 0.000000e+00 : f32
    %311 = vector.broadcast %cst_124 : f32 to vector<16x32xf32>
    %312 = arith.maximumf %310, %311 : vector<16x32xf32>
    %c2_125 = arith.constant 2 : index
    %c0_126 = arith.constant 0 : index
    %c0_127 = arith.constant 0 : index
    %313 = vector.load %arg5[%c2_125, %c0_126, %c0_127] : memref<3x32x32xf32, #tpu.memory_space<vmem>>, vector<1x32x32xf32>
    %314 = vector.shape_cast %313 : vector<1x32x32xf32> to vector<32x32xf32>
    %cst_128 = arith.constant dense<0.000000e+00> : vector<16x32xf32>
    %315 = tpu.matmul %312, %314, %cst_128 {dimension_numbers = #tpu.dot_dimension_numbers<[1], [0], [0], [1], [0, 0, 1, 1], [], []>} : vector<16x32xf32>, vector<32x32xf32>, vector<16x32xf32> -> vector<16x32xf32>
    %c2_129 = arith.constant 2 : index
    %c0_130 = arith.constant 0 : index
    %c0_131 = arith.constant 0 : index
    %316 = vector.load %arg6[%c2_129, %c0_130, %c0_131] : memref<3x32x4xf32, #tpu.memory_space<vmem>>, vector<1x32x4xf32>
    %317 = vector.shape_cast %316 : vector<1x32x4xf32> to vector<32x4xf32>
    %cst_132 = arith.constant dense<0.000000e+00> : vector<16x4xf32>
    %318 = tpu.matmul %315, %317, %cst_132 {dimension_numbers = #tpu.dot_dimension_numbers<[1], [0], [0], [1], [0, 0, 1, 1], [], []>} : vector<16x32xf32>, vector<32x4xf32>, vector<16x4xf32> -> vector<16x4xf32>
    %c2_133 = arith.constant 2 : index
    %c0_134 = arith.constant 0 : index
    %c0_135 = arith.constant 0 : index
    %319 = vector.load %arg7[%c2_133, %c0_134, %c0_135] : memref<3x32x4xf32, #tpu.memory_space<vmem>>, vector<1x32x4xf32>
    %320 = vector.shape_cast %319 : vector<1x32x4xf32> to vector<32x4xf32>
    %cst_136 = arith.constant dense<0.000000e+00> : vector<16x4xf32>
    %321 = tpu.matmul %315, %320, %cst_136 {dimension_numbers = #tpu.dot_dimension_numbers<[1], [0], [0], [1], [0, 0, 1, 1], [], []>} : vector<16x32xf32>, vector<32x4xf32>, vector<16x4xf32> -> vector<16x4xf32>
    %322 = tpu.transpose %318, [1, 0] : vector<16x4xf32> -> vector<4x16xf32>
    %cst_137 = arith.constant 0.000000e+00 : f32
    %323 = vector.broadcast %cst_137 : f32 to vector<16x32xf32>
    %324 = vector.extract_strided_slice %321 {offsets = [0, 0], sizes = [16, 1], strides = [1, 1]} : vector<16x4xf32> to vector<16x1xf32>
    %325 = vector.extract_strided_slice %322 {offsets = [0, 0], sizes = [1, 16], strides = [1, 1]} : vector<4x16xf32> to vector<1x16xf32>
    %326 = vector.broadcast %324 : vector<16x1xf32> to vector<16x16xf32>
    %327 = vector.broadcast %325 : vector<1x16xf32> to vector<16x16xf32>
    %328 = arith.addf %326, %327 : vector<16x16xf32>
    %cst_138 = arith.constant 0.000000e+00 : f32
    %329 = vector.broadcast %cst_138 : f32 to vector<16x16xf32>
    %330 = arith.cmpf ogt, %328, %329 : vector<16x16xf32>
    %cst_139 = arith.constant 2.000000e-01 : f32
    %331 = vector.broadcast %cst_139 : f32 to vector<16x16xf32>
    %332 = arith.mulf %331, %328 : vector<16x16xf32>
    %333 = arith.select %330, %328, %332 : vector<16x16xi1>, vector<16x16xf32>
    %334 = arith.addf %333, %1 : vector<16x16xf32>
    %cst_140 = arith.constant dense<0xFF800000> : vector<16xf32>
    %335 = vector.multi_reduction <maximumf>, %334, %cst_140 [1] : vector<16x16xf32> to vector<16xf32>
    %336 = vector.shape_cast %335 : vector<16xf32> to vector<16x1xf32>
    %337 = vector.broadcast %336 : vector<16x1xf32> to vector<16x16xf32>
    %338 = arith.subf %334, %337 : vector<16x16xf32>
    %339 = math.exp %338 : vector<16x16xf32>
    %cst_141 = arith.constant dense<0.000000e+00> : vector<16xf32>
    %340 = vector.multi_reduction <add>, %339, %cst_141 [1] : vector<16x16xf32> to vector<16xf32>
    %341 = vector.shape_cast %340 : vector<16xf32> to vector<16x1xf32>
    %342 = tpu.reciprocal %341 {approx = true} : vector<16x1xf32> -> vector<16x1xf32>
    %343 = vector.broadcast %342 : vector<16x1xf32> to vector<16x16xf32>
    %344 = arith.mulf %339, %343 : vector<16x16xf32>
    %cst_142 = arith.constant dense<0.000000e+00> : vector<16x32xf32>
    %345 = tpu.matmul %344, %315, %cst_142 {dimension_numbers = #tpu.dot_dimension_numbers<[1], [0], [0], [1], [0, 0, 1, 1], [], []>} : vector<16x16xf32>, vector<16x32xf32>, vector<16x32xf32> -> vector<16x32xf32>
    %c0_143 = arith.constant 0 : index
    %c0_144 = arith.constant 0 : index
    %c0_145 = arith.constant 0 : index
    %346 = vector.load %arg2[%c0_143, %c0_144, %c0_145] : memref<4x1x32xf32, #tpu.memory_space<vmem>>, vector<1x1x32xf32>
    %347 = vector.shape_cast %346 : vector<1x1x32xf32> to vector<1x32xf32>
    %348 = vector.broadcast %347 : vector<1x32xf32> to vector<16x32xf32>
    %349 = arith.mulf %345, %348 : vector<16x32xf32>
    %350 = arith.addf %323, %349 : vector<16x32xf32>
    %351 = vector.extract_strided_slice %321 {offsets = [0, 1], sizes = [16, 1], strides = [1, 1]} : vector<16x4xf32> to vector<16x1xf32>
    %352 = vector.extract_strided_slice %322 {offsets = [1, 0], sizes = [1, 16], strides = [1, 1]} : vector<4x16xf32> to vector<1x16xf32>
    %353 = vector.broadcast %351 : vector<16x1xf32> to vector<16x16xf32>
    %354 = vector.broadcast %352 : vector<1x16xf32> to vector<16x16xf32>
    %355 = arith.addf %353, %354 : vector<16x16xf32>
    %cst_146 = arith.constant 0.000000e+00 : f32
    %356 = vector.broadcast %cst_146 : f32 to vector<16x16xf32>
    %357 = arith.cmpf ogt, %355, %356 : vector<16x16xf32>
    %cst_147 = arith.constant 2.000000e-01 : f32
    %358 = vector.broadcast %cst_147 : f32 to vector<16x16xf32>
    %359 = arith.mulf %358, %355 : vector<16x16xf32>
    %360 = arith.select %357, %355, %359 : vector<16x16xi1>, vector<16x16xf32>
    %361 = arith.addf %360, %1 : vector<16x16xf32>
    %cst_148 = arith.constant dense<0xFF800000> : vector<16xf32>
    %362 = vector.multi_reduction <maximumf>, %361, %cst_148 [1] : vector<16x16xf32> to vector<16xf32>
    %363 = vector.shape_cast %362 : vector<16xf32> to vector<16x1xf32>
    %364 = vector.broadcast %363 : vector<16x1xf32> to vector<16x16xf32>
    %365 = arith.subf %361, %364 : vector<16x16xf32>
    %366 = math.exp %365 : vector<16x16xf32>
    %cst_149 = arith.constant dense<0.000000e+00> : vector<16xf32>
    %367 = vector.multi_reduction <add>, %366, %cst_149 [1] : vector<16x16xf32> to vector<16xf32>
    %368 = vector.shape_cast %367 : vector<16xf32> to vector<16x1xf32>
    %369 = tpu.reciprocal %368 {approx = true} : vector<16x1xf32> -> vector<16x1xf32>
    %370 = vector.broadcast %369 : vector<16x1xf32> to vector<16x16xf32>
    %371 = arith.mulf %366, %370 : vector<16x16xf32>
    %cst_150 = arith.constant dense<0.000000e+00> : vector<16x32xf32>
    %372 = tpu.matmul %371, %315, %cst_150 {dimension_numbers = #tpu.dot_dimension_numbers<[1], [0], [0], [1], [0, 0, 1, 1], [], []>} : vector<16x16xf32>, vector<16x32xf32>, vector<16x32xf32> -> vector<16x32xf32>
    %c1_151 = arith.constant 1 : index
    %c0_152 = arith.constant 0 : index
    %c0_153 = arith.constant 0 : index
    %373 = vector.load %arg2[%c1_151, %c0_152, %c0_153] : memref<4x1x32xf32, #tpu.memory_space<vmem>>, vector<1x1x32xf32>
    %374 = vector.shape_cast %373 : vector<1x1x32xf32> to vector<1x32xf32>
    %375 = vector.broadcast %374 : vector<1x32xf32> to vector<16x32xf32>
    %376 = arith.mulf %372, %375 : vector<16x32xf32>
    %377 = arith.addf %350, %376 : vector<16x32xf32>
    %378 = vector.extract_strided_slice %321 {offsets = [0, 2], sizes = [16, 1], strides = [1, 1]} : vector<16x4xf32> to vector<16x1xf32>
    %379 = vector.extract_strided_slice %322 {offsets = [2, 0], sizes = [1, 16], strides = [1, 1]} : vector<4x16xf32> to vector<1x16xf32>
    %380 = vector.broadcast %378 : vector<16x1xf32> to vector<16x16xf32>
    %381 = vector.broadcast %379 : vector<1x16xf32> to vector<16x16xf32>
    %382 = arith.addf %380, %381 : vector<16x16xf32>
    %cst_154 = arith.constant 0.000000e+00 : f32
    %383 = vector.broadcast %cst_154 : f32 to vector<16x16xf32>
    %384 = arith.cmpf ogt, %382, %383 : vector<16x16xf32>
    %cst_155 = arith.constant 2.000000e-01 : f32
    %385 = vector.broadcast %cst_155 : f32 to vector<16x16xf32>
    %386 = arith.mulf %385, %382 : vector<16x16xf32>
    %387 = arith.select %384, %382, %386 : vector<16x16xi1>, vector<16x16xf32>
    %388 = arith.addf %387, %1 : vector<16x16xf32>
    %cst_156 = arith.constant dense<0xFF800000> : vector<16xf32>
    %389 = vector.multi_reduction <maximumf>, %388, %cst_156 [1] : vector<16x16xf32> to vector<16xf32>
    %390 = vector.shape_cast %389 : vector<16xf32> to vector<16x1xf32>
    %391 = vector.broadcast %390 : vector<16x1xf32> to vector<16x16xf32>
    %392 = arith.subf %388, %391 : vector<16x16xf32>
    %393 = math.exp %392 : vector<16x16xf32>
    %cst_157 = arith.constant dense<0.000000e+00> : vector<16xf32>
    %394 = vector.multi_reduction <add>, %393, %cst_157 [1] : vector<16x16xf32> to vector<16xf32>
    %395 = vector.shape_cast %394 : vector<16xf32> to vector<16x1xf32>
    %396 = tpu.reciprocal %395 {approx = true} : vector<16x1xf32> -> vector<16x1xf32>
    %397 = vector.broadcast %396 : vector<16x1xf32> to vector<16x16xf32>
    %398 = arith.mulf %393, %397 : vector<16x16xf32>
    %cst_158 = arith.constant dense<0.000000e+00> : vector<16x32xf32>
    %399 = tpu.matmul %398, %315, %cst_158 {dimension_numbers = #tpu.dot_dimension_numbers<[1], [0], [0], [1], [0, 0, 1, 1], [], []>} : vector<16x16xf32>, vector<16x32xf32>, vector<16x32xf32> -> vector<16x32xf32>
    %c2_159 = arith.constant 2 : index
    %c0_160 = arith.constant 0 : index
    %c0_161 = arith.constant 0 : index
    %400 = vector.load %arg2[%c2_159, %c0_160, %c0_161] : memref<4x1x32xf32, #tpu.memory_space<vmem>>, vector<1x1x32xf32>
    %401 = vector.shape_cast %400 : vector<1x1x32xf32> to vector<1x32xf32>
    %402 = vector.broadcast %401 : vector<1x32xf32> to vector<16x32xf32>
    %403 = arith.mulf %399, %402 : vector<16x32xf32>
    %404 = arith.addf %377, %403 : vector<16x32xf32>
    %405 = vector.extract_strided_slice %321 {offsets = [0, 3], sizes = [16, 1], strides = [1, 1]} : vector<16x4xf32> to vector<16x1xf32>
    %406 = vector.extract_strided_slice %322 {offsets = [3, 0], sizes = [1, 16], strides = [1, 1]} : vector<4x16xf32> to vector<1x16xf32>
    %407 = vector.broadcast %405 : vector<16x1xf32> to vector<16x16xf32>
    %408 = vector.broadcast %406 : vector<1x16xf32> to vector<16x16xf32>
    %409 = arith.addf %407, %408 : vector<16x16xf32>
    %cst_162 = arith.constant 0.000000e+00 : f32
    %410 = vector.broadcast %cst_162 : f32 to vector<16x16xf32>
    %411 = arith.cmpf ogt, %409, %410 : vector<16x16xf32>
    %cst_163 = arith.constant 2.000000e-01 : f32
    %412 = vector.broadcast %cst_163 : f32 to vector<16x16xf32>
    %413 = arith.mulf %412, %409 : vector<16x16xf32>
    %414 = arith.select %411, %409, %413 : vector<16x16xi1>, vector<16x16xf32>
    %415 = arith.addf %414, %1 : vector<16x16xf32>
    %cst_164 = arith.constant dense<0xFF800000> : vector<16xf32>
    %416 = vector.multi_reduction <maximumf>, %415, %cst_164 [1] : vector<16x16xf32> to vector<16xf32>
    %417 = vector.shape_cast %416 : vector<16xf32> to vector<16x1xf32>
    %418 = vector.broadcast %417 : vector<16x1xf32> to vector<16x16xf32>
    %419 = arith.subf %415, %418 : vector<16x16xf32>
    %420 = math.exp %419 : vector<16x16xf32>
    %cst_165 = arith.constant dense<0.000000e+00> : vector<16xf32>
    %421 = vector.multi_reduction <add>, %420, %cst_165 [1] : vector<16x16xf32> to vector<16xf32>
    %422 = vector.shape_cast %421 : vector<16xf32> to vector<16x1xf32>
    %423 = tpu.reciprocal %422 {approx = true} : vector<16x1xf32> -> vector<16x1xf32>
    %424 = vector.broadcast %423 : vector<16x1xf32> to vector<16x16xf32>
    %425 = arith.mulf %420, %424 : vector<16x16xf32>
    %cst_166 = arith.constant dense<0.000000e+00> : vector<16x32xf32>
    %426 = tpu.matmul %425, %315, %cst_166 {dimension_numbers = #tpu.dot_dimension_numbers<[1], [0], [0], [1], [0, 0, 1, 1], [], []>} : vector<16x16xf32>, vector<16x32xf32>, vector<16x32xf32> -> vector<16x32xf32>
    %c3_167 = arith.constant 3 : index
    %c0_168 = arith.constant 0 : index
    %c0_169 = arith.constant 0 : index
    %427 = vector.load %arg2[%c3_167, %c0_168, %c0_169] : memref<4x1x32xf32, #tpu.memory_space<vmem>>, vector<1x1x32xf32>
    %428 = vector.shape_cast %427 : vector<1x1x32xf32> to vector<1x32xf32>
    %429 = vector.broadcast %428 : vector<1x32xf32> to vector<16x32xf32>
    %430 = arith.mulf %426, %429 : vector<16x32xf32>
    %431 = arith.addf %404, %430 : vector<16x32xf32>
    %c2_170 = arith.constant 2 : index
    %c0_171 = arith.constant 0 : index
    %c0_172 = arith.constant 0 : index
    %432 = vector.load %arg8[%c2_170, %c0_171, %c0_172] : memref<3x1x32xf32, #tpu.memory_space<vmem>>, vector<1x1x32xf32>
    %433 = vector.shape_cast %432 : vector<1x1x32xf32> to vector<1x32xf32>
    %434 = vector.broadcast %433 : vector<1x32xf32> to vector<16x32xf32>
    %435 = arith.addf %431, %434 : vector<16x32xf32>
    %436 = arith.addf %435, %312 : vector<16x32xf32>
    %cst_173 = arith.constant dense<0.000000e+00> : vector<16xf32>
    %437 = vector.multi_reduction <add>, %436, %cst_173 [1] : vector<16x32xf32> to vector<16xf32>
    %438 = vector.shape_cast %437 : vector<16xf32> to vector<16x1xf32>
    %cst_174 = arith.constant 3.200000e+01 : f32
    %439 = vector.broadcast %cst_174 : f32 to vector<16x1xf32>
    %440 = arith.divf %438, %439 : vector<16x1xf32>
    %441 = vector.broadcast %440 : vector<16x1xf32> to vector<16x32xf32>
    %442 = arith.subf %436, %441 : vector<16x32xf32>
    %443 = arith.mulf %442, %442 : vector<16x32xf32>
    %cst_175 = arith.constant dense<0.000000e+00> : vector<16xf32>
    %444 = vector.multi_reduction <add>, %443, %cst_175 [1] : vector<16x32xf32> to vector<16xf32>
    %445 = vector.shape_cast %444 : vector<16xf32> to vector<16x1xf32>
    %cst_176 = arith.constant 3.200000e+01 : f32
    %446 = vector.broadcast %cst_176 : f32 to vector<16x1xf32>
    %447 = arith.divf %445, %446 : vector<16x1xf32>
    %448 = vector.broadcast %440 : vector<16x1xf32> to vector<16x32xf32>
    %449 = arith.subf %436, %448 : vector<16x32xf32>
    %cst_177 = arith.constant 9.99999974E-6 : f32
    %450 = vector.broadcast %cst_177 : f32 to vector<16x1xf32>
    %451 = arith.addf %447, %450 : vector<16x1xf32>
    %452 = math.rsqrt %451 : vector<16x1xf32>
    %453 = vector.broadcast %452 : vector<16x1xf32> to vector<16x32xf32>
    %454 = arith.mulf %449, %453 : vector<16x32xf32>
    %c2_178 = arith.constant 2 : index
    %c0_179 = arith.constant 0 : index
    %c0_180 = arith.constant 0 : index
    %455 = vector.load %arg9[%c2_178, %c0_179, %c0_180] : memref<3x1x32xf32, #tpu.memory_space<vmem>>, vector<1x1x32xf32>
    %456 = vector.shape_cast %455 : vector<1x1x32xf32> to vector<1x32xf32>
    %457 = vector.broadcast %456 : vector<1x32xf32> to vector<16x32xf32>
    %458 = arith.mulf %454, %457 : vector<16x32xf32>
    %c2_181 = arith.constant 2 : index
    %c0_182 = arith.constant 0 : index
    %c0_183 = arith.constant 0 : index
    %459 = vector.load %arg10[%c2_181, %c0_182, %c0_183] : memref<3x1x32xf32, #tpu.memory_space<vmem>>, vector<1x1x32xf32>
    %460 = vector.shape_cast %459 : vector<1x1x32xf32> to vector<1x32xf32>
    %461 = vector.broadcast %460 : vector<1x32xf32> to vector<16x32xf32>
    %462 = arith.addf %458, %461 : vector<16x32xf32>
    %cst_184 = arith.constant 0.000000e+00 : f32
    %463 = vector.broadcast %cst_184 : f32 to vector<16x32xf32>
    %464 = arith.maximumf %462, %463 : vector<16x32xf32>
    %cst_185 = arith.constant 6.250000e-02 : f32
    %465 = vector.broadcast %cst_185 : f32 to vector<1x16xf32>
    %cst_186 = arith.constant dense<0.000000e+00> : vector<1x32xf32>
    %466 = tpu.matmul %465, %464, %cst_186 {dimension_numbers = #tpu.dot_dimension_numbers<[1], [0], [0], [1], [0, 0, 1, 1], [], []>} : vector<1x16xf32>, vector<16x32xf32>, vector<1x32xf32> -> vector<1x32xf32>
    %c0_187 = arith.constant 0 : index
    %c0_188 = arith.constant 0 : index
    %467 = vector.load %arg11[%c0_187, %c0_188] : memref<32x2xf32, #tpu.memory_space<vmem>>, vector<32x2xf32>
    %cst_189 = arith.constant dense<0.000000e+00> : vector<1x2xf32>
    %468 = tpu.matmul %466, %467, %cst_189 {dimension_numbers = #tpu.dot_dimension_numbers<[1], [0], [0], [1], [0, 0, 1, 1], [], []>} : vector<1x32xf32>, vector<32x2xf32>, vector<1x2xf32> -> vector<1x2xf32>
    %c0_190 = arith.constant 0 : index
    %c0_191 = arith.constant 0 : index
    %469 = vector.load %arg12[%c0_190, %c0_191] : memref<1x2xf32, #tpu.memory_space<vmem>>, vector<1x2xf32>
    %470 = arith.addf %468, %469 : vector<1x2xf32>
    %c0_192 = arith.constant 0 : index
    %c0_193 = arith.constant 0 : index
    %471 = vector.load %arg13[%c0_192, %c0_193] : memref<1x2xf32, #tpu.memory_space<vmem>>, vector<1x2xf32>
    tpu.vector_store %arg13[%c0_192, %c0_193], %470 {strides = array<i32>} : memref<1x2xf32, #tpu.memory_space<vmem>>, vector<1x2xf32>,
    return
  }
}

</mosaic_0001>

<llo_original>
// kernel: tpu_custom_call.1
$region0: #{tpu_custom_call.1}
  #allocation0 [shape = 'u32[]', space=smem, size = 0x4, offset = 0x4, fixed_abs, tag = 'smem constant byte address 0x4 - core index']
  #allocation1 [shape = 'u32[144,128]{1,0:T(1,128)}', space=vmem, size = 0x12000, scoped, tag = 'internal scratch']
  %s0 = inlined_call_operand.vmem [shape: f32[16,16], index: 0, kind: input, shape index: {}]
  %s1 = inlined_call_operand.vmem [shape: f32[16,16], index: 1, kind: input, shape index: {}]
  %s2 = inlined_call_operand.vmem [shape: f32[4,1,32], index: 2, kind: input, shape index: {}]
  %s3 = inlined_call_operand.vmem [shape: f32[16,32], index: 3, kind: input, shape index: {}]
  %s4 = inlined_call_operand.vmem [shape: f32[1,32], index: 4, kind: input, shape index: {}]
  %s5 = inlined_call_operand.vmem [shape: f32[3,32,32], index: 5, kind: input, shape index: {}]
  %s6 = inlined_call_operand.vmem [shape: f32[3,32,4], index: 6, kind: input, shape index: {}]
  %s7 = inlined_call_operand.vmem [shape: f32[3,32,4], index: 7, kind: input, shape index: {}]
  %s8 = inlined_call_operand.vmem [shape: f32[3,1,32], index: 8, kind: input, shape index: {}]
  %s9 = inlined_call_operand.vmem [shape: f32[3,1,32], index: 9, kind: input, shape index: {}]
  %s10 = inlined_call_operand.vmem [shape: f32[3,1,32], index: 10, kind: input, shape index: {}]
  %s11 = inlined_call_operand.vmem [shape: f32[32,2], index: 11, kind: input, shape index: {}]
  %s12 = inlined_call_operand.vmem [shape: f32[1,2], index: 12, kind: input, shape index: {}]
  %s13 = inlined_call_operand.hbm [shape: f32[1,2], index: 13, kind: output, shape index: {}]
  %s14 = sld [smem:[#allocation0]]
  $region62: #{tpu_custom_call.1} parent=0
    _
  %s16 = ssub.s32 1, %s14
  %s17 = scalar_select 0, %s16, %s14
  $region1: #{tpu_custom_call.1} parent=0
    #allocation2 [shape = 'u8[512]{0}', space=vmem, size = 0x400, scoped, tag = 'output window, operand 0, single buffered']
    #allocation3 [shape = 's32[1]{0}', space=sflag, size = 0x4, scoped, tag = 'scoped memory for tpu_custom_call.1']
    %18 = vsyncpa [#allocation3], 0
    // Predicated region
    $region2: #{tpu_custom_call.1} parent=1 // pred_check
      _
    $region3: #{tpu_custom_call.1} parent=1 // pred_check_branch
      %20 = sbr.rel (0) target = $region5
    $region4: #{tpu_custom_call.1} parent=1 // pred_region
      _
    $region5: #{tpu_custom_call.1} parent=1 // pred_fallthru
      _
    // Predicated region
    $region6: #{tpu_custom_call.1} parent=1 // pred_check
      _
    $region7: #{tpu_custom_call.1} parent=1 // pred_check_branch
      %22 = sbr.rel (0) target = $region9
    $region8: #{tpu_custom_call.1} parent=1 // pred_region
      _
    $region9: #{tpu_custom_call.1} parent=1 // pred_fallthru
      _
    // Predicated region
    $region10: #{tpu_custom_call.1} parent=1 // pred_check
      _
    $region11: #{tpu_custom_call.1} parent=1 // pred_check_branch
      %24 = sbr.rel (0) target = $region13
    $region12: #{tpu_custom_call.1} parent=1 // pred_region
      _
    $region13: #{tpu_custom_call.1} parent=1 // pred_fallthru
      _
    // Predicated region
    $region14: #{tpu_custom_call.1} parent=1 // pred_check
      _
    $region15: #{tpu_custom_call.1} parent=1 // pred_check_branch
      %26 = sbr.rel (0) target = $region17
    $region16: #{tpu_custom_call.1} parent=1 // pred_region
      _
    $region17: #{tpu_custom_call.1} parent=1 // pred_fallthru
      _
    // Predicated region
    $region18: #{tpu_custom_call.1} parent=1 // pred_check
      _
    $region19: #{tpu_custom_call.1} parent=1 // pred_check_branch
      %28 = sbr.rel (0) target = $region21
    $region20: #{tpu_custom_call.1} parent=1 // pred_region
      _
    $region21: #{tpu_custom_call.1} parent=1 // pred_fallthru
      _
    // Predicated region
    $region22: #{tpu_custom_call.1} parent=1 // pred_check
      _
    $region23: #{tpu_custom_call.1} parent=1 // pred_check_branch
      %30 = sbr.rel (0) target = $region25
    $region24: #{tpu_custom_call.1} parent=1 // pred_region
      _
    $region25: #{tpu_custom_call.1} parent=1 // pred_fallthru
      _
    // Predicated region
    $region26: #{tpu_custom_call.1} parent=1 // pred_check
      _
    $region27: #{tpu_custom_call.1} parent=1 // pred_check_branch
      %32 = sbr.rel (0) target = $region29
    $region28: #{tpu_custom_call.1} parent=1 // pred_region
      _
    $region29: #{tpu_custom_call.1} parent=1 // pred_fallthru
      _
    // Predicated region
    $region30: #{tpu_custom_call.1} parent=1 // pred_check
      _
    $region31: #{tpu_custom_call.1} parent=1 // pred_check_branch
      %34 = sbr.rel (0) target = $region33
    $region32: #{tpu_custom_call.1} parent=1 // pred_region
      _
    $region33: #{tpu_custom_call.1} parent=1 // pred_fallthru
      _
    // Predicated region
    $region34: #{tpu_custom_call.1} parent=1 // pred_check
      _
    $region35: #{tpu_custom_call.1} parent=1 // pred_check_branch
      %36 = sbr.rel (0) target = $region37
    $region36: #{tpu_custom_call.1} parent=1 // pred_region
      _
    $region37: #{tpu_custom_call.1} parent=1 // pred_fallthru
      _
    // Predicated region
    $region38: #{tpu_custom_call.1} parent=1 // pred_check
      _
    $region39: #{tpu_custom_call.1} parent=1 // pred_check_branch
      %38 = sbr.rel (0) target = $region41
    $region40: #{tpu_custom_call.1} parent=1 // pred_region
      _
    $region41: #{tpu_custom_call.1} parent=1 // pred_fallthru
      _
    // Predicated region
    $region42: #{tpu_custom_call.1} parent=1 // pred_check
      _
    $region43: #{tpu_custom_call.1} parent=1 // pred_check_branch
      %40 = sbr.rel (0) target = $region45
    $region44: #{tpu_custom_call.1} parent=1 // pred_region
      _
    $region45: #{tpu_custom_call.1} parent=1 // pred_fallthru
      _
    // Predicated region
    $region46: #{tpu_custom_call.1} parent=1 // pred_check
      _
    $region47: #{tpu_custom_call.1} parent=1 // pred_check_branch
      %42 = sbr.rel (0) target = $region49
    $region48: #{tpu_custom_call.1} parent=1 // pred_region
      _
    $region49: #{tpu_custom_call.1} parent=1 // pred_fallthru
      _
    // Predicated region
    $region50: #{tpu_custom_call.1} parent=1 // pred_check
      _
    $region51: #{tpu_custom_call.1} parent=1 // pred_check_branch
      %44 = sbr.rel (0) target = $region53
    $region52: #{tpu_custom_call.1} parent=1 // pred_region
      _
    $region53: #{tpu_custom_call.1} parent=1 // pred_fallthru
      _
    %v45 = vld [vmem:[%s0] sm:$0xff]
    %v46 = vld [vmem:[%s0 + $0x8] sm:$0xff]
    %v47 = vld [vmem:[%s1] sm:$0xff]
    %v48 = vld [vmem:[%s1 + $0x8] sm:$0xff]
    %v49 = vld [vmem:[%s3] sm:$0xff]
    %v50 = vld [vmem:[%s3 + $0x8] sm:$0xff]
    %v51 = vld [vmem:[%s4] sm:$0x1]
    %v53 = vlaneseq
    %v54 = vshrl.u32 %v53, 7
    %v55 = vsub.s32 0, %v54
    %v56 = vrot.slane %v51, %v55
    %vm58 = vcmask 130048
    %v60 = vsel %vm58, %v45, 0
    %v63 = vsel %vm58, %v46, 0
    %65 = vmatprep.subr.mxu0 0.0
    %66 = vmatpush1.msra.mxu0 %v49
    %67 = vmatprep.subr.mxu0 0.0
    %68 = vmatpush1.msra.mxu0 %v50
    %69 = vmatprep.subr.mxu0 0.0
    %70 = vmatpush1.msra.mxu0 0.0
    %71 = vmatprep.subr.mxu0 0.0
    %72 = vmatpush1.msra.mxu0 0.0
    %73 = vmatprep.subr.mxu0 0.0
    %74 = vmatpush1.msra.mxu0 0.0
    %75 = vmatprep.subr.mxu0 0.0
    %76 = vmatpush1.msra.mxu0 0.0
    %77 = vmatprep.subr.mxu0 0.0
    %78 = vmatpush1.msra.mxu0 0.0
    %79 = vmatprep.subr.mxu0 0.0
    %80 = vmatpush1.msra.mxu0 0.0
    %81 = vmatprep.subr.mxu0 0.0
    %82 = vmatpush1.msra.mxu0 0.0
    %83 = vmatprep.subr.mxu0 0.0
    %84 = vmatpush1.msra.mxu0 0.0
    %85 = vmatprep.subr.mxu0 0.0
    %86 = vmatpush1.msra.mxu0 0.0
    %87 = vmatprep.subr.mxu0 0.0
    %88 = vmatpush1.msra.mxu0 0.0
    %89 = vmatprep.subr.mxu0 0.0
    %90 = vmatpush1.msra.mxu0 0.0
    %91 = vmatprep.subr.mxu0 0.0
    %92 = vmatpush1.msra.mxu0 0.0
    %93 = vmatprep.subr.mxu0 0.0
    %94 = vmatpush1.msra.mxu0 0.0
    %95 = vmatprep.subr.mxu0 0.0
    %96 = vmatpush1.msra.mxu0 0.0
    %97 = vmatprep.subr.mxu0 0.0
    %98 = vmatpush1.msra.mxu0 0.0
    %99 = vmatprep.subr.mxu0 0.0
    %100 = vmatpush1.msra.mxu0 0.0
    %101 = vmatprep.subr.mxu0 0.0
    %102 = vmatpush1.msra.mxu0 0.0
    %103 = vmatprep.subr.mxu0 0.0
    %104 = vmatpush1.msra.mxu0 0.0
    %105 = vmatprep.subr.mxu0 0.0
    %106 = vmatpush1.msra.mxu0 0.0
    %107 = vmatprep.subr.mxu0 0.0
    %108 = vmatpush1.msra.mxu0 0.0
    %109 = vmatprep.subr.mxu0 0.0
    %110 = vmatpush1.msra.mxu0 0.0
    %111 = vmatprep.subr.mxu0 0.0
    %112 = vmatpush1.msra.mxu0 0.0
    %113 = vmatprep.subr.mxu0 0.0
    %114 = vmatpush1.msra.mxu0 0.0
    %115 = vmatprep.subr.mxu0 0.0
    %116 = vmatpush1.msra.mxu0 0.0
    %117 = vmatprep.subr.mxu0 0.0
    %118 = vmatpush1.msra.mxu0 0.0
    %119 = vmatprep.subr.mxu0 0.0
    %120 = vmatpush1.msra.mxu0 0.0
    %121 = vmatprep.subr.mxu0 0.0
    %122 = vmatpush1.msra.mxu0 0.0
    %123 = vmatprep.subr.mxu0 0.0
    %124 = vmatpush1.msra.mxu0 0.0
    %125 = vmatprep.subr.mxu0 0.0
    %126 = vmatpush1.msra.mxu0 0.0
    %127 = vmatprep.subr.mxu0 0.0
    %128 = vmatpush1.msra.mxu0 0.0
    %129 = vmatprep.mubr.f32.mxu0 0.0
    %130 = vmatmul.mubr.f32.gmra.mrb[0].mxu0 %v60
    %v131 = vpop.f32.mrb[0].mxu0
    %v132 = vadd.f32 %v56, %v131
    %v133 = vpop.f32.mrb[0].mxu0
    %134 = vmatprep.mubr.f32.mxu0 0.0
    %135 = vmatmul.mubr.f32.gmra.mrb[0].mxu0 %v63
    %v136 = vpop.f32.mrb[0].mxu0
    %v137 = vadd.f32 %v56, %v136
    %v138 = vpop.f32.mrb[0].mxu0
    %139 = vdwg.mxu0
    %v140 = vmax.f32 %v132, 0.0
    %v141 = vmax.f32 %v137, 0.0
    %v142 = vld [vmem:[%s5] sm:$0xff]
    %v143 = vld [vmem:[%s5 + $0x8] sm:$0xff]
    %v144 = vld [vmem:[%s5 + $0x10] sm:$0xff]
    %v145 = vld [vmem:[%s5 + $0x18] sm:$0xff]
    %vm146 = vcmask 261120
    %v148 = vsel %vm146, %v140, 0
    %v151 = vsel %vm146, %v141, 0
    %153 = vmatprep.subr.mxu0 0.0
    %154 = vmatpush1.msra.mxu0 %v142
    %155 = vmatprep.subr.mxu0 0.0
    %156 = vmatpush1.msra.mxu0 %v143
    %157 = vmatprep.subr.mxu0 0.0
    %158 = vmatpush1.msra.mxu0 %v144
    %159 = vmatprep.subr.mxu0 0.0
    %160 = vmatpush1.msra.mxu0 %v145
    %161 = vmatprep.subr.mxu0 0.0
    %162 = vmatpush1.msra.mxu0 0.0
    %163 = vmatprep.subr.mxu0 0.0
    %164 = vmatpush1.msra.mxu0 0.0
    %165 = vmatprep.subr.mxu0 0.0
    %166 = vmatpush1.msra.mxu0 0.0
    %167 = vmatprep.subr.mxu0 0.0
    %168 = vmatpush1.msra.mxu0 0.0
    %169 = vmatprep.subr.mxu0 0.0
    %170 = vmatpush1.msra.mxu0 0.0
    %171 = vmatprep.subr.mxu0 0.0
    %172 = vmatpush1.msra.mxu0 0.0
    %173 = vmatprep.subr.mxu0 0.0
    %174 = vmatpush1.msra.mxu0 0.0
    %175 = vmatprep.subr.mxu0 0.0
    %176 = vmatpush1.msra.mxu0 0.0
    %177 = vmatprep.subr.mxu0 0.0
    %178 = vmatpush1.msra.mxu0 0.0
    %179 = vmatprep.subr.mxu0 0.0
    %180 = vmatpush1.msra.mxu0 0.0
    %181 = vmatprep.subr.mxu0 0.0
    %182 = vmatpush1.msra.mxu0 0.0
    %183 = vmatprep.subr.mxu0 0.0
    %184 = vmatpush1.msra.mxu0 0.0
    %185 = vmatprep.subr.mxu0 0.0
    %186 = vmatpush1.msra.mxu0 0.0
    %187 = vmatprep.subr.mxu0 0.0
    %188 = vmatpush1.msra.mxu0 0.0
    %189 = vmatprep.subr.mxu0 0.0
    %190 = vmatpush1.msra.mxu0 0.0
    %191 = vmatprep.subr.mxu0 0.0
    %192 = vmatpush1.msra.mxu0 0.0
    %193 = vmatprep.subr.mxu0 0.0
    %194 = vmatpush1.msra.mxu0 0.0
    %195 = vmatprep.subr.mxu0 0.0
    %196 = vmatpush1.msra.mxu0 0.0
    %197 = vmatprep.subr.mxu0 0.0
    %198 = vmatpush1.msra.mxu0 0.0
    %199 = vmatprep.subr.mxu0 0.0
    %200 = vmatpush1.msra.mxu0 0.0
    %201 = vmatprep.subr.mxu0 0.0
    %202 = vmatpush1.msra.mxu0 0.0
    %203 = vmatprep.subr.mxu0 0.0
    %204 = vmatpush1.msra.mxu0 0.0
    %205 = vmatprep.subr.mxu0 0.0
    %206 = vmatpush1.msra.mxu0 0.0
    %207 = vmatprep.subr.mxu0 0.0
    %208 = vmatpush1.msra.mxu0 0.0
    %209 = vmatprep.subr.mxu0 0.0
    %210 = vmatpush1.msra.mxu0 0.0
    %211 = vmatprep.subr.mxu0 0.0
    %212 = vmatpush1.msra.mxu0 0.0
    %213 = vmatprep.subr.mxu0 0.0
    %214 = vmatpush1.msra.mxu0 0.0
    %215 = vmatprep.subr.mxu0 0.0
    %216 = vmatpush1.msra.mxu0 0.0
    %217 = vmatprep.mubr.f32.mxu0 0.0
    %218 = vmatmul.mubr.f32.gmra.mrb[0].mxu0 %v148
    %v219 = vpop.f32.mrb[0].mxu0
    %v220 = vadd.f32 0.0, %v219
    %v221 = vpop.f32.mrb[0].mxu0
    %222 = vmatprep.mubr.f32.mxu0 0.0
    %223 = vmatmul.mubr.f32.gmra.mrb[0].mxu0 %v151
    %v224 = vpop.f32.mrb[0].mxu0
    %v225 = vadd.f32 0.0, %v224
    %v226 = vpop.f32.mrb[0].mxu0
    %227 = vdwg.mxu0
    %v228 = vld [vmem:[%s6] sm:$0xff]
    %v229 = vld [vmem:[%s6 + $0x8] sm:$0xff]
    %v230 = vld [vmem:[%s6 + $0x10] sm:$0xff]
    %v231 = vld [vmem:[%s6 + $0x18] sm:$0xff]
    %v233 = vsel %vm146, %v220, 0
    %v236 = vsel %vm146, %v225, 0
    %238 = vmatprep.subr.mxu0 0.0
    %239 = vmatpush1.msra.mxu0 %v228
    %240 = vmatprep.subr.mxu0 0.0
    %241 = vmatpush1.msra.mxu0 %v229
    %242 = vmatprep.subr.mxu0 0.0
    %243 = vmatpush1.msra.mxu0 %v230
    %244 = vmatprep.subr.mxu0 0.0
    %245 = vmatpush1.msra.mxu0 %v231
    %246 = vmatprep.subr.mxu0 0.0
    %247 = vmatpush1.msra.mxu0 0.0
    %248 = vmatprep.subr.mxu0 0.0
    %249 = vmatpush1.msra.mxu0 0.0
    %250 = vmatprep.subr.mxu0 0.0
    %251 = vmatpush1.msra.mxu0 0.0
    %252 = vmatprep.subr.mxu0 0.0
    %253 = vmatpush1.msra.mxu0 0.0
    %254 = vmatprep.subr.mxu0 0.0
    %255 = vmatpush1.msra.mxu0 0.0
    %256 = vmatprep.subr.mxu0 0.0
    %257 = vmatpush1.msra.mxu0 0.0
    %258 = vmatprep.subr.mxu0 0.0
    %259 = vmatpush1.msra.mxu0 0.0
    %260 = vmatprep.subr.mxu0 0.0
    %261 = vmatpush1.msra.mxu0 0.0
    %262 = vmatprep.subr.mxu0 0.0
    %263 = vmatpush1.msra.mxu0 0.0
    %264 = vmatprep.subr.mxu0 0.0
    %265 = vmatpush1.msra.mxu0 0.0
    %266 = vmatprep.subr.mxu0 0.0
    %267 = vmatpush1.msra.mxu0 0.0
    %268 = vmatprep.subr.mxu0 0.0
    %269 = vmatpush1.msra.mxu0 0.0
    %270 = vmatprep.subr.mxu0 0.0
    %271 = vmatpush1.msra.mxu0 0.0
    %272 = vmatprep.subr.mxu0 0.0
    %273 = vmatpush1.msra.mxu0 0.0
    %274 = vmatprep.subr.mxu0 0.0
    %275 = vmatpush1.msra.mxu0 0.0
    %276 = vmatprep.subr.mxu0 0.0
    %277 = vmatpush1.msra.mxu0 0.0
    %278 = vmatprep.subr.mxu0 0.0
    %279 = vmatpush1.msra.mxu0 0.0
    %280 = vmatprep.subr.mxu0 0.0
    %281 = vmatpush1.msra.mxu0 0.0
    %282 = vmatprep.subr.mxu0 0.0
    %283 = vmatpush1.msra.mxu0 0.0
    %284 = vmatprep.subr.mxu0 0.0
    %285 = vmatpush1.msra.mxu0 0.0
    %286 = vmatprep.subr.mxu0 0.0
    %287 = vmatpush1.msra.mxu0 0.0
    %288 = vmatprep.subr.mxu0 0.0
    %289 = vmatpush1.msra.mxu0 0.0
    %290 = vmatprep.subr.mxu0 0.0
    %291 = vmatpush1.msra.mxu0 0.0
    %292 = vmatprep.subr.mxu0 0.0
    %293 = vmatpush1.msra.mxu0 0.0
    %294 = vmatprep.subr.mxu0 0.0
    %295 = vmatpush1.msra.mxu0 0.0
    %296 = vmatprep.subr.mxu0 0.0
    %297 = vmatpush1.msra.mxu0 0.0
    %298 = vmatprep.subr.mxu0 0.0
    %299 = vmatpush1.msra.mxu0 0.0
    %300 = vmatprep.subr.mxu0 0.0
    %301 = vmatpush1.msra.mxu0 0.0
    %302 = vmatprep.mubr.f32.mxu0 0.0
    %303 = vmatmul.mubr.f32.gmra.mrb[0].mxu0 %v233
    %v304 = vpop.f32.mrb[0].mxu0
    %v305 = vadd.f32 0.0, %v304
    %v306 = vpop.f32.mrb[0].mxu0
    %307 = vmatprep.mubr.f32.mxu0 0.0
    %308 = vmatmul.mubr.f32.gmra.mrb[0].mxu0 %v236
    %v309 = vpop.f32.mrb[0].mxu0
    %v310 = vadd.f32 0.0, %v309
    %v311 = vpop.f32.mrb[0].mxu0
    %312 = vdwg.mxu0
    %v313 = vld [vmem:[%s7] sm:$0xff]
    %v314 = vld [vmem:[%s7 + $0x8] sm:$0xff]
    %v315 = vld [vmem:[%s7 + $0x10] sm:$0xff]
    %v316 = vld [vmem:[%s7 + $0x18] sm:$0xff]
    %317 = vmatprep.subr.mxu0 0.0
    %318 = vmatpush1.msra.mxu0 %v313
    %319 = vmatprep.subr.mxu0 0.0
    %320 = vmatpush1.msra.mxu0 %v314
    %321 = vmatprep.subr.mxu0 0.0
    %322 = vmatpush1.msra.mxu0 %v315
    %323 = vmatprep.subr.mxu0 0.0
    %324 = vmatpush1.msra.mxu0 %v316
    %325 = vmatprep.subr.mxu0 0.0
    %326 = vmatpush1.msra.mxu0 0.0
    %327 = vmatprep.subr.mxu0 0.0
    %328 = vmatpush1.msra.mxu0 0.0
    %329 = vmatprep.subr.mxu0 0.0
    %330 = vmatpush1.msra.mxu0 0.0
    %331 = vmatprep.subr.mxu0 0.0
    %332 = vmatpush1.msra.mxu0 0.0
    %333 = vmatprep.subr.mxu0 0.0
    %334 = vmatpush1.msra.mxu0 0.0
    %335 = vmatprep.subr.mxu0 0.0
    %336 = vmatpush1.msra.mxu0 0.0
    %337 = vmatprep.subr.mxu0 0.0
    %338 = vmatpush1.msra.mxu0 0.0
    %339 = vmatprep.subr.mxu0 0.0
    %340 = vmatpush1.msra.mxu0 0.0
    %341 = vmatprep.subr.mxu0 0.0
    %342 = vmatpush1.msra.mxu0 0.0
    %343 = vmatprep.subr.mxu0 0.0
    %344 = vmatpush1.msra.mxu0 0.0
    %345 = vmatprep.subr.mxu0 0.0
    %346 = vmatpush1.msra.mxu0 0.0
    %347 = vmatprep.subr.mxu0 0.0
    %348 = vmatpush1.msra.mxu0 0.0
    %349 = vmatprep.subr.mxu0 0.0
    %350 = vmatpush1.msra.mxu0 0.0
    %351 = vmatprep.subr.mxu0 0.0
    %352 = vmatpush1.msra.mxu0 0.0
    %353 = vmatprep.subr.mxu0 0.0
    %354 = vmatpush1.msra.mxu0 0.0
    %355 = vmatprep.subr.mxu0 0.0
    %356 = vmatpush1.msra.mxu0 0.0
    %357 = vmatprep.subr.mxu0 0.0
    %358 = vmatpush1.msra.mxu0 0.0
    %359 = vmatprep.subr.mxu0 0.0
    %360 = vmatpush1.msra.mxu0 0.0
    %361 = vmatprep.subr.mxu0 0.0
    %362 = vmatpush1.msra.mxu0 0.0
    %363 = vmatprep.subr.mxu0 0.0
    %364 = vmatpush1.msra.mxu0 0.0
    %365 = vmatprep.subr.mxu0 0.0
    %366 = vmatpush1.msra.mxu0 0.0
    %367 = vmatprep.subr.mxu0 0.0
    %368 = vmatpush1.msra.mxu0 0.0
    %369 = vmatprep.subr.mxu0 0.0
    %370 = vmatpush1.msra.mxu0 0.0
    %371 = vmatprep.subr.mxu0 0.0
    %372 = vmatpush1.msra.mxu0 0.0
    %373 = vmatprep.subr.mxu0 0.0
    %374 = vmatpush1.msra.mxu0 0.0
    %375 = vmatprep.subr.mxu0 0.0
    %376 = vmatpush1.msra.mxu0 0.0
    %377 = vmatprep.subr.mxu0 0.0
    %378 = vmatpush1.msra.mxu0 0.0
    %379 = vmatprep.subr.mxu0 0.0
    %380 = vmatpush1.msra.mxu0 0.0
    %381 = vmatprep.mubr.f32.mxu0 0.0
    %382 = vmatmul.mubr.f32.gmra.mrb[0].mxu0 %v233
    %v383 = vpop.f32.mrb[0].mxu0
    %v384 = vadd.f32 0.0, %v383
    %v385 = vpop.f32.mrb[0].mxu0
    %386 = vmatprep.mubr.f32.mxu0 0.0
    %387 = vmatmul.mubr.f32.gmra.mrb[0].mxu0 %v236
    %v388 = vpop.f32.mrb[0].mxu0
    %v389 = vadd.f32 0.0, %v388
    %v390 = vpop.f32.mrb[0].mxu0
    %391 = vdwg.mxu0
    %392 = vxpose.xlu0.b32.start [1/16] %v305, 128
    %393 = vxpose.xlu0.b32.cont [2/16] %v310, 128
    %394 = vxpose.xlu0.b32.cont [3/16] 0.0, 128
    %395 = vxpose.xlu0.b32.cont [4/16] 0.0, 128
    %396 = vxpose.xlu0.b32.cont [5/16] 0.0, 128
    %397 = vxpose.xlu0.b32.cont [6/16] 0.0, 128
    %398 = vxpose.xlu0.b32.cont [7/16] 0.0, 128
    %399 = vxpose.xlu0.b32.cont [8/16] 0.0, 128
    %400 = vxpose.xlu0.b32.cont [9/16] 0.0, 128
    %401 = vxpose.xlu0.b32.cont [10/16] 0.0, 128
    %402 = vxpose.xlu0.b32.cont [11/16] 0.0, 128
    %403 = vxpose.xlu0.b32.cont [12/16] 0.0, 128
    %404 = vxpose.xlu0.b32.cont [13/16] 0.0, 128
    %405 = vxpose.xlu0.b32.cont [14/16] 0.0, 128
    %406 = vxpose.xlu0.b32.cont [15/16] 0.0, 128
    %407 = vxpose.xlu0.b32.end [16/16] 0.0, 128
    %v408 = vpop.trf.xlu0
    %v409 = vpop.trf.xlu0
    %v410 = vpop.trf.xlu0
    %v411 = vpop.trf.xlu0
    %v412 = vpop.trf.xlu0
    %v413 = vpop.trf.xlu0
    %v414 = vpop.trf.xlu0
    %v415 = vpop.trf.xlu0
    %v416 = vpop.trf.xlu0
    %v417 = vpop.trf.xlu0
    %v418 = vpop.trf.xlu0
    %v419 = vpop.trf.xlu0
    %v420 = vpop.trf.xlu0
    %v421 = vpop.trf.xlu0
    %v422 = vpop.trf.xlu0
    %v423 = vpop.trf.xlu0
    %425 = vset.pattern.permute.xlu0 0
    %426 = vperm.xlu0 %425, %v384
    %v427 = vpop.permute.xlu0 %426
    %430 = vset.pattern.permute.xlu0 0
    %431 = vperm.xlu0 %430, %v389
    %v432 = vpop.permute.xlu0 %431
    %v434 = vlaneseq
    %v435 = vshrl.u32 %v434, 7
    %v436 = vsub.s32 0, %v435
    %v437 = vrot.slane %v408, %v436
    %v438 = vadd.f32 %v427, %v437
    %v439 = vadd.f32 %v432, %v437
    %vm440 = vcmp.gt.f32.partialorder %v438, 0.0
    %vm441 = vcmp.gt.f32.partialorder %v439, 0.0
    %v442 = vmul.f32 %v438, 0.2
    %v443 = vmul.f32 %v439, 0.2
    %v444 = vsel %vm440, %v438, %v442
    %v445 = vsel %vm441, %v439, %v443
    %v446 = vadd.f32 %v444, %v47
    %v447 = vadd.f32 %v445, %v48
    %v448 = vsel %vm58, %v446, -inf
    %449 = vmax.xlane.f32.xlu0 %v448
    %v450 = vpop.xlane.xlu0 %449
    %v451 = vsel %vm58, %v447, -inf
    %452 = vmax.xlane.f32.xlu0 %v451
    %v453 = vpop.xlane.xlu0 %452
    %v454 = vsub.f32 %v446, %v450
    %v455 = vsub.f32 %v447, %v453
    %v456 = vmul.f32 %v454, 1.442695
    %v457 = vpow.pop %v456
    %v458 = vmul.f32 %v455, 1.442695
    %v459 = vpow.pop %v458
    %v460 = vsel %vm58, %v457, 0.0
    %461 = vadd.xlane.f32.xlu0 %v460
    %v462 = vpop.xlane.xlu0 %461
    %v463 = vsel %vm58, %v459, 0.0
    %464 = vadd.xlane.f32.xlu0 %v463
    %v465 = vpop.xlane.xlu0 %464
    %v466 = vrcp.pop %v462
    %v467 = vrcp.pop %v465
    %v468 = vmul.f32 %v457, %v466
    %v469 = vmul.f32 %v459, %v467
    %v471 = vsel %vm58, %v468, 0
    %v474 = vsel %vm58, %v469, 0
    %476 = vmatprep.subr.mxu0 0.0
    %477 = vmatpush1.msra.mxu0 %v220
    %478 = vmatprep.subr.mxu0 0.0
    %479 = vmatpush1.msra.mxu0 %v225
    %480 = vmatprep.subr.mxu0 0.0
    %481 = vmatpush1.msra.mxu0 0.0
    %482 = vmatprep.subr.mxu0 0.0
    %483 = vmatpush1.msra.mxu0 0.0
    %484 = vmatprep.subr.mxu0 0.0
    %485 = vmatpush1.msra.mxu0 0.0
    %486 = vmatprep.subr.mxu0 0.0
    %487 = vmatpush1.msra.mxu0 0.0
    %488 = vmatprep.subr.mxu0 0.0
    %489 = vmatpush1.msra.mxu0 0.0
    %490 = vmatprep.subr.mxu0 0.0
    %491 = vmatpush1.msra.mxu0 0.0
    %492 = vmatprep.subr.mxu0 0.0
    %493 = vmatpush1.msra.mxu0 0.0
    %494 = vmatprep.subr.mxu0 0.0
    %495 = vmatpush1.msra.mxu0 0.0
    %496 = vmatprep.subr.mxu0 0.0
    %497 = vmatpush1.msra.mxu0 0.0
    %498 = vmatprep.subr.mxu0 0.0
    %499 = vmatpush1.msra.mxu0 0.0
    %500 = vmatprep.subr.mxu0 0.0
    %501 = vmatpush1.msra.mxu0 0.0
    %502 = vmatprep.subr.mxu0 0.0
    %503 = vmatpush1.msra.mxu0 0.0
    %504 = vmatprep.subr.mxu0 0.0
    %505 = vmatpush1.msra.mxu0 0.0
    %506 = vmatprep.subr.mxu0 0.0
    %507 = vmatpush1.msra.mxu0 0.0
    %508 = vmatprep.subr.mxu0 0.0
    %509 = vmatpush1.msra.mxu0 0.0
    %510 = vmatprep.subr.mxu0 0.0
    %511 = vmatpush1.msra.mxu0 0.0
    %512 = vmatprep.subr.mxu0 0.0
    %513 = vmatpush1.msra.mxu0 0.0
    %514 = vmatprep.subr.mxu0 0.0
    %515 = vmatpush1.msra.mxu0 0.0
    %516 = vmatprep.subr.mxu0 0.0
    %517 = vmatpush1.msra.mxu0 0.0
    %518 = vmatprep.subr.mxu0 0.0
    %519 = vmatpush1.msra.mxu0 0.0
    %520 = vmatprep.subr.mxu0 0.0
    %521 = vmatpush1.msra.mxu0 0.0
    %522 = vmatprep.subr.mxu0 0.0
    %523 = vmatpush1.msra.mxu0 0.0
    %524 = vmatprep.subr.mxu0 0.0
    %525 = vmatpush1.msra.mxu0 0.0
    %526 = vmatprep.subr.mxu0 0.0
    %527 = vmatpush1.msra.mxu0 0.0
    %528 = vmatprep.subr.mxu0 0.0
    %529 = vmatpush1.msra.mxu0 0.0
    %530 = vmatprep.subr.mxu0 0.0
    %531 = vmatpush1.msra.mxu0 0.0
    %532 = vmatprep.subr.mxu0 0.0
    %533 = vmatpush1.msra.mxu0 0.0
    %534 = vmatprep.subr.mxu0 0.0
    %535 = vmatpush1.msra.mxu0 0.0
    %536 = vmatprep.subr.mxu0 0.0
    %537 = vmatpush1.msra.mxu0 0.0
    %538 = vmatprep.subr.mxu0 0.0
    %539 = vmatpush1.msra.mxu0 0.0
    %540 = vmatprep.mubr.f32.mxu0 0.0
    %541 = vmatmul.mubr.f32.gmra.mrb[0].mxu0 %v471
    %v542 = vpop.f32.mrb[0].mxu0
    %v543 = vadd.f32 0.0, %v542
    %v544 = vpop.f32.mrb[0].mxu0
    %545 = vmatprep.mubr.f32.mxu0 0.0
    %546 = vmatmul.mubr.f32.gmra.mrb[0].mxu0 %v474
    %v547 = vpop.f32.mrb[0].mxu0
    %v548 = vadd.f32 0.0, %v547
    %v549 = vpop.f32.mrb[0].mxu0
    %550 = vdwg.mxu0
    %v551 = vld [vmem:[%s2] sm:$0x1]
    %v553 = vlaneseq
    %v554 = vshrl.u32 %v553, 7
    %v555 = vsub.s32 0, %v554
    %v556 = vrot.slane %v551, %v555
    %v558 = vmul.f32 %v543, %v556
    %v559 = vmul.f32 %v548, %v556
    %v560 = vadd.f32 %v558, 0.0
    %v561 = vadd.f32 %v559, 0.0
    %562 = vset.pattern.permute.xlu0 1
    %563 = vperm.xlu0 %562, %v384
    %v564 = vpop.permute.xlu0 %563
    %566 = vset.pattern.permute.xlu0 1
    %567 = vperm.xlu0 %566, %v389
    %v568 = vpop.permute.xlu0 %567
    %v570 = vlaneseq
    %v571 = vshrl.u32 %v570, 7
    %v572 = vsub.s32 1, %v571
    %v573 = vrot.slane %v408, %v572
    %v574 = vadd.f32 %v564, %v573
    %v575 = vadd.f32 %v568, %v573
    %vm576 = vcmp.gt.f32.partialorder %v574, 0.0
    %vm577 = vcmp.gt.f32.partialorder %v575, 0.0
    %v578 = vmul.f32 %v574, 0.2
    %v579 = vmul.f32 %v575, 0.2
    %v580 = vsel %vm576, %v574, %v578
    %v581 = vsel %vm577, %v575, %v579
    %v582 = vadd.f32 %v580, %v47
    %v583 = vadd.f32 %v581, %v48
    %v584 = vsel %vm58, %v582, -inf
    %585 = vmax.xlane.f32.xlu0 %v584
    %v586 = vpop.xlane.xlu0 %585
    %v587 = vsel %vm58, %v583, -inf
    %588 = vmax.xlane.f32.xlu0 %v587
    %v589 = vpop.xlane.xlu0 %588
    %v590 = vsub.f32 %v582, %v586
    %v591 = vsub.f32 %v583, %v589
    %v592 = vmul.f32 %v590, 1.442695
    %v593 = vpow.pop %v592
    %v594 = vmul.f32 %v591, 1.442695
    %v595 = vpow.pop %v594
    %v596 = vsel %vm58, %v593, 0.0
    %597 = vadd.xlane.f32.xlu0 %v596
    %v598 = vpop.xlane.xlu0 %597
    %v599 = vsel %vm58, %v595, 0.0
    %600 = vadd.xlane.f32.xlu0 %v599
    %v601 = vpop.xlane.xlu0 %600
    %v602 = vrcp.pop %v598
    %v603 = vrcp.pop %v601
    %v604 = vmul.f32 %v593, %v602
    %v605 = vmul.f32 %v595, %v603
    %v607 = vsel %vm58, %v604, 0
    %v610 = vsel %vm58, %v605, 0
    %612 = vmatprep.subr.mxu0 0.0
    %613 = vmatpush1.msra.mxu0 %v220
    %614 = vmatprep.subr.mxu0 0.0
    %615 = vmatpush1.msra.mxu0 %v225
    %616 = vmatprep.subr.mxu0 0.0
    %617 = vmatpush1.msra.mxu0 0.0
    %618 = vmatprep.subr.mxu0 0.0
    %619 = vmatpush1.msra.mxu0 0.0
    %620 = vmatprep.subr.mxu0 0.0
    %621 = vmatpush1.msra.mxu0 0.0
    %622 = vmatprep.subr.mxu0 0.0
    %623 = vmatpush1.msra.mxu0 0.0
    %624 = vmatprep.subr.mxu0 0.0
    %625 = vmatpush1.msra.mxu0 0.0
    %626 = vmatprep.subr.mxu0 0.0
    %627 = vmatpush1.msra.mxu0 0.0
    %628 = vmatprep.subr.mxu0 0.0
    %629 = vmatpush1.msra.mxu0 0.0
    %630 = vmatprep.subr.mxu0 0.0
    %631 = vmatpush1.msra.mxu0 0.0
    %632 = vmatprep.subr.mxu0 0.0
    %633 = vmatpush1.msra.mxu0 0.0
    %634 = vmatprep.subr.mxu0 0.0
    %635 = vmatpush1.msra.mxu0 0.0
    %636 = vmatprep.subr.mxu0 0.0
    %637 = vmatpush1.msra.mxu0 0.0
    %638 = vmatprep.subr.mxu0 0.0
    %639 = vmatpush1.msra.mxu0 0.0
    %640 = vmatprep.subr.mxu0 0.0
    %641 = vmatpush1.msra.mxu0 0.0
    %642 = vmatprep.subr.mxu0 0.0
    %643 = vmatpush1.msra.mxu0 0.0
    %644 = vmatprep.subr.mxu0 0.0
    %645 = vmatpush1.msra.mxu0 0.0
    %646 = vmatprep.subr.mxu0 0.0
    %647 = vmatpush1.msra.mxu0 0.0
    %648 = vmatprep.subr.mxu0 0.0
    %649 = vmatpush1.msra.mxu0 0.0
    %650 = vmatprep.subr.mxu0 0.0
    %651 = vmatpush1.msra.mxu0 0.0
    %652 = vmatprep.subr.mxu0 0.0
    %653 = vmatpush1.msra.mxu0 0.0
    %654 = vmatprep.subr.mxu0 0.0
    %655 = vmatpush1.msra.mxu0 0.0
    %656 = vmatprep.subr.mxu0 0.0
    %657 = vmatpush1.msra.mxu0 0.0
    %658 = vmatprep.subr.mxu0 0.0
    %659 = vmatpush1.msra.mxu0 0.0
    %660 = vmatprep.subr.mxu0 0.0
    %661 = vmatpush1.msra.mxu0 0.0
    %662 = vmatprep.subr.mxu0 0.0
    %663 = vmatpush1.msra.mxu0 0.0
    %664 = vmatprep.subr.mxu0 0.0
    %665 = vmatpush1.msra.mxu0 0.0
    %666 = vmatprep.subr.mxu0 0.0
    %667 = vmatpush1.msra.mxu0 0.0
    %668 = vmatprep.subr.mxu0 0.0
    %669 = vmatpush1.msra.mxu0 0.0
    %670 = vmatprep.subr.mxu0 0.0
    %671 = vmatpush1.msra.mxu0 0.0
    %672 = vmatprep.subr.mxu0 0.0
    %673 = vmatpush1.msra.mxu0 0.0
    %674 = vmatprep.subr.mxu0 0.0
    %675 = vmatpush1.msra.mxu0 0.0
    %676 = vmatprep.mubr.f32.mxu0 0.0
    %677 = vmatmul.mubr.f32.gmra.mrb[0].mxu0 %v607
    %v678 = vpop.f32.mrb[0].mxu0
    %v679 = vadd.f32 0.0, %v678
    %v680 = vpop.f32.mrb[0].mxu0
    %681 = vmatprep.mubr.f32.mxu0 0.0
    %682 = vmatmul.mubr.f32.gmra.mrb[0].mxu0 %v610
    %v683 = vpop.f32.mrb[0].mxu0
    %v684 = vadd.f32 0.0, %v683
    %v685 = vpop.f32.mrb[0].mxu0
    %686 = vdwg.mxu0
    %s687 = scalar_lea.vmem %s2, 1
    %v688 = vld [vmem:[%s687] sm:$0x1]
    %v690 = vlaneseq
    %v691 = vshrl.u32 %v690, 7
    %v692 = vsub.s32 0, %v691
    %v693 = vrot.slane %v688, %v692
    %v695 = vmul.f32 %v679, %v693
    %v696 = vmul.f32 %v684, %v693
    %v697 = vadd.f32 %v560, %v695
    %v698 = vadd.f32 %v561, %v696
    %699 = vset.pattern.permute.xlu0 2
    %700 = vperm.xlu0 %699, %v384
    %v701 = vpop.permute.xlu0 %700
    %703 = vset.pattern.permute.xlu0 2
    %704 = vperm.xlu0 %703, %v389
    %v705 = vpop.permute.xlu0 %704
    %v707 = vlaneseq
    %v708 = vshrl.u32 %v707, 7
    %v709 = vsub.s32 2, %v708
    %v710 = vrot.slane %v408, %v709
    %v711 = vadd.f32 %v701, %v710
    %v712 = vadd.f32 %v705, %v710
    %vm713 = vcmp.gt.f32.partialorder %v711, 0.0
    %vm714 = vcmp.gt.f32.partialorder %v712, 0.0
    %v715 = vmul.f32 %v711, 0.2
    %v716 = vmul.f32 %v712, 0.2
    %v717 = vsel %vm713, %v711, %v715
    %v718 = vsel %vm714, %v712, %v716
    %v719 = vadd.f32 %v717, %v47
    %v720 = vadd.f32 %v718, %v48
    %v721 = vsel %vm58, %v719, -inf
    %722 = vmax.xlane.f32.xlu0 %v721
    %v723 = vpop.xlane.xlu0 %722
    %v724 = vsel %vm58, %v720, -inf
    %725 = vmax.xlane.f32.xlu0 %v724
    %v726 = vpop.xlane.xlu0 %725
    %v727 = vsub.f32 %v719, %v723
    %v728 = vsub.f32 %v720, %v726
    %v729 = vmul.f32 %v727, 1.442695
    %v730 = vpow.pop %v729
    %v731 = vmul.f32 %v728, 1.442695
    %v732 = vpow.pop %v731
    %v733 = vsel %vm58, %v730, 0.0
    %734 = vadd.xlane.f32.xlu0 %v733
    %v735 = vpop.xlane.xlu0 %734
    %v736 = vsel %vm58, %v732, 0.0
    %737 = vadd.xlane.f32.xlu0 %v736
    %v738 = vpop.xlane.xlu0 %737
    %v739 = vrcp.pop %v735
    %v740 = vrcp.pop %v738
    %v741 = vmul.f32 %v730, %v739
    %v742 = vmul.f32 %v732, %v740
    %v744 = vsel %vm58, %v741, 0
    %v747 = vsel %vm58, %v742, 0
    %749 = vmatprep.subr.mxu0 0.0
    %750 = vmatpush1.msra.mxu0 %v220
    %751 = vmatprep.subr.mxu0 0.0
    %752 = vmatpush1.msra.mxu0 %v225
    %753 = vmatprep.subr.mxu0 0.0
    %754 = vmatpush1.msra.mxu0 0.0
    %755 = vmatprep.subr.mxu0 0.0
    %756 = vmatpush1.msra.mxu0 0.0
    %757 = vmatprep.subr.mxu0 0.0
    %758 = vmatpush1.msra.mxu0 0.0
    %759 = vmatprep.subr.mxu0 0.0
    %760 = vmatpush1.msra.mxu0 0.0
    %761 = vmatprep.subr.mxu0 0.0
    %762 = vmatpush1.msra.mxu0 0.0
    %763 = vmatprep.subr.mxu0 0.0
    %764 = vmatpush1.msra.mxu0 0.0
    %765 = vmatprep.subr.mxu0 0.0
    %766 = vmatpush1.msra.mxu0 0.0
    %767 = vmatprep.subr.mxu0 0.0
    %768 = vmatpush1.msra.mxu0 0.0
    %769 = vmatprep.subr.mxu0 0.0
    %770 = vmatpush1.msra.mxu0 0.0
    %771 = vmatprep.subr.mxu0 0.0
    %772 = vmatpush1.msra.mxu0 0.0
    %773 = vmatprep.subr.mxu0 0.0
    %774 = vmatpush1.msra.mxu0 0.0
    %775 = vmatprep.subr.mxu0 0.0
    %776 = vmatpush1.msra.mxu0 0.0
    %777 = vmatprep.subr.mxu0 0.0
    %778 = vmatpush1.msra.mxu0 0.0
    %779 = vmatprep.subr.mxu0 0.0
    %780 = vmatpush1.msra.mxu0 0.0
    %781 = vmatprep.subr.mxu0 0.0
    %782 = vmatpush1.msra.mxu0 0.0
    %783 = vmatprep.subr.mxu0 0.0
    %784 = vmatpush1.msra.mxu0 0.0
    %785 = vmatprep.subr.mxu0 0.0
    %786 = vmatpush1.msra.mxu0 0.0
    %787 = vmatprep.subr.mxu0 0.0
    %788 = vmatpush1.msra.mxu0 0.0
    %789 = vmatprep.subr.mxu0 0.0
    %790 = vmatpush1.msra.mxu0 0.0
    %791 = vmatprep.subr.mxu0 0.0
    %792 = vmatpush1.msra.mxu0 0.0
    %793 = vmatprep.subr.mxu0 0.0
    %794 = vmatpush1.msra.mxu0 0.0
    %795 = vmatprep.subr.mxu0 0.0
    %796 = vmatpush1.msra.mxu0 0.0
    %797 = vmatprep.subr.mxu0 0.0
    %798 = vmatpush1.msra.mxu0 0.0
    %799 = vmatprep.subr.mxu0 0.0
    %800 = vmatpush1.msra.mxu0 0.0
    %801 = vmatprep.subr.mxu0 0.0
    %802 = vmatpush1.msra.mxu0 0.0
    %803 = vmatprep.subr.mxu0 0.0
    %804 = vmatpush1.msra.mxu0 0.0
    %805 = vmatprep.subr.mxu0 0.0
    %806 = vmatpush1.msra.mxu0 0.0
    %807 = vmatprep.subr.mxu0 0.0
    %808 = vmatpush1.msra.mxu0 0.0
    %809 = vmatprep.subr.mxu0 0.0
    %810 = vmatpush1.msra.mxu0 0.0
    %811 = vmatprep.subr.mxu0 0.0
    %812 = vmatpush1.msra.mxu0 0.0
    %813 = vmatprep.mubr.f32.mxu0 0.0
    %814 = vmatmul.mubr.f32.gmra.mrb[0].mxu0 %v744
    %v815 = vpop.f32.mrb[0].mxu0
    %v816 = vadd.f32 0.0, %v815
    %v817 = vpop.f32.mrb[0].mxu0
    %818 = vmatprep.mubr.f32.mxu0 0.0
    %819 = vmatmul.mubr.f32.gmra.mrb[0].mxu0 %v747
    %v820 = vpop.f32.mrb[0].mxu0
    %v821 = vadd.f32 0.0, %v820
    %v822 = vpop.f32.mrb[0].mxu0
    %823 = vdwg.mxu0
    %s824 = scalar_lea.vmem %s2, 2
    %v825 = vld [vmem:[%s824] sm:$0x1]
    %v827 = vlaneseq
    %v828 = vshrl.u32 %v827, 7
    %v829 = vsub.s32 0, %v828
    %v830 = vrot.slane %v825, %v829
    %v832 = vmul.f32 %v816, %v830
    %v833 = vmul.f32 %v821, %v830
    %v834 = vadd.f32 %v697, %v832
    %v835 = vadd.f32 %v698, %v833
    %836 = vset.pattern.permute.xlu0 3
    %837 = vperm.xlu0 %836, %v384
    %v838 = vpop.permute.xlu0 %837
    %840 = vset.pattern.permute.xlu0 3
    %841 = vperm.xlu0 %840, %v389
    %v842 = vpop.permute.xlu0 %841
    %v844 = vlaneseq
    %v845 = vshrl.u32 %v844, 7
    %v846 = vsub.s32 3, %v845
    %v847 = vrot.slane %v408, %v846
    %v848 = vadd.f32 %v838, %v847
    %v849 = vadd.f32 %v842, %v847
    %vm850 = vcmp.gt.f32.partialorder %v848, 0.0
    %vm851 = vcmp.gt.f32.partialorder %v849, 0.0
    %v852 = vmul.f32 %v848, 0.2
    %v853 = vmul.f32 %v849, 0.2
    %v854 = vsel %vm850, %v848, %v852
    %v855 = vsel %vm851, %v849, %v853
    %v856 = vadd.f32 %v854, %v47
    %v857 = vadd.f32 %v855, %v48
    %v858 = vsel %vm58, %v856, -inf
    %859 = vmax.xlane.f32.xlu0 %v858
    %v860 = vpop.xlane.xlu0 %859
    %v861 = vsel %vm58, %v857, -inf
    %862 = vmax.xlane.f32.xlu0 %v861
    %v863 = vpop.xlane.xlu0 %862
    %v864 = vsub.f32 %v856, %v860
    %v865 = vsub.f32 %v857, %v863
    %v866 = vmul.f32 %v864, 1.442695
    %v867 = vpow.pop %v866
    %v868 = vmul.f32 %v865, 1.442695
    %v869 = vpow.pop %v868
    %v870 = vsel %vm58, %v867, 0.0
    %871 = vadd.xlane.f32.xlu0 %v870
    %v872 = vpop.xlane.xlu0 %871
    %v873 = vsel %vm58, %v869, 0.0
    %874 = vadd.xlane.f32.xlu0 %v873
    %v875 = vpop.xlane.xlu0 %874
    %v876 = vrcp.pop %v872
    %v877 = vrcp.pop %v875
    %v878 = vmul.f32 %v867, %v876
    %v879 = vmul.f32 %v869, %v877
    %v881 = vsel %vm58, %v878, 0
    %v884 = vsel %vm58, %v879, 0
    %886 = vmatprep.subr.mxu0 0.0
    %887 = vmatpush1.msra.mxu0 %v220
    %888 = vmatprep.subr.mxu0 0.0
    %889 = vmatpush1.msra.mxu0 %v225
    %890 = vmatprep.subr.mxu0 0.0
    %891 = vmatpush1.msra.mxu0 0.0
    %892 = vmatprep.subr.mxu0 0.0
    %893 = vmatpush1.msra.mxu0 0.0
    %894 = vmatprep.subr.mxu0 0.0
    %895 = vmatpush1.msra.mxu0 0.0
    %896 = vmatprep.subr.mxu0 0.0
    %897 = vmatpush1.msra.mxu0 0.0
    %898 = vmatprep.subr.mxu0 0.0
    %899 = vmatpush1.msra.mxu0 0.0
    %900 = vmatprep.subr.mxu0 0.0
    %901 = vmatpush1.msra.mxu0 0.0
    %902 = vmatprep.subr.mxu0 0.0
    %903 = vmatpush1.msra.mxu0 0.0
    %904 = vmatprep.subr.mxu0 0.0
    %905 = vmatpush1.msra.mxu0 0.0
    %906 = vmatprep.subr.mxu0 0.0
    %907 = vmatpush1.msra.mxu0 0.0
    %908 = vmatprep.subr.mxu0 0.0
    %909 = vmatpush1.msra.mxu0 0.0
    %910 = vmatprep.subr.mxu0 0.0
    %911 = vmatpush1.msra.mxu0 0.0
    %912 = vmatprep.subr.mxu0 0.0
    %913 = vmatpush1.msra.mxu0 0.0
    %914 = vmatprep.subr.mxu0 0.0
    %915 = vmatpush1.msra.mxu0 0.0
    %916 = vmatprep.subr.mxu0 0.0
    %917 = vmatpush1.msra.mxu0 0.0
    %918 = vmatprep.subr.mxu0 0.0
    %919 = vmatpush1.msra.mxu0 0.0
    %920 = vmatprep.subr.mxu0 0.0
    %921 = vmatpush1.msra.mxu0 0.0
    %922 = vmatprep.subr.mxu0 0.0
    %923 = vmatpush1.msra.mxu0 0.0
    %924 = vmatprep.subr.mxu0 0.0
    %925 = vmatpush1.msra.mxu0 0.0
    %926 = vmatprep.subr.mxu0 0.0
    %927 = vmatpush1.msra.mxu0 0.0
    %928 = vmatprep.subr.mxu0 0.0
    %929 = vmatpush1.msra.mxu0 0.0
    %930 = vmatprep.subr.mxu0 0.0
    %931 = vmatpush1.msra.mxu0 0.0
    %932 = vmatprep.subr.mxu0 0.0
    %933 = vmatpush1.msra.mxu0 0.0
    %934 = vmatprep.subr.mxu0 0.0
    %935 = vmatpush1.msra.mxu0 0.0
    %936 = vmatprep.subr.mxu0 0.0
    %937 = vmatpush1.msra.mxu0 0.0
    %938 = vmatprep.subr.mxu0 0.0
    %939 = vmatpush1.msra.mxu0 0.0
    %940 = vmatprep.subr.mxu0 0.0
    %941 = vmatpush1.msra.mxu0 0.0
    %942 = vmatprep.subr.mxu0 0.0
    %943 = vmatpush1.msra.mxu0 0.0
    %944 = vmatprep.subr.mxu0 0.0
    %945 = vmatpush1.msra.mxu0 0.0
    %946 = vmatprep.subr.mxu0 0.0
    %947 = vmatpush1.msra.mxu0 0.0
    %948 = vmatprep.subr.mxu0 0.0
    %949 = vmatpush1.msra.mxu0 0.0
    %950 = vmatprep.mubr.f32.mxu0 0.0
    %951 = vmatmul.mubr.f32.gmra.mrb[0].mxu0 %v881
    %v952 = vpop.f32.mrb[0].mxu0
    %v953 = vadd.f32 0.0, %v952
    %v954 = vpop.f32.mrb[0].mxu0
    %955 = vmatprep.mubr.f32.mxu0 0.0
    %956 = vmatmul.mubr.f32.gmra.mrb[0].mxu0 %v884
    %v957 = vpop.f32.mrb[0].mxu0
    %v958 = vadd.f32 0.0, %v957
    %v959 = vpop.f32.mrb[0].mxu0
    %960 = vdwg.mxu0
    %s961 = scalar_lea.vmem %s2, 3
    %v962 = vld [vmem:[%s961] sm:$0x1]
    %v964 = vlaneseq
    %v965 = vshrl.u32 %v964, 7
    %v966 = vsub.s32 0, %v965
    %v967 = vrot.slane %v962, %v966
    %v969 = vmul.f32 %v953, %v967
    %v970 = vmul.f32 %v958, %v967
    %v971 = vadd.f32 %v834, %v969
    %v972 = vadd.f32 %v835, %v970
    %v973 = vld [vmem:[%s8] sm:$0x1]
    %v975 = vlaneseq
    %v976 = vshrl.u32 %v975, 7
    %v977 = vsub.s32 0, %v976
    %v978 = vrot.slane %v973, %v977
    %v980 = vadd.f32 %v971, %v978
    %v981 = vadd.f32 %v972, %v978
    %v982 = vadd.f32 %v980, %v140
    %v983 = vadd.f32 %v981, %v141
    %v984 = vsel %vm146, %v982, 0.0
    %985 = vadd.xlane.f32.xlu0 %v984
    %v986 = vpop.xlane.xlu0 %985
    %v987 = vsel %vm146, %v983, 0.0
    %988 = vadd.xlane.f32.xlu0 %v987
    %v989 = vpop.xlane.xlu0 %988
    %v990 = vrcp.pop 32.0
    %v991 = vmul.f32 %v986, %v990
    %v992 = vmul.f32 %v989, %v990
    %v993 = vsub.f32 %v982, %v991
    %v994 = vsub.f32 %v983, %v992
    %v995 = vmul.f32 %v993, %v993
    %v996 = vmul.f32 %v994, %v994
    %v997 = vsel %vm146, %v995, 0.0
    %998 = vadd.xlane.f32.xlu0 %v997
    %v999 = vpop.xlane.xlu0 %998
    %v1000 = vsel %vm146, %v996, 0.0
    %1001 = vadd.xlane.f32.xlu0 %v1000
    %v1002 = vpop.xlane.xlu0 %1001
    %v1003 = vmul.f32 %v999, %v990
    %v1004 = vmul.f32 %v1002, %v990
    %v1005 = vadd.f32 %v1003, 1e-05
    %v1006 = vadd.f32 %v1004, 1e-05
    %v1007 = vrsqrt.pop %v1005
    %v1008 = vrsqrt.pop %v1006
    %v1009 = vmul.f32 %v993, %v1007
    %v1010 = vmul.f32 %v994, %v1008
    %v1011 = vld [vmem:[%s9] sm:$0x1]
    %v1013 = vlaneseq
    %v1014 = vshrl.u32 %v1013, 7
    %v1015 = vsub.s32 0, %v1014
    %v1016 = vrot.slane %v1011, %v1015
    %v1018 = vmul.f32 %v1009, %v1016
    %v1019 = vmul.f32 %v1010, %v1016
    %v1020 = vld [vmem:[%s10] sm:$0x1]
    %v1022 = vlaneseq
    %v1023 = vshrl.u32 %v1022, 7
    %v1024 = vsub.s32 0, %v1023
    %v1025 = vrot.slane %v1020, %v1024
    %v1027 = vadd.f32 %v1018, %v1025
    %v1028 = vadd.f32 %v1019, %v1025
    %v1029 = vmax.f32 %v1027, 0.0
    %v1030 = vmax.f32 %v1028, 0.0
    %s1031 = scalar_lea.vmem %s5, 32
    %v1032 = vld [vmem:[%s1031] sm:$0xff]
    %v1033 = vld [vmem:[%s1031 + $0x8] sm:$0xff]
    %v1034 = vld [vmem:[%s1031 + $0x10] sm:$0xff]
    %v1035 = vld [vmem:[%s1031 + $0x18] sm:$0xff]
    %v1037 = vsel %vm146, %v1029, 0
    %v1040 = vsel %vm146, %v1030, 0
    %1042 = vmatprep.subr.mxu0 0.0
    %1043 = vmatpush1.msra.mxu0 %v1032
    %1044 = vmatprep.subr.mxu0 0.0
    %1045 = vmatpush1.msra.mxu0 %v1033
    %1046 = vmatprep.subr.mxu0 0.0
    %1047 = vmatpush1.msra.mxu0 %v1034
    %1048 = vmatprep.subr.mxu0 0.0
    %1049 = vmatpush1.msra.mxu0 %v1035
    %1050 = vmatprep.subr.mxu0 0.0
    %1051 = vmatpush1.msra.mxu0 0.0
    %1052 = vmatprep.subr.mxu0 0.0
    %1053 = vmatpush1.msra.mxu0 0.0
    %1054 = vmatprep.subr.mxu0 0.0
    %1055 = vmatpush1.msra.mxu0 0.0
    %1056 = vmatprep.subr.mxu0 0.0
    %1057 = vmatpush1.msra.mxu0 0.0
    %1058 = vmatprep.subr.mxu0 0.0
    %1059 = vmatpush1.msra.mxu0 0.0
    %1060 = vmatprep.subr.mxu0 0.0
    %1061 = vmatpush1.msra.mxu0 0.0
    %1062 = vmatprep.subr.mxu0 0.0
    %1063 = vmatpush1.msra.mxu0 0.0
    %1064 = vmatprep.subr.mxu0 0.0
    %1065 = vmatpush1.msra.mxu0 0.0
    %1066 = vmatprep.subr.mxu0 0.0
    %1067 = vmatpush1.msra.mxu0 0.0
    %1068 = vmatprep.subr.mxu0 0.0
    %1069 = vmatpush1.msra.mxu0 0.0
    %1070 = vmatprep.subr.mxu0 0.0
    %1071 = vmatpush1.msra.mxu0 0.0
    %1072 = vmatprep.subr.mxu0 0.0
    %1073 = vmatpush1.msra.mxu0 0.0
    %1074 = vmatprep.subr.mxu0 0.0
    %1075 = vmatpush1.msra.mxu0 0.0
    %1076 = vmatprep.subr.mxu0 0.0
    %1077 = vmatpush1.msra.mxu0 0.0
    %1078 = vmatprep.subr.mxu0 0.0
    %1079 = vmatpush1.msra.mxu0 0.0
    %1080 = vmatprep.subr.mxu0 0.0
    %1081 = vmatpush1.msra.mxu0 0.0
    %1082 = vmatprep.subr.mxu0 0.0
    %1083 = vmatpush1.msra.mxu0 0.0
    %1084 = vmatprep.subr.mxu0 0.0
    %1085 = vmatpush1.msra.mxu0 0.0
    %1086 = vmatprep.subr.mxu0 0.0
    %1087 = vmatpush1.msra.mxu0 0.0
    %1088 = vmatprep.subr.mxu0 0.0
    %1089 = vmatpush1.msra.mxu0 0.0
    %1090 = vmatprep.subr.mxu0 0.0
    %1091 = vmatpush1.msra.mxu0 0.0
    %1092 = vmatprep.subr.mxu0 0.0
    %1093 = vmatpush1.msra.mxu0 0.0
    %1094 = vmatprep.subr.mxu0 0.0
    %1095 = vmatpush1.msra.mxu0 0.0
    %1096 = vmatprep.subr.mxu0 0.0
    %1097 = vmatpush1.msra.mxu0 0.0
    %1098 = vmatprep.subr.mxu0 0.0
    %1099 = vmatpush1.msra.mxu0 0.0
    %1100 = vmatprep.subr.mxu0 0.0
    %1101 = vmatpush1.msra.mxu0 0.0
    %1102 = vmatprep.subr.mxu0 0.0
    %1103 = vmatpush1.msra.mxu0 0.0
    %1104 = vmatprep.subr.mxu0 0.0
    %1105 = vmatpush1.msra.mxu0 0.0
    %1106 = vmatprep.mubr.f32.mxu0 0.0
    %1107 = vmatmul.mubr.f32.gmra.mrb[0].mxu0 %v1037
    %v1108 = vpop.f32.mrb[0].mxu0
    %v1109 = vadd.f32 0.0, %v1108
    %v1110 = vpop.f32.mrb[0].mxu0
    %1111 = vmatprep.mubr.f32.mxu0 0.0
    %1112 = vmatmul.mubr.f32.gmra.mrb[0].mxu0 %v1040
    %v1113 = vpop.f32.mrb[0].mxu0
    %v1114 = vadd.f32 0.0, %v1113
    %v1115 = vpop.f32.mrb[0].mxu0
    %1116 = vdwg.mxu0
    %s1117 = scalar_lea.vmem %s6, 32
    %v1118 = vld [vmem:[%s1117] sm:$0xff]
    %v1119 = vld [vmem:[%s1117 + $0x8] sm:$0xff]
    %v1120 = vld [vmem:[%s1117 + $0x10] sm:$0xff]
    %v1121 = vld [vmem:[%s1117 + $0x18] sm:$0xff]
    %v1123 = vsel %vm146, %v1109, 0
    %v1126 = vsel %vm146, %v1114, 0
    %1128 = vmatprep.subr.mxu0 0.0
    %1129 = vmatpush1.msra.mxu0 %v1118
    %1130 = vmatprep.subr.mxu0 0.0
    %1131 = vmatpush1.msra.mxu0 %v1119
    %1132 = vmatprep.subr.mxu0 0.0
    %1133 = vmatpush1.msra.mxu0 %v1120
    %1134 = vmatprep.subr.mxu0 0.0
    %1135 = vmatpush1.msra.mxu0 %v1121
    %1136 = vmatprep.subr.mxu0 0.0
    %1137 = vmatpush1.msra.mxu0 0.0
    %1138 = vmatprep.subr.mxu0 0.0
    %1139 = vmatpush1.msra.mxu0 0.0
    %1140 = vmatprep.subr.mxu0 0.0
    %1141 = vmatpush1.msra.mxu0 0.0
    %1142 = vmatprep.subr.mxu0 0.0
    %1143 = vmatpush1.msra.mxu0 0.0
    %1144 = vmatprep.subr.mxu0 0.0
    %1145 = vmatpush1.msra.mxu0 0.0
    %1146 = vmatprep.subr.mxu0 0.0
    %1147 = vmatpush1.msra.mxu0 0.0
    %1148 = vmatprep.subr.mxu0 0.0
    %1149 = vmatpush1.msra.mxu0 0.0
    %1150 = vmatprep.subr.mxu0 0.0
    %1151 = vmatpush1.msra.mxu0 0.0
    %1152 = vmatprep.subr.mxu0 0.0
    %1153 = vmatpush1.msra.mxu0 0.0
    %1154 = vmatprep.subr.mxu0 0.0
    %1155 = vmatpush1.msra.mxu0 0.0
    %1156 = vmatprep.subr.mxu0 0.0
    %1157 = vmatpush1.msra.mxu0 0.0
    %1158 = vmatprep.subr.mxu0 0.0
    %1159 = vmatpush1.msra.mxu0 0.0
    %1160 = vmatprep.subr.mxu0 0.0
    %1161 = vmatpush1.msra.mxu0 0.0
    %1162 = vmatprep.subr.mxu0 0.0
    %1163 = vmatpush1.msra.mxu0 0.0
    %1164 = vmatprep.subr.mxu0 0.0
    %1165 = vmatpush1.msra.mxu0 0.0
    %1166 = vmatprep.subr.mxu0 0.0
    %1167 = vmatpush1.msra.mxu0 0.0
    %1168 = vmatprep.subr.mxu0 0.0
    %1169 = vmatpush1.msra.mxu0 0.0
    %1170 = vmatprep.subr.mxu0 0.0
    %1171 = vmatpush1.msra.mxu0 0.0
    %1172 = vmatprep.subr.mxu0 0.0
    %1173 = vmatpush1.msra.mxu0 0.0
    %1174 = vmatprep.subr.mxu0 0.0
    %1175 = vmatpush1.msra.mxu0 0.0
    %1176 = vmatprep.subr.mxu0 0.0
    %1177 = vmatpush1.msra.mxu0 0.0
    %1178 = vmatprep.subr.mxu0 0.0
    %1179 = vmatpush1.msra.mxu0 0.0
    %1180 = vmatprep.subr.mxu0 0.0
    %1181 = vmatpush1.msra.mxu0 0.0
    %1182 = vmatprep.subr.mxu0 0.0
    %1183 = vmatpush1.msra.mxu0 0.0
    %1184 = vmatprep.subr.mxu0 0.0
    %1185 = vmatpush1.msra.mxu0 0.0
    %1186 = vmatprep.subr.mxu0 0.0
    %1187 = vmatpush1.msra.mxu0 0.0
    %1188 = vmatprep.subr.mxu0 0.0
    %1189 = vmatpush1.msra.mxu0 0.0
    %1190 = vmatprep.subr.mxu0 0.0
    %1191 = vmatpush1.msra.mxu0 0.0
    %1192 = vmatprep.mubr.f32.mxu0 0.0
    %1193 = vmatmul.mubr.f32.gmra.mrb[0].mxu0 %v1123
    %v1194 = vpop.f32.mrb[0].mxu0
    %v1195 = vadd.f32 0.0, %v1194
    %v1196 = vpop.f32.mrb[0].mxu0
    %1197 = vmatprep.mubr.f32.mxu0 0.0
    %1198 = vmatmul.mubr.f32.gmra.mrb[0].mxu0 %v1126
    %v1199 = vpop.f32.mrb[0].mxu0
    %v1200 = vadd.f32 0.0, %v1199
    %v1201 = vpop.f32.mrb[0].mxu0
    %1202 = vdwg.mxu0
    %s1203 = scalar_lea.vmem %s7, 32
    %v1204 = vld [vmem:[%s1203] sm:$0xff]
    %v1205 = vld [vmem:[%s1203 + $0x8] sm:$0xff]
    %v1206 = vld [vmem:[%s1203 + $0x10] sm:$0xff]
    %v1207 = vld [vmem:[%s1203 + $0x18] sm:$0xff]
    %1208 = vmatprep.subr.mxu0 0.0
    %1209 = vmatpush1.msra.mxu0 %v1204
    %1210 = vmatprep.subr.mxu0 0.0
    %1211 = vmatpush1.msra.mxu0 %v1205
    %1212 = vmatprep.subr.mxu0 0.0
    %1213 = vmatpush1.msra.mxu0 %v1206
    %1214 = vmatprep.subr.mxu0 0.0
    %1215 = vmatpush1.msra.mxu0 %v1207
    %1216 = vmatprep.subr.mxu0 0.0
    %1217 = vmatpush1.msra.mxu0 0.0
    %1218 = vmatprep.subr.mxu0 0.0
    %1219 = vmatpush1.msra.mxu0 0.0
    %1220 = vmatprep.subr.mxu0 0.0
    %1221 = vmatpush1.msra.mxu0 0.0
    %1222 = vmatprep.subr.mxu0 0.0
    %1223 = vmatpush1.msra.mxu0 0.0
    %1224 = vmatprep.subr.mxu0 0.0
    %1225 = vmatpush1.msra.mxu0 0.0
    %1226 = vmatprep.subr.mxu0 0.0
    %1227 = vmatpush1.msra.mxu0 0.0
    %1228 = vmatprep.subr.mxu0 0.0
    %1229 = vmatpush1.msra.mxu0 0.0
    %1230 = vmatprep.subr.mxu0 0.0
    %1231 = vmatpush1.msra.mxu0 0.0
    %1232 = vmatprep.subr.mxu0 0.0
    %1233 = vmatpush1.msra.mxu0 0.0
    %1234 = vmatprep.subr.mxu0 0.0
    %1235 = vmatpush1.msra.mxu0 0.0
    %1236 = vmatprep.subr.mxu0 0.0
    %1237 = vmatpush1.msra.mxu0 0.0
    %1238 = vmatprep.subr.mxu0 0.0
    %1239 = vmatpush1.msra.mxu0 0.0
    %1240 = vmatprep.subr.mxu0 0.0
    %1241 = vmatpush1.msra.mxu0 0.0
    %1242 = vmatprep.subr.mxu0 0.0
    %1243 = vmatpush1.msra.mxu0 0.0
    %1244 = vmatprep.subr.mxu0 0.0
    %1245 = vmatpush1.msra.mxu0 0.0
    %1246 = vmatprep.subr.mxu0 0.0
    %1247 = vmatpush1.msra.mxu0 0.0
    %1248 = vmatprep.subr.mxu0 0.0
    %1249 = vmatpush1.msra.mxu0 0.0
    %1250 = vmatprep.subr.mxu0 0.0
    %1251 = vmatpush1.msra.mxu0 0.0
    %1252 = vmatprep.subr.mxu0 0.0
    %1253 = vmatpush1.msra.mxu0 0.0
    %1254 = vmatprep.subr.mxu0 0.0
    %1255 = vmatpush1.msra.mxu0 0.0
    %1256 = vmatprep.subr.mxu0 0.0
    %1257 = vmatpush1.msra.mxu0 0.0
    %1258 = vmatprep.subr.mxu0 0.0
    %1259 = vmatpush1.msra.mxu0 0.0
    %1260 = vmatprep.subr.mxu0 0.0
    %1261 = vmatpush1.msra.mxu0 0.0
    %1262 = vmatprep.subr.mxu0 0.0
    %1263 = vmatpush1.msra.mxu0 0.0
    %1264 = vmatprep.subr.mxu0 0.0
    %1265 = vmatpush1.msra.mxu0 0.0
    %1266 = vmatprep.subr.mxu0 0.0
    %1267 = vmatpush1.msra.mxu0 0.0
    %1268 = vmatprep.subr.mxu0 0.0
    %1269 = vmatpush1.msra.mxu0 0.0
    %1270 = vmatprep.subr.mxu0 0.0
    %1271 = vmatpush1.msra.mxu0 0.0
    %1272 = vmatprep.mubr.f32.mxu0 0.0
    %1273 = vmatmul.mubr.f32.gmra.mrb[0].mxu0 %v1123
    %v1274 = vpop.f32.mrb[0].mxu0
    %v1275 = vadd.f32 0.0, %v1274
    %v1276 = vpop.f32.mrb[0].mxu0
    %1277 = vmatprep.mubr.f32.mxu0 0.0
    %1278 = vmatmul.mubr.f32.gmra.mrb[0].mxu0 %v1126
    %v1279 = vpop.f32.mrb[0].mxu0
    %v1280 = vadd.f32 0.0, %v1279
    %v1281 = vpop.f32.mrb[0].mxu0
    %1282 = vdwg.mxu0
    %1283 = vxpose.xlu0.b32.start [1/16] %v1195, 128
    %1284 = vxpose.xlu0.b32.cont [2/16] %v1200, 128
    %1285 = vxpose.xlu0.b32.cont [3/16] 0.0, 128
    %1286 = vxpose.xlu0.b32.cont [4/16] 0.0, 128
    %1287 = vxpose.xlu0.b32.cont [5/16] 0.0, 128
    %1288 = vxpose.xlu0.b32.cont [6/16] 0.0, 128
    %1289 = vxpose.xlu0.b32.cont [7/16] 0.0, 128
    %1290 = vxpose.xlu0.b32.cont [8/16] 0.0, 128
    %1291 = vxpose.xlu0.b32.cont [9/16] 0.0, 128
    %1292 = vxpose.xlu0.b32.cont [10/16] 0.0, 128
    %1293 = vxpose.xlu0.b32.cont [11/16] 0.0, 128
    %1294 = vxpose.xlu0.b32.cont [12/16] 0.0, 128
    %1295 = vxpose.xlu0.b32.cont [13/16] 0.0, 128
    %1296 = vxpose.xlu0.b32.cont [14/16] 0.0, 128
    %1297 = vxpose.xlu0.b32.cont [15/16] 0.0, 128
    %1298 = vxpose.xlu0.b32.end [16/16] 0.0, 128
    %v1299 = vpop.trf.xlu0
    %v1300 = vpop.trf.xlu0
    %v1301 = vpop.trf.xlu0
    %v1302 = vpop.trf.xlu0
    %v1303 = vpop.trf.xlu0
    %v1304 = vpop.trf.xlu0
    %v1305 = vpop.trf.xlu0
    %v1306 = vpop.trf.xlu0
    %v1307 = vpop.trf.xlu0
    %v1308 = vpop.trf.xlu0
    %v1309 = vpop.trf.xlu0
    %v1310 = vpop.trf.xlu0
    %v1311 = vpop.trf.xlu0
    %v1312 = vpop.trf.xlu0
    %v1313 = vpop.trf.xlu0
    %v1314 = vpop.trf.xlu0
    %1316 = vset.pattern.permute.xlu0 0
    %1317 = vperm.xlu0 %1316, %v1275
    %v1318 = vpop.permute.xlu0 %1317
    %1321 = vset.pattern.permute.xlu0 0
    %1322 = vperm.xlu0 %1321, %v1280
    %v1323 = vpop.permute.xlu0 %1322
    %v1325 = vlaneseq
    %v1326 = vshrl.u32 %v1325, 7
    %v1327 = vsub.s32 0, %v1326
    %v1328 = vrot.slane %v1299, %v1327
    %v1329 = vadd.f32 %v1318, %v1328
    %v1330 = vadd.f32 %v1323, %v1328
    %vm1331 = vcmp.gt.f32.partialorder %v1329, 0.0
    %vm1332 = vcmp.gt.f32.partialorder %v1330, 0.0
    %v1333 = vmul.f32 %v1329, 0.2
    %v1334 = vmul.f32 %v1330, 0.2
    %v1335 = vsel %vm1331, %v1329, %v1333
    %v1336 = vsel %vm1332, %v1330, %v1334
    %v1337 = vadd.f32 %v1335, %v47
    %v1338 = vadd.f32 %v1336, %v48
    %v1339 = vsel %vm58, %v1337, -inf
    %1340 = vmax.xlane.f32.xlu0 %v1339
    %v1341 = vpop.xlane.xlu0 %1340
    %v1342 = vsel %vm58, %v1338, -inf
    %1343 = vmax.xlane.f32.xlu0 %v1342
    %v1344 = vpop.xlane.xlu0 %1343
    %v1345 = vsub.f32 %v1337, %v1341
    %v1346 = vsub.f32 %v1338, %v1344
    %v1347 = vmul.f32 %v1345, 1.442695
    %v1348 = vpow.pop %v1347
    %v1349 = vmul.f32 %v1346, 1.442695
    %v1350 = vpow.pop %v1349
    %v1351 = vsel %vm58, %v1348, 0.0
    %1352 = vadd.xlane.f32.xlu0 %v1351
    %v1353 = vpop.xlane.xlu0 %1352
    %v1354 = vsel %vm58, %v1350, 0.0
    %1355 = vadd.xlane.f32.xlu0 %v1354
    %v1356 = vpop.xlane.xlu0 %1355
    %v1357 = vrcp.pop %v1353
    %v1358 = vrcp.pop %v1356
    %v1359 = vmul.f32 %v1348, %v1357
    %v1360 = vmul.f32 %v1350, %v1358
    %v1362 = vsel %vm58, %v1359, 0
    %v1365 = vsel %vm58, %v1360, 0
    %1367 = vmatprep.subr.mxu0 0.0
    %1368 = vmatpush1.msra.mxu0 %v1109
    %1369 = vmatprep.subr.mxu0 0.0
    %1370 = vmatpush1.msra.mxu0 %v1114
    %1371 = vmatprep.subr.mxu0 0.0
    %1372 = vmatpush1.msra.mxu0 0.0
    %1373 = vmatprep.subr.mxu0 0.0
    %1374 = vmatpush1.msra.mxu0 0.0
    %1375 = vmatprep.subr.mxu0 0.0
    %1376 = vmatpush1.msra.mxu0 0.0
    %1377 = vmatprep.subr.mxu0 0.0
    %1378 = vmatpush1.msra.mxu0 0.0
    %1379 = vmatprep.subr.mxu0 0.0
    %1380 = vmatpush1.msra.mxu0 0.0
    %1381 = vmatprep.subr.mxu0 0.0
    %1382 = vmatpush1.msra.mxu0 0.0
    %1383 = vmatprep.subr.mxu0 0.0
    %1384 = vmatpush1.msra.mxu0 0.0
    %1385 = vmatprep.subr.mxu0 0.0
    %1386 = vmatpush1.msra.mxu0 0.0
    %1387 = vmatprep.subr.mxu0 0.0
    %1388 = vmatpush1.msra.mxu0 0.0
    %1389 = vmatprep.subr.mxu0 0.0
    %1390 = vmatpush1.msra.mxu0 0.0
    %1391 = vmatprep.subr.mxu0 0.0
    %1392 = vmatpush1.msra.mxu0 0.0
    %1393 = vmatprep.subr.mxu0 0.0
    %1394 = vmatpush1.msra.mxu0 0.0
    %1395 = vmatprep.subr.mxu0 0.0
    %1396 = vmatpush1.msra.mxu0 0.0
    %1397 = vmatprep.subr.mxu0 0.0
    %1398 = vmatpush1.msra.mxu0 0.0
    %1399 = vmatprep.subr.mxu0 0.0
    %1400 = vmatpush1.msra.mxu0 0.0
    %1401 = vmatprep.subr.mxu0 0.0
    %1402 = vmatpush1.msra.mxu0 0.0
    %1403 = vmatprep.subr.mxu0 0.0
    %1404 = vmatpush1.msra.mxu0 0.0
    %1405 = vmatprep.subr.mxu0 0.0
    %1406 = vmatpush1.msra.mxu0 0.0
    %1407 = vmatprep.subr.mxu0 0.0
    %1408 = vmatpush1.msra.mxu0 0.0
    %1409 = vmatprep.subr.mxu0 0.0
    %1410 = vmatpush1.msra.mxu0 0.0
    %1411 = vmatprep.subr.mxu0 0.0
    %1412 = vmatpush1.msra.mxu0 0.0
    %1413 = vmatprep.subr.mxu0 0.0
    %1414 = vmatpush1.msra.mxu0 0.0
    %1415 = vmatprep.subr.mxu0 0.0
    %1416 = vmatpush1.msra.mxu0 0.0
    %1417 = vmatprep.subr.mxu0 0.0
    %1418 = vmatpush1.msra.mxu0 0.0
    %1419 = vmatprep.subr.mxu0 0.0
    %1420 = vmatpush1.msra.mxu0 0.0
    %1421 = vmatprep.subr.mxu0 0.0
    %1422 = vmatpush1.msra.mxu0 0.0
    %1423 = vmatprep.subr.mxu0 0.0
    %1424 = vmatpush1.msra.mxu0 0.0
    %1425 = vmatprep.subr.mxu0 0.0
    %1426 = vmatpush1.msra.mxu0 0.0
    %1427 = vmatprep.subr.mxu0 0.0
    %1428 = vmatpush1.msra.mxu0 0.0
    %1429 = vmatprep.subr.mxu0 0.0
    %1430 = vmatpush1.msra.mxu0 0.0
    %1431 = vmatprep.mubr.f32.mxu0 0.0
    %1432 = vmatmul.mubr.f32.gmra.mrb[0].mxu0 %v1362
    %v1433 = vpop.f32.mrb[0].mxu0
    %v1434 = vadd.f32 0.0, %v1433
    %v1435 = vpop.f32.mrb[0].mxu0
    %1436 = vmatprep.mubr.f32.mxu0 0.0
    %1437 = vmatmul.mubr.f32.gmra.mrb[0].mxu0 %v1365
    %v1438 = vpop.f32.mrb[0].mxu0
    %v1439 = vadd.f32 0.0, %v1438
    %v1440 = vpop.f32.mrb[0].mxu0
    %1441 = vdwg.mxu0
    %v1442 = vmul.f32 %v1434, %v556
    %v1443 = vmul.f32 %v1439, %v556
    %v1444 = vadd.f32 %v1442, 0.0
    %v1445 = vadd.f32 %v1443, 0.0
    %1446 = vset.pattern.permute.xlu0 1
    %1447 = vperm.xlu0 %1446, %v1275
    %v1448 = vpop.permute.xlu0 %1447
    %1450 = vset.pattern.permute.xlu0 1
    %1451 = vperm.xlu0 %1450, %v1280
    %v1452 = vpop.permute.xlu0 %1451
    %v1454 = vlaneseq
    %v1455 = vshrl.u32 %v1454, 7
    %v1456 = vsub.s32 1, %v1455
    %v1457 = vrot.slane %v1299, %v1456
    %v1458 = vadd.f32 %v1448, %v1457
    %v1459 = vadd.f32 %v1452, %v1457
    %vm1460 = vcmp.gt.f32.partialorder %v1458, 0.0
    %vm1461 = vcmp.gt.f32.partialorder %v1459, 0.0
    %v1462 = vmul.f32 %v1458, 0.2
    %v1463 = vmul.f32 %v1459, 0.2
    %v1464 = vsel %vm1460, %v1458, %v1462
    %v1465 = vsel %vm1461, %v1459, %v1463
    %v1466 = vadd.f32 %v1464, %v47
    %v1467 = vadd.f32 %v1465, %v48
    %v1468 = vsel %vm58, %v1466, -inf
    %1469 = vmax.xlane.f32.xlu0 %v1468
    %v1470 = vpop.xlane.xlu0 %1469
    %v1471 = vsel %vm58, %v1467, -inf
    %1472 = vmax.xlane.f32.xlu0 %v1471
    %v1473 = vpop.xlane.xlu0 %1472
    %v1474 = vsub.f32 %v1466, %v1470
    %v1475 = vsub.f32 %v1467, %v1473
    %v1476 = vmul.f32 %v1474, 1.442695
    %v1477 = vpow.pop %v1476
    %v1478 = vmul.f32 %v1475, 1.442695
    %v1479 = vpow.pop %v1478
    %v1480 = vsel %vm58, %v1477, 0.0
    %1481 = vadd.xlane.f32.xlu0 %v1480
    %v1482 = vpop.xlane.xlu0 %1481
    %v1483 = vsel %vm58, %v1479, 0.0
    %1484 = vadd.xlane.f32.xlu0 %v1483
    %v1485 = vpop.xlane.xlu0 %1484
    %v1486 = vrcp.pop %v1482
    %v1487 = vrcp.pop %v1485
    %v1488 = vmul.f32 %v1477, %v1486
    %v1489 = vmul.f32 %v1479, %v1487
    %v1491 = vsel %vm58, %v1488, 0
    %v1494 = vsel %vm58, %v1489, 0
    %1496 = vmatprep.subr.mxu0 0.0
    %1497 = vmatpush1.msra.mxu0 %v1109
    %1498 = vmatprep.subr.mxu0 0.0
    %1499 = vmatpush1.msra.mxu0 %v1114
    %1500 = vmatprep.subr.mxu0 0.0
    %1501 = vmatpush1.msra.mxu0 0.0
    %1502 = vmatprep.subr.mxu0 0.0
    %1503 = vmatpush1.msra.mxu0 0.0
    %1504 = vmatprep.subr.mxu0 0.0
    %1505 = vmatpush1.msra.mxu0 0.0
    %1506 = vmatprep.subr.mxu0 0.0
    %1507 = vmatpush1.msra.mxu0 0.0
    %1508 = vmatprep.subr.mxu0 0.0
    %1509 = vmatpush1.msra.mxu0 0.0
    %1510 = vmatprep.subr.mxu0 0.0
    %1511 = vmatpush1.msra.mxu0 0.0
    %1512 = vmatprep.subr.mxu0 0.0
    %1513 = vmatpush1.msra.mxu0 0.0
    %1514 = vmatprep.subr.mxu0 0.0
    %1515 = vmatpush1.msra.mxu0 0.0
    %1516 = vmatprep.subr.mxu0 0.0
    %1517 = vmatpush1.msra.mxu0 0.0
    %1518 = vmatprep.subr.mxu0 0.0
    %1519 = vmatpush1.msra.mxu0 0.0
    %1520 = vmatprep.subr.mxu0 0.0
    %1521 = vmatpush1.msra.mxu0 0.0
    %1522 = vmatprep.subr.mxu0 0.0
    %1523 = vmatpush1.msra.mxu0 0.0
    %1524 = vmatprep.subr.mxu0 0.0
    %1525 = vmatpush1.msra.mxu0 0.0
    %1526 = vmatprep.subr.mxu0 0.0
    %1527 = vmatpush1.msra.mxu0 0.0
    %1528 = vmatprep.subr.mxu0 0.0
    %1529 = vmatpush1.msra.mxu0 0.0
    %1530 = vmatprep.subr.mxu0 0.0
    %1531 = vmatpush1.msra.mxu0 0.0
    %1532 = vmatprep.subr.mxu0 0.0
    %1533 = vmatpush1.msra.mxu0 0.0
    %1534 = vmatprep.subr.mxu0 0.0
    %1535 = vmatpush1.msra.mxu0 0.0
    %1536 = vmatprep.subr.mxu0 0.0
    %1537 = vmatpush1.msra.mxu0 0.0
    %1538 = vmatprep.subr.mxu0 0.0
    %1539 = vmatpush1.msra.mxu0 0.0
    %1540 = vmatprep.subr.mxu0 0.0
    %1541 = vmatpush1.msra.mxu0 0.0
    %1542 = vmatprep.subr.mxu0 0.0
    %1543 = vmatpush1.msra.mxu0 0.0
    %1544 = vmatprep.subr.mxu0 0.0
    %1545 = vmatpush1.msra.mxu0 0.0
    %1546 = vmatprep.subr.mxu0 0.0
    %1547 = vmatpush1.msra.mxu0 0.0
    %1548 = vmatprep.subr.mxu0 0.0
    %1549 = vmatpush1.msra.mxu0 0.0
    %1550 = vmatprep.subr.mxu0 0.0
    %1551 = vmatpush1.msra.mxu0 0.0
    %1552 = vmatprep.subr.mxu0 0.0
    %1553 = vmatpush1.msra.mxu0 0.0
    %1554 = vmatprep.subr.mxu0 0.0
    %1555 = vmatpush1.msra.mxu0 0.0
    %1556 = vmatprep.subr.mxu0 0.0
    %1557 = vmatpush1.msra.mxu0 0.0
    %1558 = vmatprep.subr.mxu0 0.0
    %1559 = vmatpush1.msra.mxu0 0.0
    %1560 = vmatprep.mubr.f32.mxu0 0.0
    %1561 = vmatmul.mubr.f32.gmra.mrb[0].mxu0 %v1491
    %v1562 = vpop.f32.mrb[0].mxu0
    %v1563 = vadd.f32 0.0, %v1562
    %v1564 = vpop.f32.mrb[0].mxu0
    %1565 = vmatprep.mubr.f32.mxu0 0.0
    %1566 = vmatmul.mubr.f32.gmra.mrb[0].mxu0 %v1494
    %v1567 = vpop.f32.mrb[0].mxu0
    %v1568 = vadd.f32 0.0, %v1567
    %v1569 = vpop.f32.mrb[0].mxu0
    %1570 = vdwg.mxu0
    %v1571 = vmul.f32 %v1563, %v693
    %v1572 = vmul.f32 %v1568, %v693
    %v1573 = vadd.f32 %v1444, %v1571
    %v1574 = vadd.f32 %v1445, %v1572
    %1575 = vset.pattern.permute.xlu0 2
    %1576 = vperm.xlu0 %1575, %v1275
    %v1577 = vpop.permute.xlu0 %1576
    %1579 = vset.pattern.permute.xlu0 2
    %1580 = vperm.xlu0 %1579, %v1280
    %v1581 = vpop.permute.xlu0 %1580
    %v1583 = vlaneseq
    %v1584 = vshrl.u32 %v1583, 7
    %v1585 = vsub.s32 2, %v1584
    %v1586 = vrot.slane %v1299, %v1585
    %v1587 = vadd.f32 %v1577, %v1586
    %v1588 = vadd.f32 %v1581, %v1586
    %vm1589 = vcmp.gt.f32.partialorder %v1587, 0.0
    %vm1590 = vcmp.gt.f32.partialorder %v1588, 0.0
    %v1591 = vmul.f32 %v1587, 0.2
    %v1592 = vmul.f32 %v1588, 0.2
    %v1593 = vsel %vm1589, %v1587, %v1591
    %v1594 = vsel %vm1590, %v1588, %v1592
    %v1595 = vadd.f32 %v1593, %v47
    %v1596 = vadd.f32 %v1594, %v48
    %v1597 = vsel %vm58, %v1595, -inf
    %1598 = vmax.xlane.f32.xlu0 %v1597
    %v1599 = vpop.xlane.xlu0 %1598
    %v1600 = vsel %vm58, %v1596, -inf
    %1601 = vmax.xlane.f32.xlu0 %v1600
    %v1602 = vpop.xlane.xlu0 %1601
    %v1603 = vsub.f32 %v1595, %v1599
    %v1604 = vsub.f32 %v1596, %v1602
    %v1605 = vmul.f32 %v1603, 1.442695
    %v1606 = vpow.pop %v1605
    %v1607 = vmul.f32 %v1604, 1.442695
    %v1608 = vpow.pop %v1607
    %v1609 = vsel %vm58, %v1606, 0.0
    %1610 = vadd.xlane.f32.xlu0 %v1609
    %v1611 = vpop.xlane.xlu0 %1610
    %v1612 = vsel %vm58, %v1608, 0.0
    %1613 = vadd.xlane.f32.xlu0 %v1612
    %v1614 = vpop.xlane.xlu0 %1613
    %v1615 = vrcp.pop %v1611
    %v1616 = vrcp.pop %v1614
    %v1617 = vmul.f32 %v1606, %v1615
    %v1618 = vmul.f32 %v1608, %v1616
    %v1620 = vsel %vm58, %v1617, 0
    %v1623 = vsel %vm58, %v1618, 0
    %1625 = vmatprep.subr.mxu0 0.0
    %1626 = vmatpush1.msra.mxu0 %v1109
    %1627 = vmatprep.subr.mxu0 0.0
    %1628 = vmatpush1.msra.mxu0 %v1114
    %1629 = vmatprep.subr.mxu0 0.0
    %1630 = vmatpush1.msra.mxu0 0.0
    %1631 = vmatprep.subr.mxu0 0.0
    %1632 = vmatpush1.msra.mxu0 0.0
    %1633 = vmatprep.subr.mxu0 0.0
    %1634 = vmatpush1.msra.mxu0 0.0
    %1635 = vmatprep.subr.mxu0 0.0
    %1636 = vmatpush1.msra.mxu0 0.0
    %1637 = vmatprep.subr.mxu0 0.0
    %1638 = vmatpush1.msra.mxu0 0.0
    %1639 = vmatprep.subr.mxu0 0.0
    %1640 = vmatpush1.msra.mxu0 0.0
    %1641 = vmatprep.subr.mxu0 0.0
    %1642 = vmatpush1.msra.mxu0 0.0
    %1643 = vmatprep.subr.mxu0 0.0
    %1644 = vmatpush1.msra.mxu0 0.0
    %1645 = vmatprep.subr.mxu0 0.0
    %1646 = vmatpush1.msra.mxu0 0.0
    %1647 = vmatprep.subr.mxu0 0.0
    %1648 = vmatpush1.msra.mxu0 0.0
    %1649 = vmatprep.subr.mxu0 0.0
    %1650 = vmatpush1.msra.mxu0 0.0
    %1651 = vmatprep.subr.mxu0 0.0
    %1652 = vmatpush1.msra.mxu0 0.0
    %1653 = vmatprep.subr.mxu0 0.0
    %1654 = vmatpush1.msra.mxu0 0.0
    %1655 = vmatprep.subr.mxu0 0.0
    %1656 = vmatpush1.msra.mxu0 0.0
    %1657 = vmatprep.subr.mxu0 0.0
    %1658 = vmatpush1.msra.mxu0 0.0
    %1659 = vmatprep.subr.mxu0 0.0
    %1660 = vmatpush1.msra.mxu0 0.0
    %1661 = vmatprep.subr.mxu0 0.0
    %1662 = vmatpush1.msra.mxu0 0.0
    %1663 = vmatprep.subr.mxu0 0.0
    %1664 = vmatpush1.msra.mxu0 0.0
    %1665 = vmatprep.subr.mxu0 0.0
    %1666 = vmatpush1.msra.mxu0 0.0
    %1667 = vmatprep.subr.mxu0 0.0
    %1668 = vmatpush1.msra.mxu0 0.0
    %1669 = vmatprep.subr.mxu0 0.0
    %1670 = vmatpush1.msra.mxu0 0.0
    %1671 = vmatprep.subr.mxu0 0.0
    %1672 = vmatpush1.msra.mxu0 0.0
    %1673 = vmatprep.subr.mxu0 0.0
    %1674 = vmatpush1.msra.mxu0 0.0
    %1675 = vmatprep.subr.mxu0 0.0
    %1676 = vmatpush1.msra.mxu0 0.0
    %1677 = vmatprep.subr.mxu0 0.0
    %1678 = vmatpush1.msra.mxu0 0.0
    %1679 = vmatprep.subr.mxu0 0.0
    %1680 = vmatpush1.msra.mxu0 0.0
    %1681 = vmatprep.subr.mxu0 0.0
    %1682 = vmatpush1.msra.mxu0 0.0
    %1683 = vmatprep.subr.mxu0 0.0
    %1684 = vmatpush1.msra.mxu0 0.0
    %1685 = vmatprep.subr.mxu0 0.0
    %1686 = vmatpush1.msra.mxu0 0.0
    %1687 = vmatprep.subr.mxu0 0.0
    %1688 = vmatpush1.msra.mxu0 0.0
    %1689 = vmatprep.mubr.f32.mxu0 0.0
    %1690 = vmatmul.mubr.f32.gmra.mrb[0].mxu0 %v1620
    %v1691 = vpop.f32.mrb[0].mxu0
    %v1692 = vadd.f32 0.0, %v1691
    %v1693 = vpop.f32.mrb[0].mxu0
    %1694 = vmatprep.mubr.f32.mxu0 0.0
    %1695 = vmatmul.mubr.f32.gmra.mrb[0].mxu0 %v1623
    %v1696 = vpop.f32.mrb[0].mxu0
    %v1697 = vadd.f32 0.0, %v1696
    %v1698 = vpop.f32.mrb[0].mxu0
    %1699 = vdwg.mxu0
    %v1700 = vmul.f32 %v1692, %v830
    %v1701 = vmul.f32 %v1697, %v830
    %v1702 = vadd.f32 %v1573, %v1700
    %v1703 = vadd.f32 %v1574, %v1701
    %1704 = vset.pattern.permute.xlu0 3
    %1705 = vperm.xlu0 %1704, %v1275
    %v1706 = vpop.permute.xlu0 %1705
    %1708 = vset.pattern.permute.xlu0 3
    %1709 = vperm.xlu0 %1708, %v1280
    %v1710 = vpop.permute.xlu0 %1709
    %v1712 = vlaneseq
    %v1713 = vshrl.u32 %v1712, 7
    %v1714 = vsub.s32 3, %v1713
    %v1715 = vrot.slane %v1299, %v1714
    %v1716 = vadd.f32 %v1706, %v1715
    %v1717 = vadd.f32 %v1710, %v1715
    %vm1718 = vcmp.gt.f32.partialorder %v1716, 0.0
    %vm1719 = vcmp.gt.f32.partialorder %v1717, 0.0
    %v1720 = vmul.f32 %v1716, 0.2
    %v1721 = vmul.f32 %v1717, 0.2
    %v1722 = vsel %vm1718, %v1716, %v1720
    %v1723 = vsel %vm1719, %v1717, %v1721
    %v1724 = vadd.f32 %v1722, %v47
    %v1725 = vadd.f32 %v1723, %v48
    %v1726 = vsel %vm58, %v1724, -inf
    %1727 = vmax.xlane.f32.xlu0 %v1726
    %v1728 = vpop.xlane.xlu0 %1727
    %v1729 = vsel %vm58, %v1725, -inf
    %1730 = vmax.xlane.f32.xlu0 %v1729
    %v1731 = vpop.xlane.xlu0 %1730
    %v1732 = vsub.f32 %v1724, %v1728
    %v1733 = vsub.f32 %v1725, %v1731
    %v1734 = vmul.f32 %v1732, 1.442695
    %v1735 = vpow.pop %v1734
    %v1736 = vmul.f32 %v1733, 1.442695
    %v1737 = vpow.pop %v1736
    %v1738 = vsel %vm58, %v1735, 0.0
    %1739 = vadd.xlane.f32.xlu0 %v1738
    %v1740 = vpop.xlane.xlu0 %1739
    %v1741 = vsel %vm58, %v1737, 0.0
    %1742 = vadd.xlane.f32.xlu0 %v1741
    %v1743 = vpop.xlane.xlu0 %1742
    %v1744 = vrcp.pop %v1740
    %v1745 = vrcp.pop %v1743
    %v1746 = vmul.f32 %v1735, %v1744
    %v1747 = vmul.f32 %v1737, %v1745
    %v1749 = vsel %vm58, %v1746, 0
    %v1752 = vsel %vm58, %v1747, 0
    %1754 = vmatprep.subr.mxu0 0.0
    %1755 = vmatpush1.msra.mxu0 %v1109
    %1756 = vmatprep.subr.mxu0 0.0
    %1757 = vmatpush1.msra.mxu0 %v1114
    %1758 = vmatprep.subr.mxu0 0.0
    %1759 = vmatpush1.msra.mxu0 0.0
    %1760 = vmatprep.subr.mxu0 0.0
    %1761 = vmatpush1.msra.mxu0 0.0
    %1762 = vmatprep.subr.mxu0 0.0
    %1763 = vmatpush1.msra.mxu0 0.0
    %1764 = vmatprep.subr.mxu0 0.0
    %1765 = vmatpush1.msra.mxu0 0.0
    %1766 = vmatprep.subr.mxu0 0.0
    %1767 = vmatpush1.msra.mxu0 0.0
    %1768 = vmatprep.subr.mxu0 0.0
    %1769 = vmatpush1.msra.mxu0 0.0
    %1770 = vmatprep.subr.mxu0 0.0
    %1771 = vmatpush1.msra.mxu0 0.0
    %1772 = vmatprep.subr.mxu0 0.0
    %1773 = vmatpush1.msra.mxu0 0.0
    %1774 = vmatprep.subr.mxu0 0.0
    %1775 = vmatpush1.msra.mxu0 0.0
    %1776 = vmatprep.subr.mxu0 0.0
    %1777 = vmatpush1.msra.mxu0 0.0
    %1778 = vmatprep.subr.mxu0 0.0
    %1779 = vmatpush1.msra.mxu0 0.0
    %1780 = vmatprep.subr.mxu0 0.0
    %1781 = vmatpush1.msra.mxu0 0.0
    %1782 = vmatprep.subr.mxu0 0.0
    %1783 = vmatpush1.msra.mxu0 0.0
    %1784 = vmatprep.subr.mxu0 0.0
    %1785 = vmatpush1.msra.mxu0 0.0
    %1786 = vmatprep.subr.mxu0 0.0
    %1787 = vmatpush1.msra.mxu0 0.0
    %1788 = vmatprep.subr.mxu0 0.0
    %1789 = vmatpush1.msra.mxu0 0.0
    %1790 = vmatprep.subr.mxu0 0.0
    %1791 = vmatpush1.msra.mxu0 0.0
    %1792 = vmatprep.subr.mxu0 0.0
    %1793 = vmatpush1.msra.mxu0 0.0
    %1794 = vmatprep.subr.mxu0 0.0
    %1795 = vmatpush1.msra.mxu0 0.0
    %1796 = vmatprep.subr.mxu0 0.0
    %1797 = vmatpush1.msra.mxu0 0.0
    %1798 = vmatprep.subr.mxu0 0.0
    %1799 = vmatpush1.msra.mxu0 0.0
    %1800 = vmatprep.subr.mxu0 0.0
    %1801 = vmatpush1.msra.mxu0 0.0
    %1802 = vmatprep.subr.mxu0 0.0
    %1803 = vmatpush1.msra.mxu0 0.0
    %1804 = vmatprep.subr.mxu0 0.0
    %1805 = vmatpush1.msra.mxu0 0.0
    %1806 = vmatprep.subr.mxu0 0.0
    %1807 = vmatpush1.msra.mxu0 0.0
    %1808 = vmatprep.subr.mxu0 0.0
    %1809 = vmatpush1.msra.mxu0 0.0
    %1810 = vmatprep.subr.mxu0 0.0
    %1811 = vmatpush1.msra.mxu0 0.0
    %1812 = vmatprep.subr.mxu0 0.0
    %1813 = vmatpush1.msra.mxu0 0.0
    %1814 = vmatprep.subr.mxu0 0.0
    %1815 = vmatpush1.msra.mxu0 0.0
    %1816 = vmatprep.subr.mxu0 0.0
    %1817 = vmatpush1.msra.mxu0 0.0
    %1818 = vmatprep.mubr.f32.mxu0 0.0
    %1819 = vmatmul.mubr.f32.gmra.mrb[0].mxu0 %v1749
    %v1820 = vpop.f32.mrb[0].mxu0
    %v1821 = vadd.f32 0.0, %v1820
    %v1822 = vpop.f32.mrb[0].mxu0
    %1823 = vmatprep.mubr.f32.mxu0 0.0
    %1824 = vmatmul.mubr.f32.gmra.mrb[0].mxu0 %v1752
    %v1825 = vpop.f32.mrb[0].mxu0
    %v1826 = vadd.f32 0.0, %v1825
    %v1827 = vpop.f32.mrb[0].mxu0
    %1828 = vdwg.mxu0
    %v1829 = vmul.f32 %v1821, %v967
    %v1830 = vmul.f32 %v1826, %v967
    %v1831 = vadd.f32 %v1702, %v1829
    %v1832 = vadd.f32 %v1703, %v1830
    %s1833 = scalar_lea.vmem %s8, 1
    %v1834 = vld [vmem:[%s1833] sm:$0x1]
    %v1836 = vlaneseq
    %v1837 = vshrl.u32 %v1836, 7
    %v1838 = vsub.s32 0, %v1837
    %v1839 = vrot.slane %v1834, %v1838
    %v1841 = vadd.f32 %v1831, %v1839
    %v1842 = vadd.f32 %v1832, %v1839
    %v1843 = vadd.f32 %v1841, %v1029
    %v1844 = vadd.f32 %v1842, %v1030
    %v1845 = vsel %vm146, %v1843, 0.0
    %1846 = vadd.xlane.f32.xlu0 %v1845
    %v1847 = vpop.xlane.xlu0 %1846
    %v1848 = vsel %vm146, %v1844, 0.0
    %1849 = vadd.xlane.f32.xlu0 %v1848
    %v1850 = vpop.xlane.xlu0 %1849
    %v1851 = vmul.f32 %v1847, %v990
    %v1852 = vmul.f32 %v1850, %v990
    %v1853 = vsub.f32 %v1843, %v1851
    %v1854 = vsub.f32 %v1844, %v1852
    %v1855 = vmul.f32 %v1853, %v1853
    %v1856 = vmul.f32 %v1854, %v1854
    %v1857 = vsel %vm146, %v1855, 0.0
    %1858 = vadd.xlane.f32.xlu0 %v1857
    %v1859 = vpop.xlane.xlu0 %1858
    %v1860 = vsel %vm146, %v1856, 0.0
    %1861 = vadd.xlane.f32.xlu0 %v1860
    %v1862 = vpop.xlane.xlu0 %1861
    %v1863 = vmul.f32 %v1859, %v990
    %v1864 = vmul.f32 %v1862, %v990
    %v1865 = vadd.f32 %v1863, 1e-05
    %v1866 = vadd.f32 %v1864, 1e-05
    %v1867 = vrsqrt.pop %v1865
    %v1868 = vrsqrt.pop %v1866
    %v1869 = vmul.f32 %v1853, %v1867
    %v1870 = vmul.f32 %v1854, %v1868
    %s1871 = scalar_lea.vmem %s9, 1
    %v1872 = vld [vmem:[%s1871] sm:$0x1]
    %v1874 = vlaneseq
    %v1875 = vshrl.u32 %v1874, 7
    %v1876 = vsub.s32 0, %v1875
    %v1877 = vrot.slane %v1872, %v1876
    %v1879 = vmul.f32 %v1869, %v1877
    %v1880 = vmul.f32 %v1870, %v1877
    %s1881 = scalar_lea.vmem %s10, 1
    %v1882 = vld [vmem:[%s1881] sm:$0x1]
    %v1884 = vlaneseq
    %v1885 = vshrl.u32 %v1884, 7
    %v1886 = vsub.s32 0, %v1885
    %v1887 = vrot.slane %v1882, %v1886
    %v1889 = vadd.f32 %v1879, %v1887
    %v1890 = vadd.f32 %v1880, %v1887
    %v1891 = vmax.f32 %v1889, 0.0
    %v1892 = vmax.f32 %v1890, 0.0
    %s1893 = scalar_lea.vmem %s5, 64
    %v1894 = vld [vmem:[%s1893] sm:$0xff]
    %v1895 = vld [vmem:[%s1893 + $0x8] sm:$0xff]
    %v1896 = vld [vmem:[%s1893 + $0x10] sm:$0xff]
    %v1897 = vld [vmem:[%s1893 + $0x18] sm:$0xff]
    %v1899 = vsel %vm146, %v1891, 0
    %v1902 = vsel %vm146, %v1892, 0
    %1904 = vmatprep.subr.mxu0 0.0
    %1905 = vmatpush1.msra.mxu0 %v1894
    %1906 = vmatprep.subr.mxu0 0.0
    %1907 = vmatpush1.msra.mxu0 %v1895
    %1908 = vmatprep.subr.mxu0 0.0
    %1909 = vmatpush1.msra.mxu0 %v1896
    %1910 = vmatprep.subr.mxu0 0.0
    %1911 = vmatpush1.msra.mxu0 %v1897
    %1912 = vmatprep.subr.mxu0 0.0
    %1913 = vmatpush1.msra.mxu0 0.0
    %1914 = vmatprep.subr.mxu0 0.0
    %1915 = vmatpush1.msra.mxu0 0.0
    %1916 = vmatprep.subr.mxu0 0.0
    %1917 = vmatpush1.msra.mxu0 0.0
    %1918 = vmatprep.subr.mxu0 0.0
    %1919 = vmatpush1.msra.mxu0 0.0
    %1920 = vmatprep.subr.mxu0 0.0
    %1921 = vmatpush1.msra.mxu0 0.0
    %1922 = vmatprep.subr.mxu0 0.0
    %1923 = vmatpush1.msra.mxu0 0.0
    %1924 = vmatprep.subr.mxu0 0.0
    %1925 = vmatpush1.msra.mxu0 0.0
    %1926 = vmatprep.subr.mxu0 0.0
    %1927 = vmatpush1.msra.mxu0 0.0
    %1928 = vmatprep.subr.mxu0 0.0
    %1929 = vmatpush1.msra.mxu0 0.0
    %1930 = vmatprep.subr.mxu0 0.0
    %1931 = vmatpush1.msra.mxu0 0.0
    %1932 = vmatprep.subr.mxu0 0.0
    %1933 = vmatpush1.msra.mxu0 0.0
    %1934 = vmatprep.subr.mxu0 0.0
    %1935 = vmatpush1.msra.mxu0 0.0
    %1936 = vmatprep.subr.mxu0 0.0
    %1937 = vmatpush1.msra.mxu0 0.0
    %1938 = vmatprep.subr.mxu0 0.0
    %1939 = vmatpush1.msra.mxu0 0.0
    %1940 = vmatprep.subr.mxu0 0.0
    %1941 = vmatpush1.msra.mxu0 0.0
    %1942 = vmatprep.subr.mxu0 0.0
    %1943 = vmatpush1.msra.mxu0 0.0
    %1944 = vmatprep.subr.mxu0 0.0
    %1945 = vmatpush1.msra.mxu0 0.0
    %1946 = vmatprep.subr.mxu0 0.0
    %1947 = vmatpush1.msra.mxu0 0.0
    %1948 = vmatprep.subr.mxu0 0.0
    %1949 = vmatpush1.msra.mxu0 0.0
    %1950 = vmatprep.subr.mxu0 0.0
    %1951 = vmatpush1.msra.mxu0 0.0
    %1952 = vmatprep.subr.mxu0 0.0
    %1953 = vmatpush1.msra.mxu0 0.0
    %1954 = vmatprep.subr.mxu0 0.0
    %1955 = vmatpush1.msra.mxu0 0.0
    %1956 = vmatprep.subr.mxu0 0.0
    %1957 = vmatpush1.msra.mxu0 0.0
    %1958 = vmatprep.subr.mxu0 0.0
    %1959 = vmatpush1.msra.mxu0 0.0
    %1960 = vmatprep.subr.mxu0 0.0
    %1961 = vmatpush1.msra.mxu0 0.0
    %1962 = vmatprep.subr.mxu0 0.0
    %1963 = vmatpush1.msra.mxu0 0.0
    %1964 = vmatprep.subr.mxu0 0.0
    %1965 = vmatpush1.msra.mxu0 0.0
    %1966 = vmatprep.subr.mxu0 0.0
    %1967 = vmatpush1.msra.mxu0 0.0
    %1968 = vmatprep.mubr.f32.mxu0 0.0
    %1969 = vmatmul.mubr.f32.gmra.mrb[0].mxu0 %v1899
    %v1970 = vpop.f32.mrb[0].mxu0
    %v1971 = vadd.f32 0.0, %v1970
    %v1972 = vpop.f32.mrb[0].mxu0
    %1973 = vmatprep.mubr.f32.mxu0 0.0
    %1974 = vmatmul.mubr.f32.gmra.mrb[0].mxu0 %v1902
    %v1975 = vpop.f32.mrb[0].mxu0
    %v1976 = vadd.f32 0.0, %v1975
    %v1977 = vpop.f32.mrb[0].mxu0
    %1978 = vdwg.mxu0
    %s1979 = scalar_lea.vmem %s6, 64
    %v1980 = vld [vmem:[%s1979] sm:$0xff]
    %v1981 = vld [vmem:[%s1979 + $0x8] sm:$0xff]
    %v1982 = vld [vmem:[%s1979 + $0x10] sm:$0xff]
    %v1983 = vld [vmem:[%s1979 + $0x18] sm:$0xff]
    %v1985 = vsel %vm146, %v1971, 0
    %v1988 = vsel %vm146, %v1976, 0
    %1990 = vmatprep.subr.mxu0 0.0
    %1991 = vmatpush1.msra.mxu0 %v1980
    %1992 = vmatprep.subr.mxu0 0.0
    %1993 = vmatpush1.msra.mxu0 %v1981
    %1994 = vmatprep.subr.mxu0 0.0
    %1995 = vmatpush1.msra.mxu0 %v1982
    %1996 = vmatprep.subr.mxu0 0.0
    %1997 = vmatpush1.msra.mxu0 %v1983
    %1998 = vmatprep.subr.mxu0 0.0
    %1999 = vmatpush1.msra.mxu0 0.0
    %2000 = vmatprep.subr.mxu0 0.0
    %2001 = vmatpush1.msra.mxu0 0.0
    %2002 = vmatprep.subr.mxu0 0.0
    %2003 = vmatpush1.msra.mxu0 0.0
    %2004 = vmatprep.subr.mxu0 0.0
    %2005 = vmatpush1.msra.mxu0 0.0
    %2006 = vmatprep.subr.mxu0 0.0
    %2007 = vmatpush1.msra.mxu0 0.0
    %2008 = vmatprep.subr.mxu0 0.0
    %2009 = vmatpush1.msra.mxu0 0.0
    %2010 = vmatprep.subr.mxu0 0.0
    %2011 = vmatpush1.msra.mxu0 0.0
    %2012 = vmatprep.subr.mxu0 0.0
    %2013 = vmatpush1.msra.mxu0 0.0
    %2014 = vmatprep.subr.mxu0 0.0
    %2015 = vmatpush1.msra.mxu0 0.0
    %2016 = vmatprep.subr.mxu0 0.0
    %2017 = vmatpush1.msra.mxu0 0.0
    %2018 = vmatprep.subr.mxu0 0.0
    %2019 = vmatpush1.msra.mxu0 0.0
    %2020 = vmatprep.subr.mxu0 0.0
    %2021 = vmatpush1.msra.mxu0 0.0
    %2022 = vmatprep.subr.mxu0 0.0
    %2023 = vmatpush1.msra.mxu0 0.0
    %2024 = vmatprep.subr.mxu0 0.0
    %2025 = vmatpush1.msra.mxu0 0.0
    %2026 = vmatprep.subr.mxu0 0.0
    %2027 = vmatpush1.msra.mxu0 0.0
    %2028 = vmatprep.subr.mxu0 0.0
    %2029 = vmatpush1.msra.mxu0 0.0
    %2030 = vmatprep.subr.mxu0 0.0
    %2031 = vmatpush1.msra.mxu0 0.0
    %2032 = vmatprep.subr.mxu0 0.0
    %2033 = vmatpush1.msra.mxu0 0.0
    %2034 = vmatprep.subr.mxu0 0.0
    %2035 = vmatpush1.msra.mxu0 0.0
    %2036 = vmatprep.subr.mxu0 0.0
    %2037 = vmatpush1.msra.mxu0 0.0
    %2038 = vmatprep.subr.mxu0 0.0
    %2039 = vmatpush1.msra.mxu0 0.0
    %2040 = vmatprep.subr.mxu0 0.0
    %2041 = vmatpush1.msra.mxu0 0.0
    %2042 = vmatprep.subr.mxu0 0.0
    %2043 = vmatpush1.msra.mxu0 0.0
    %2044 = vmatprep.subr.mxu0 0.0
    %2045 = vmatpush1.msra.mxu0 0.0
    %2046 = vmatprep.subr.mxu0 0.0
    %2047 = vmatpush1.msra.mxu0 0.0
    %2048 = vmatprep.subr.mxu0 0.0
    %2049 = vmatpush1.msra.mxu0 0.0
    %2050 = vmatprep.subr.mxu0 0.0
    %2051 = vmatpush1.msra.mxu0 0.0
    %2052 = vmatprep.subr.mxu0 0.0
    %2053 = vmatpush1.msra.mxu0 0.0
    %2054 = vmatprep.mubr.f32.mxu0 0.0
    %2055 = vmatmul.mubr.f32.gmra.mrb[0].mxu0 %v1985
    %v2056 = vpop.f32.mrb[0].mxu0
    %v2057 = vadd.f32 0.0, %v2056
    %v2058 = vpop.f32.mrb[0].mxu0
    %2059 = vmatprep.mubr.f32.mxu0 0.0
    %2060 = vmatmul.mubr.f32.gmra.mrb[0].mxu0 %v1988
    %v2061 = vpop.f32.mrb[0].mxu0
    %v2062 = vadd.f32 0.0, %v2061
    %v2063 = vpop.f32.mrb[0].mxu0
    %2064 = vdwg.mxu0
    %s2065 = scalar_lea.vmem %s7, 64
    %v2066 = vld [vmem:[%s2065] sm:$0xff]
    %v2067 = vld [vmem:[%s2065 + $0x8] sm:$0xff]
    %v2068 = vld [vmem:[%s2065 + $0x10] sm:$0xff]
    %v2069 = vld [vmem:[%s2065 + $0x18] sm:$0xff]
    %2070 = vmatprep.subr.mxu0 0.0
    %2071 = vmatpush1.msra.mxu0 %v2066
    %2072 = vmatprep.subr.mxu0 0.0
    %2073 = vmatpush1.msra.mxu0 %v2067
    %2074 = vmatprep.subr.mxu0 0.0
    %2075 = vmatpush1.msra.mxu0 %v2068
    %2076 = vmatprep.subr.mxu0 0.0
    %2077 = vmatpush1.msra.mxu0 %v2069
    %2078 = vmatprep.subr.mxu0 0.0
    %2079 = vmatpush1.msra.mxu0 0.0
    %2080 = vmatprep.subr.mxu0 0.0
    %2081 = vmatpush1.msra.mxu0 0.0
    %2082 = vmatprep.subr.mxu0 0.0
    %2083 = vmatpush1.msra.mxu0 0.0
    %2084 = vmatprep.subr.mxu0 0.0
    %2085 = vmatpush1.msra.mxu0 0.0
    %2086 = vmatprep.subr.mxu0 0.0
    %2087 = vmatpush1.msra.mxu0 0.0
    %2088 = vmatprep.subr.mxu0 0.0
    %2089 = vmatpush1.msra.mxu0 0.0
    %2090 = vmatprep.subr.mxu0 0.0
    %2091 = vmatpush1.msra.mxu0 0.0
    %2092 = vmatprep.subr.mxu0 0.0
    %2093 = vmatpush1.msra.mxu0 0.0
    %2094 = vmatprep.subr.mxu0 0.0
    %2095 = vmatpush1.msra.mxu0 0.0
    %2096 = vmatprep.subr.mxu0 0.0
    %2097 = vmatpush1.msra.mxu0 0.0
    %2098 = vmatprep.subr.mxu0 0.0
    %2099 = vmatpush1.msra.mxu0 0.0
    %2100 = vmatprep.subr.mxu0 0.0
    %2101 = vmatpush1.msra.mxu0 0.0
    %2102 = vmatprep.subr.mxu0 0.0
    %2103 = vmatpush1.msra.mxu0 0.0
    %2104 = vmatprep.subr.mxu0 0.0
    %2105 = vmatpush1.msra.mxu0 0.0
    %2106 = vmatprep.subr.mxu0 0.0
    %2107 = vmatpush1.msra.mxu0 0.0
    %2108 = vmatprep.subr.mxu0 0.0
    %2109 = vmatpush1.msra.mxu0 0.0
    %2110 = vmatprep.subr.mxu0 0.0
    %2111 = vmatpush1.msra.mxu0 0.0
    %2112 = vmatprep.subr.mxu0 0.0
    %2113 = vmatpush1.msra.mxu0 0.0
    %2114 = vmatprep.subr.mxu0 0.0
    %2115 = vmatpush1.msra.mxu0 0.0
    %2116 = vmatprep.subr.mxu0 0.0
    %2117 = vmatpush1.msra.mxu0 0.0
    %2118 = vmatprep.subr.mxu0 0.0
    %2119 = vmatpush1.msra.mxu0 0.0
    %2120 = vmatprep.subr.mxu0 0.0
    %2121 = vmatpush1.msra.mxu0 0.0
    %2122 = vmatprep.subr.mxu0 0.0
    %2123 = vmatpush1.msra.mxu0 0.0
    %2124 = vmatprep.subr.mxu0 0.0
    %2125 = vmatpush1.msra.mxu0 0.0
    %2126 = vmatprep.subr.mxu0 0.0
    %2127 = vmatpush1.msra.mxu0 0.0
    %2128 = vmatprep.subr.mxu0 0.0
    %2129 = vmatpush1.msra.mxu0 0.0
    %2130 = vmatprep.subr.mxu0 0.0
    %2131 = vmatpush1.msra.mxu0 0.0
    %2132 = vmatprep.subr.mxu0 0.0
    %2133 = vmatpush1.msra.mxu0 0.0
    %2134 = vmatprep.mubr.f32.mxu0 0.0
    %2135 = vmatmul.mubr.f32.gmra.mrb[0].mxu0 %v1985
    %v2136 = vpop.f32.mrb[0].mxu0
    %v2137 = vadd.f32 0.0, %v2136
    %v2138 = vpop.f32.mrb[0].mxu0
    %2139 = vmatprep.mubr.f32.mxu0 0.0
    %2140 = vmatmul.mubr.f32.gmra.mrb[0].mxu0 %v1988
    %v2141 = vpop.f32.mrb[0].mxu0
    %v2142 = vadd.f32 0.0, %v2141
    %v2143 = vpop.f32.mrb[0].mxu0
    %2144 = vdwg.mxu0
    %2145 = vxpose.xlu0.b32.start [1/16] %v2057, 128
    %2146 = vxpose.xlu0.b32.cont [2/16] %v2062, 128
    %2147 = vxpose.xlu0.b32.cont [3/16] 0.0, 128
    %2148 = vxpose.xlu0.b32.cont [4/16] 0.0, 128
    %2149 = vxpose.xlu0.b32.cont [5/16] 0.0, 128
    %2150 = vxpose.xlu0.b32.cont [6/16] 0.0, 128
    %2151 = vxpose.xlu0.b32.cont [7/16] 0.0, 128
    %2152 = vxpose.xlu0.b32.cont [8/16] 0.0, 128
    %2153 = vxpose.xlu0.b32.cont [9/16] 0.0, 128
    %2154 = vxpose.xlu0.b32.cont [10/16] 0.0, 128
    %2155 = vxpose.xlu0.b32.cont [11/16] 0.0, 128
    %2156 = vxpose.xlu0.b32.cont [12/16] 0.0, 128
    %2157 = vxpose.xlu0.b32.cont [13/16] 0.0, 128
    %2158 = vxpose.xlu0.b32.cont [14/16] 0.0, 128
    %2159 = vxpose.xlu0.b32.cont [15/16] 0.0, 128
    %2160 = vxpose.xlu0.b32.end [16/16] 0.0, 128
    %v2161 = vpop.trf.xlu0
    %v2162 = vpop.trf.xlu0
    %v2163 = vpop.trf.xlu0
    %v2164 = vpop.trf.xlu0
    %v2165 = vpop.trf.xlu0
    %v2166 = vpop.trf.xlu0
    %v2167 = vpop.trf.xlu0
    %v2168 = vpop.trf.xlu0
    %v2169 = vpop.trf.xlu0
    %v2170 = vpop.trf.xlu0
    %v2171 = vpop.trf.xlu0
    %v2172 = vpop.trf.xlu0
    %v2173 = vpop.trf.xlu0
    %v2174 = vpop.trf.xlu0
    %v2175 = vpop.trf.xlu0
    %v2176 = vpop.trf.xlu0
    %2178 = vset.pattern.permute.xlu0 0
    %2179 = vperm.xlu0 %2178, %v2137
    %v2180 = vpop.permute.xlu0 %2179
    %2183 = vset.pattern.permute.xlu0 0
    %2184 = vperm.xlu0 %2183, %v2142
    %v2185 = vpop.permute.xlu0 %2184
    %v2187 = vlaneseq
    %v2188 = vshrl.u32 %v2187, 7
    %v2189 = vsub.s32 0, %v2188
    %v2190 = vrot.slane %v2161, %v2189
    %v2191 = vadd.f32 %v2180, %v2190
    %v2192 = vadd.f32 %v2185, %v2190
    %vm2193 = vcmp.gt.f32.partialorder %v2191, 0.0
    %vm2194 = vcmp.gt.f32.partialorder %v2192, 0.0
    %v2195 = vmul.f32 %v2191, 0.2
    %v2196 = vmul.f32 %v2192, 0.2
    %v2197 = vsel %vm2193, %v2191, %v2195
    %v2198 = vsel %vm2194, %v2192, %v2196
    %v2199 = vadd.f32 %v2197, %v47
    %v2200 = vadd.f32 %v2198, %v48
    %v2201 = vsel %vm58, %v2199, -inf
    %2202 = vmax.xlane.f32.xlu0 %v2201
    %v2203 = vpop.xlane.xlu0 %2202
    %v2204 = vsel %vm58, %v2200, -inf
    %2205 = vmax.xlane.f32.xlu0 %v2204
    %v2206 = vpop.xlane.xlu0 %2205
    %v2207 = vsub.f32 %v2199, %v2203
    %v2208 = vsub.f32 %v2200, %v2206
    %v2209 = vmul.f32 %v2207, 1.442695
    %v2210 = vpow.pop %v2209
    %v2211 = vmul.f32 %v2208, 1.442695
    %v2212 = vpow.pop %v2211
    %v2213 = vsel %vm58, %v2210, 0.0
    %2214 = vadd.xlane.f32.xlu0 %v2213
    %v2215 = vpop.xlane.xlu0 %2214
    %v2216 = vsel %vm58, %v2212, 0.0
    %2217 = vadd.xlane.f32.xlu0 %v2216
    %v2218 = vpop.xlane.xlu0 %2217
    %v2219 = vrcp.pop %v2215
    %v2220 = vrcp.pop %v2218
    %v2221 = vmul.f32 %v2210, %v2219
    %v2222 = vmul.f32 %v2212, %v2220
    %v2224 = vsel %vm58, %v2221, 0
    %v2227 = vsel %vm58, %v2222, 0
    %2229 = vmatprep.subr.mxu0 0.0
    %2230 = vmatpush1.msra.mxu0 %v1971
    %2231 = vmatprep.subr.mxu0 0.0
    %2232 = vmatpush1.msra.mxu0 %v1976
    %2233 = vmatprep.subr.mxu0 0.0
    %2234 = vmatpush1.msra.mxu0 0.0
    %2235 = vmatprep.subr.mxu0 0.0
    %2236 = vmatpush1.msra.mxu0 0.0
    %2237 = vmatprep.subr.mxu0 0.0
    %2238 = vmatpush1.msra.mxu0 0.0
    %2239 = vmatprep.subr.mxu0 0.0
    %2240 = vmatpush1.msra.mxu0 0.0
    %2241 = vmatprep.subr.mxu0 0.0
    %2242 = vmatpush1.msra.mxu0 0.0
    %2243 = vmatprep.subr.mxu0 0.0
    %2244 = vmatpush1.msra.mxu0 0.0
    %2245 = vmatprep.subr.mxu0 0.0
    %2246 = vmatpush1.msra.mxu0 0.0
    %2247 = vmatprep.subr.mxu0 0.0
    %2248 = vmatpush1.msra.mxu0 0.0
    %2249 = vmatprep.subr.mxu0 0.0
    %2250 = vmatpush1.msra.mxu0 0.0
    %2251 = vmatprep.subr.mxu0 0.0
    %2252 = vmatpush1.msra.mxu0 0.0
    %2253 = vmatprep.subr.mxu0 0.0
    %2254 = vmatpush1.msra.mxu0 0.0
    %2255 = vmatprep.subr.mxu0 0.0
    %2256 = vmatpush1.msra.mxu0 0.0
    %2257 = vmatprep.subr.mxu0 0.0
    %2258 = vmatpush1.msra.mxu0 0.0
    %2259 = vmatprep.subr.mxu0 0.0
    %2260 = vmatpush1.msra.mxu0 0.0
    %2261 = vmatprep.subr.mxu0 0.0
    %2262 = vmatpush1.msra.mxu0 0.0
    %2263 = vmatprep.subr.mxu0 0.0
    %2264 = vmatpush1.msra.mxu0 0.0
    %2265 = vmatprep.subr.mxu0 0.0
    %2266 = vmatpush1.msra.mxu0 0.0
    %2267 = vmatprep.subr.mxu0 0.0
    %2268 = vmatpush1.msra.mxu0 0.0
    %2269 = vmatprep.subr.mxu0 0.0
    %2270 = vmatpush1.msra.mxu0 0.0
    %2271 = vmatprep.subr.mxu0 0.0
    %2272 = vmatpush1.msra.mxu0 0.0
    %2273 = vmatprep.subr.mxu0 0.0
    %2274 = vmatpush1.msra.mxu0 0.0
    %2275 = vmatprep.subr.mxu0 0.0
    %2276 = vmatpush1.msra.mxu0 0.0
    %2277 = vmatprep.subr.mxu0 0.0
    %2278 = vmatpush1.msra.mxu0 0.0
    %2279 = vmatprep.subr.mxu0 0.0
    %2280 = vmatpush1.msra.mxu0 0.0
    %2281 = vmatprep.subr.mxu0 0.0
    %2282 = vmatpush1.msra.mxu0 0.0
    %2283 = vmatprep.subr.mxu0 0.0
    %2284 = vmatpush1.msra.mxu0 0.0
    %2285 = vmatprep.subr.mxu0 0.0
    %2286 = vmatpush1.msra.mxu0 0.0
    %2287 = vmatprep.subr.mxu0 0.0
    %2288 = vmatpush1.msra.mxu0 0.0
    %2289 = vmatprep.subr.mxu0 0.0
    %2290 = vmatpush1.msra.mxu0 0.0
    %2291 = vmatprep.subr.mxu0 0.0
    %2292 = vmatpush1.msra.mxu0 0.0
    %2293 = vmatprep.mubr.f32.mxu0 0.0
    %2294 = vmatmul.mubr.f32.gmra.mrb[0].mxu0 %v2224
    %v2295 = vpop.f32.mrb[0].mxu0
    %v2296 = vadd.f32 0.0, %v2295
    %v2297 = vpop.f32.mrb[0].mxu0
    %2298 = vmatprep.mubr.f32.mxu0 0.0
    %2299 = vmatmul.mubr.f32.gmra.mrb[0].mxu0 %v2227
    %v2300 = vpop.f32.mrb[0].mxu0
    %v2301 = vadd.f32 0.0, %v2300
    %v2302 = vpop.f32.mrb[0].mxu0
    %2303 = vdwg.mxu0
    %v2304 = vmul.f32 %v2296, %v556
    %v2305 = vmul.f32 %v2301, %v556
    %v2306 = vadd.f32 %v2304, 0.0
    %v2307 = vadd.f32 %v2305, 0.0
    %2308 = vset.pattern.permute.xlu0 1
    %2309 = vperm.xlu0 %2308, %v2137
    %v2310 = vpop.permute.xlu0 %2309
    %2312 = vset.pattern.permute.xlu0 1
    %2313 = vperm.xlu0 %2312, %v2142
    %v2314 = vpop.permute.xlu0 %2313
    %v2316 = vlaneseq
    %v2317 = vshrl.u32 %v2316, 7
    %v2318 = vsub.s32 1, %v2317
    %v2319 = vrot.slane %v2161, %v2318
    %v2320 = vadd.f32 %v2310, %v2319
    %v2321 = vadd.f32 %v2314, %v2319
    %vm2322 = vcmp.gt.f32.partialorder %v2320, 0.0
    %vm2323 = vcmp.gt.f32.partialorder %v2321, 0.0
    %v2324 = vmul.f32 %v2320, 0.2
    %v2325 = vmul.f32 %v2321, 0.2
    %v2326 = vsel %vm2322, %v2320, %v2324
    %v2327 = vsel %vm2323, %v2321, %v2325
    %v2328 = vadd.f32 %v2326, %v47
    %v2329 = vadd.f32 %v2327, %v48
    %v2330 = vsel %vm58, %v2328, -inf
    %2331 = vmax.xlane.f32.xlu0 %v2330
    %v2332 = vpop.xlane.xlu0 %2331
    %v2333 = vsel %vm58, %v2329, -inf
    %2334 = vmax.xlane.f32.xlu0 %v2333
    %v2335 = vpop.xlane.xlu0 %2334
    %v2336 = vsub.f32 %v2328, %v2332
    %v2337 = vsub.f32 %v2329, %v2335
    %v2338 = vmul.f32 %v2336, 1.442695
    %v2339 = vpow.pop %v2338
    %v2340 = vmul.f32 %v2337, 1.442695
    %v2341 = vpow.pop %v2340
    %v2342 = vsel %vm58, %v2339, 0.0
    %2343 = vadd.xlane.f32.xlu0 %v2342
    %v2344 = vpop.xlane.xlu0 %2343
    %v2345 = vsel %vm58, %v2341, 0.0
    %2346 = vadd.xlane.f32.xlu0 %v2345
    %v2347 = vpop.xlane.xlu0 %2346
    %v2348 = vrcp.pop %v2344
    %v2349 = vrcp.pop %v2347
    %v2350 = vmul.f32 %v2339, %v2348
    %v2351 = vmul.f32 %v2341, %v2349
    %v2353 = vsel %vm58, %v2350, 0
    %v2356 = vsel %vm58, %v2351, 0
    %2358 = vmatprep.subr.mxu0 0.0
    %2359 = vmatpush1.msra.mxu0 %v1971
    %2360 = vmatprep.subr.mxu0 0.0
    %2361 = vmatpush1.msra.mxu0 %v1976
    %2362 = vmatprep.subr.mxu0 0.0
    %2363 = vmatpush1.msra.mxu0 0.0
    %2364 = vmatprep.subr.mxu0 0.0
    %2365 = vmatpush1.msra.mxu0 0.0
    %2366 = vmatprep.subr.mxu0 0.0
    %2367 = vmatpush1.msra.mxu0 0.0
    %2368 = vmatprep.subr.mxu0 0.0
    %2369 = vmatpush1.msra.mxu0 0.0
    %2370 = vmatprep.subr.mxu0 0.0
    %2371 = vmatpush1.msra.mxu0 0.0
    %2372 = vmatprep.subr.mxu0 0.0
    %2373 = vmatpush1.msra.mxu0 0.0
    %2374 = vmatprep.subr.mxu0 0.0
    %2375 = vmatpush1.msra.mxu0 0.0
    %2376 = vmatprep.subr.mxu0 0.0
    %2377 = vmatpush1.msra.mxu0 0.0
    %2378 = vmatprep.subr.mxu0 0.0
    %2379 = vmatpush1.msra.mxu0 0.0
    %2380 = vmatprep.subr.mxu0 0.0
    %2381 = vmatpush1.msra.mxu0 0.0
    %2382 = vmatprep.subr.mxu0 0.0
    %2383 = vmatpush1.msra.mxu0 0.0
    %2384 = vmatprep.subr.mxu0 0.0
    %2385 = vmatpush1.msra.mxu0 0.0
    %2386 = vmatprep.subr.mxu0 0.0
    %2387 = vmatpush1.msra.mxu0 0.0
    %2388 = vmatprep.subr.mxu0 0.0
    %2389 = vmatpush1.msra.mxu0 0.0
    %2390 = vmatprep.subr.mxu0 0.0
    %2391 = vmatpush1.msra.mxu0 0.0
    %2392 = vmatprep.subr.mxu0 0.0
    %2393 = vmatpush1.msra.mxu0 0.0
    %2394 = vmatprep.subr.mxu0 0.0
    %2395 = vmatpush1.msra.mxu0 0.0
    %2396 = vmatprep.subr.mxu0 0.0
    %2397 = vmatpush1.msra.mxu0 0.0
    %2398 = vmatprep.subr.mxu0 0.0
    %2399 = vmatpush1.msra.mxu0 0.0
    %2400 = vmatprep.subr.mxu0 0.0
    %2401 = vmatpush1.msra.mxu0 0.0
    %2402 = vmatprep.subr.mxu0 0.0
    %2403 = vmatpush1.msra.mxu0 0.0
    %2404 = vmatprep.subr.mxu0 0.0
    %2405 = vmatpush1.msra.mxu0 0.0
    %2406 = vmatprep.subr.mxu0 0.0
    %2407 = vmatpush1.msra.mxu0 0.0
    %2408 = vmatprep.subr.mxu0 0.0
    %2409 = vmatpush1.msra.mxu0 0.0
    %2410 = vmatprep.subr.mxu0 0.0
    %2411 = vmatpush1.msra.mxu0 0.0
    %2412 = vmatprep.subr.mxu0 0.0
    %2413 = vmatpush1.msra.mxu0 0.0
    %2414 = vmatprep.subr.mxu0 0.0
    %2415 = vmatpush1.msra.mxu0 0.0
    %2416 = vmatprep.subr.mxu0 0.0
    %2417 = vmatpush1.msra.mxu0 0.0
    %2418 = vmatprep.subr.mxu0 0.0
    %2419 = vmatpush1.msra.mxu0 0.0
    %2420 = vmatprep.subr.mxu0 0.0
    %2421 = vmatpush1.msra.mxu0 0.0
    %2422 = vmatprep.mubr.f32.mxu0 0.0
    %2423 = vmatmul.mubr.f32.gmra.mrb[0].mxu0 %v2353
    %v2424 = vpop.f32.mrb[0].mxu0
    %v2425 = vadd.f32 0.0, %v2424
    %v2426 = vpop.f32.mrb[0].mxu0
    %2427 = vmatprep.mubr.f32.mxu0 0.0
    %2428 = vmatmul.mubr.f32.gmra.mrb[0].mxu0 %v2356
    %v2429 = vpop.f32.mrb[0].mxu0
    %v2430 = vadd.f32 0.0, %v2429
    %v2431 = vpop.f32.mrb[0].mxu0
    %2432 = vdwg.mxu0
    %v2433 = vmul.f32 %v2425, %v693
    %v2434 = vmul.f32 %v2430, %v693
    %v2435 = vadd.f32 %v2306, %v2433
    %v2436 = vadd.f32 %v2307, %v2434
    %2437 = vset.pattern.permute.xlu0 2
    %2438 = vperm.xlu0 %2437, %v2137
    %v2439 = vpop.permute.xlu0 %2438
    %2441 = vset.pattern.permute.xlu0 2
    %2442 = vperm.xlu0 %2441, %v2142
    %v2443 = vpop.permute.xlu0 %2442
    %v2445 = vlaneseq
    %v2446 = vshrl.u32 %v2445, 7
    %v2447 = vsub.s32 2, %v2446
    %v2448 = vrot.slane %v2161, %v2447
    %v2449 = vadd.f32 %v2439, %v2448
    %v2450 = vadd.f32 %v2443, %v2448
    %vm2451 = vcmp.gt.f32.partialorder %v2449, 0.0
    %vm2452 = vcmp.gt.f32.partialorder %v2450, 0.0
    %v2453 = vmul.f32 %v2449, 0.2
    %v2454 = vmul.f32 %v2450, 0.2
    %v2455 = vsel %vm2451, %v2449, %v2453
    %v2456 = vsel %vm2452, %v2450, %v2454
    %v2457 = vadd.f32 %v2455, %v47
    %v2458 = vadd.f32 %v2456, %v48
    %v2459 = vsel %vm58, %v2457, -inf
    %2460 = vmax.xlane.f32.xlu0 %v2459
    %v2461 = vpop.xlane.xlu0 %2460
    %v2462 = vsel %vm58, %v2458, -inf
    %2463 = vmax.xlane.f32.xlu0 %v2462
    %v2464 = vpop.xlane.xlu0 %2463
    %v2465 = vsub.f32 %v2457, %v2461
    %v2466 = vsub.f32 %v2458, %v2464
    %v2467 = vmul.f32 %v2465, 1.442695
    %v2468 = vpow.pop %v2467
    %v2469 = vmul.f32 %v2466, 1.442695
    %v2470 = vpow.pop %v2469
    %v2471 = vsel %vm58, %v2468, 0.0
    %2472 = vadd.xlane.f32.xlu0 %v2471
    %v2473 = vpop.xlane.xlu0 %2472
    %v2474 = vsel %vm58, %v2470, 0.0
    %2475 = vadd.xlane.f32.xlu0 %v2474
    %v2476 = vpop.xlane.xlu0 %2475
    %v2477 = vrcp.pop %v2473
    %v2478 = vrcp.pop %v2476
    %v2479 = vmul.f32 %v2468, %v2477
    %v2480 = vmul.f32 %v2470, %v2478
    %v2482 = vsel %vm58, %v2479, 0
    %v2485 = vsel %vm58, %v2480, 0
    %2487 = vmatprep.subr.mxu0 0.0
    %2488 = vmatpush1.msra.mxu0 %v1971
    %2489 = vmatprep.subr.mxu0 0.0
    %2490 = vmatpush1.msra.mxu0 %v1976
    %2491 = vmatprep.subr.mxu0 0.0
    %2492 = vmatpush1.msra.mxu0 0.0
    %2493 = vmatprep.subr.mxu0 0.0
    %2494 = vmatpush1.msra.mxu0 0.0
    %2495 = vmatprep.subr.mxu0 0.0
    %2496 = vmatpush1.msra.mxu0 0.0
    %2497 = vmatprep.subr.mxu0 0.0
    %2498 = vmatpush1.msra.mxu0 0.0
    %2499 = vmatprep.subr.mxu0 0.0
    %2500 = vmatpush1.msra.mxu0 0.0
    %2501 = vmatprep.subr.mxu0 0.0
    %2502 = vmatpush1.msra.mxu0 0.0
    %2503 = vmatprep.subr.mxu0 0.0
    %2504 = vmatpush1.msra.mxu0 0.0
    %2505 = vmatprep.subr.mxu0 0.0
    %2506 = vmatpush1.msra.mxu0 0.0
    %2507 = vmatprep.subr.mxu0 0.0
    %2508 = vmatpush1.msra.mxu0 0.0
    %2509 = vmatprep.subr.mxu0 0.0
    %2510 = vmatpush1.msra.mxu0 0.0
    %2511 = vmatprep.subr.mxu0 0.0
    %2512 = vmatpush1.msra.mxu0 0.0
    %2513 = vmatprep.subr.mxu0 0.0
    %2514 = vmatpush1.msra.mxu0 0.0
    %2515 = vmatprep.subr.mxu0 0.0
    %2516 = vmatpush1.msra.mxu0 0.0
    %2517 = vmatprep.subr.mxu0 0.0
    %2518 = vmatpush1.msra.mxu0 0.0
    %2519 = vmatprep.subr.mxu0 0.0
    %2520 = vmatpush1.msra.mxu0 0.0
    %2521 = vmatprep.subr.mxu0 0.0
    %2522 = vmatpush1.msra.mxu0 0.0
    %2523 = vmatprep.subr.mxu0 0.0
    %2524 = vmatpush1.msra.mxu0 0.0
    %2525 = vmatprep.subr.mxu0 0.0
    %2526 = vmatpush1.msra.mxu0 0.0
    %2527 = vmatprep.subr.mxu0 0.0
    %2528 = vmatpush1.msra.mxu0 0.0
    %2529 = vmatprep.subr.mxu0 0.0
    %2530 = vmatpush1.msra.mxu0 0.0
    %2531 = vmatprep.subr.mxu0 0.0
    %2532 = vmatpush1.msra.mxu0 0.0
    %2533 = vmatprep.subr.mxu0 0.0
    %2534 = vmatpush1.msra.mxu0 0.0
    %2535 = vmatprep.subr.mxu0 0.0
    %2536 = vmatpush1.msra.mxu0 0.0
    %2537 = vmatprep.subr.mxu0 0.0
    %2538 = vmatpush1.msra.mxu0 0.0
    %2539 = vmatprep.subr.mxu0 0.0
    %2540 = vmatpush1.msra.mxu0 0.0
    %2541 = vmatprep.subr.mxu0 0.0
    %2542 = vmatpush1.msra.mxu0 0.0
    %2543 = vmatprep.subr.mxu0 0.0
    %2544 = vmatpush1.msra.mxu0 0.0
    %2545 = vmatprep.subr.mxu0 0.0
    %2546 = vmatpush1.msra.mxu0 0.0
    %2547 = vmatprep.subr.mxu0 0.0
    %2548 = vmatpush1.msra.mxu0 0.0
    %2549 = vmatprep.subr.mxu0 0.0
    %2550 = vmatpush1.msra.mxu0 0.0
    %2551 = vmatprep.mubr.f32.mxu0 0.0
    %2552 = vmatmul.mubr.f32.gmra.mrb[0].mxu0 %v2482
    %v2553 = vpop.f32.mrb[0].mxu0
    %v2554 = vadd.f32 0.0, %v2553
    %v2555 = vpop.f32.mrb[0].mxu0
    %2556 = vmatprep.mubr.f32.mxu0 0.0
    %2557 = vmatmul.mubr.f32.gmra.mrb[0].mxu0 %v2485
    %v2558 = vpop.f32.mrb[0].mxu0
    %v2559 = vadd.f32 0.0, %v2558
    %v2560 = vpop.f32.mrb[0].mxu0
    %2561 = vdwg.mxu0
    %v2562 = vmul.f32 %v2554, %v830
    %v2563 = vmul.f32 %v2559, %v830
    %v2564 = vadd.f32 %v2435, %v2562
    %v2565 = vadd.f32 %v2436, %v2563
    %2566 = vset.pattern.permute.xlu0 3
    %2567 = vperm.xlu0 %2566, %v2137
    %v2568 = vpop.permute.xlu0 %2567
    %2570 = vset.pattern.permute.xlu0 3
    %2571 = vperm.xlu0 %2570, %v2142
    %v2572 = vpop.permute.xlu0 %2571
    %v2574 = vlaneseq
    %v2575 = vshrl.u32 %v2574, 7
    %v2576 = vsub.s32 3, %v2575
    %v2577 = vrot.slane %v2161, %v2576
    %v2578 = vadd.f32 %v2568, %v2577
    %v2579 = vadd.f32 %v2572, %v2577
    %vm2580 = vcmp.gt.f32.partialorder %v2578, 0.0
    %vm2581 = vcmp.gt.f32.partialorder %v2579, 0.0
    %v2582 = vmul.f32 %v2578, 0.2
    %v2583 = vmul.f32 %v2579, 0.2
    %v2584 = vsel %vm2580, %v2578, %v2582
    %v2585 = vsel %vm2581, %v2579, %v2583
    %v2586 = vadd.f32 %v2584, %v47
    %v2587 = vadd.f32 %v2585, %v48
    %v2588 = vsel %vm58, %v2586, -inf
    %2589 = vmax.xlane.f32.xlu0 %v2588
    %v2590 = vpop.xlane.xlu0 %2589
    %v2591 = vsel %vm58, %v2587, -inf
    %2592 = vmax.xlane.f32.xlu0 %v2591
    %v2593 = vpop.xlane.xlu0 %2592
    %v2594 = vsub.f32 %v2586, %v2590
    %v2595 = vsub.f32 %v2587, %v2593
    %v2596 = vmul.f32 %v2594, 1.442695
    %v2597 = vpow.pop %v2596
    %v2598 = vmul.f32 %v2595, 1.442695
    %v2599 = vpow.pop %v2598
    %v2600 = vsel %vm58, %v2597, 0.0
    %2601 = vadd.xlane.f32.xlu0 %v2600
    %v2602 = vpop.xlane.xlu0 %2601
    %v2603 = vsel %vm58, %v2599, 0.0
    %2604 = vadd.xlane.f32.xlu0 %v2603
    %v2605 = vpop.xlane.xlu0 %2604
    %v2606 = vrcp.pop %v2602
    %v2607 = vrcp.pop %v2605
    %v2608 = vmul.f32 %v2597, %v2606
    %v2609 = vmul.f32 %v2599, %v2607
    %v2611 = vsel %vm58, %v2608, 0
    %v2614 = vsel %vm58, %v2609, 0
    %2616 = vmatprep.subr.mxu0 0.0
    %2617 = vmatpush1.msra.mxu0 %v1971
    %2618 = vmatprep.subr.mxu0 0.0
    %2619 = vmatpush1.msra.mxu0 %v1976
    %2620 = vmatprep.subr.mxu0 0.0
    %2621 = vmatpush1.msra.mxu0 0.0
    %2622 = vmatprep.subr.mxu0 0.0
    %2623 = vmatpush1.msra.mxu0 0.0
    %2624 = vmatprep.subr.mxu0 0.0
    %2625 = vmatpush1.msra.mxu0 0.0
    %2626 = vmatprep.subr.mxu0 0.0
    %2627 = vmatpush1.msra.mxu0 0.0
    %2628 = vmatprep.subr.mxu0 0.0
    %2629 = vmatpush1.msra.mxu0 0.0
    %2630 = vmatprep.subr.mxu0 0.0
    %2631 = vmatpush1.msra.mxu0 0.0
    %2632 = vmatprep.subr.mxu0 0.0
    %2633 = vmatpush1.msra.mxu0 0.0
    %2634 = vmatprep.subr.mxu0 0.0
    %2635 = vmatpush1.msra.mxu0 0.0
    %2636 = vmatprep.subr.mxu0 0.0
    %2637 = vmatpush1.msra.mxu0 0.0
    %2638 = vmatprep.subr.mxu0 0.0
    %2639 = vmatpush1.msra.mxu0 0.0
    %2640 = vmatprep.subr.mxu0 0.0
    %2641 = vmatpush1.msra.mxu0 0.0
    %2642 = vmatprep.subr.mxu0 0.0
    %2643 = vmatpush1.msra.mxu0 0.0
    %2644 = vmatprep.subr.mxu0 0.0
    %2645 = vmatpush1.msra.mxu0 0.0
    %2646 = vmatprep.subr.mxu0 0.0
    %2647 = vmatpush1.msra.mxu0 0.0
    %2648 = vmatprep.subr.mxu0 0.0
    %2649 = vmatpush1.msra.mxu0 0.0
    %2650 = vmatprep.subr.mxu0 0.0
    %2651 = vmatpush1.msra.mxu0 0.0
    %2652 = vmatprep.subr.mxu0 0.0
    %2653 = vmatpush1.msra.mxu0 0.0
    %2654 = vmatprep.subr.mxu0 0.0
    %2655 = vmatpush1.msra.mxu0 0.0
    %2656 = vmatprep.subr.mxu0 0.0
    %2657 = vmatpush1.msra.mxu0 0.0
    %2658 = vmatprep.subr.mxu0 0.0
    %2659 = vmatpush1.msra.mxu0 0.0
    %2660 = vmatprep.subr.mxu0 0.0
    %2661 = vmatpush1.msra.mxu0 0.0
    %2662 = vmatprep.subr.mxu0 0.0
    %2663 = vmatpush1.msra.mxu0 0.0
    %2664 = vmatprep.subr.mxu0 0.0
    %2665 = vmatpush1.msra.mxu0 0.0
    %2666 = vmatprep.subr.mxu0 0.0
    %2667 = vmatpush1.msra.mxu0 0.0
    %2668 = vmatprep.subr.mxu0 0.0
    %2669 = vmatpush1.msra.mxu0 0.0
    %2670 = vmatprep.subr.mxu0 0.0
    %2671 = vmatpush1.msra.mxu0 0.0
    %2672 = vmatprep.subr.mxu0 0.0
    %2673 = vmatpush1.msra.mxu0 0.0
    %2674 = vmatprep.subr.mxu0 0.0
    %2675 = vmatpush1.msra.mxu0 0.0
    %2676 = vmatprep.subr.mxu0 0.0
    %2677 = vmatpush1.msra.mxu0 0.0
    %2678 = vmatprep.subr.mxu0 0.0
    %2679 = vmatpush1.msra.mxu0 0.0
    %2680 = vmatprep.mubr.f32.mxu0 0.0
    %2681 = vmatmul.mubr.f32.gmra.mrb[0].mxu0 %v2611
    %v2682 = vpop.f32.mrb[0].mxu0
    %v2683 = vadd.f32 0.0, %v2682
    %v2684 = vpop.f32.mrb[0].mxu0
    %2685 = vmatprep.mubr.f32.mxu0 0.0
    %2686 = vmatmul.mubr.f32.gmra.mrb[0].mxu0 %v2614
    %v2687 = vpop.f32.mrb[0].mxu0
    %v2688 = vadd.f32 0.0, %v2687
    %v2689 = vpop.f32.mrb[0].mxu0
    %2690 = vdwg.mxu0
    %v2691 = vmul.f32 %v2683, %v967
    %v2692 = vmul.f32 %v2688, %v967
    %v2693 = vadd.f32 %v2564, %v2691
    %v2694 = vadd.f32 %v2565, %v2692
    %s2695 = scalar_lea.vmem %s8, 2
    %v2696 = vld [vmem:[%s2695] sm:$0x1]
    %v2698 = vlaneseq
    %v2699 = vshrl.u32 %v2698, 7
    %v2700 = vsub.s32 0, %v2699
    %v2701 = vrot.slane %v2696, %v2700
    %v2703 = vadd.f32 %v2693, %v2701
    %v2704 = vadd.f32 %v2694, %v2701
    %v2705 = vadd.f32 %v2703, %v1891
    %v2706 = vadd.f32 %v2704, %v1892
    %v2707 = vsel %vm146, %v2705, 0.0
    %2708 = vadd.xlane.f32.xlu0 %v2707
    %v2709 = vpop.xlane.xlu0 %2708
    %v2710 = vsel %vm146, %v2706, 0.0
    %2711 = vadd.xlane.f32.xlu0 %v2710
    %v2712 = vpop.xlane.xlu0 %2711
    %v2713 = vmul.f32 %v2709, %v990
    %v2714 = vmul.f32 %v2712, %v990
    %v2715 = vsub.f32 %v2705, %v2713
    %v2716 = vsub.f32 %v2706, %v2714
    %v2717 = vmul.f32 %v2715, %v2715
    %v2718 = vmul.f32 %v2716, %v2716
    %v2719 = vsel %vm146, %v2717, 0.0
    %2720 = vadd.xlane.f32.xlu0 %v2719
    %v2721 = vpop.xlane.xlu0 %2720
    %v2722 = vsel %vm146, %v2718, 0.0
    %2723 = vadd.xlane.f32.xlu0 %v2722
    %v2724 = vpop.xlane.xlu0 %2723
    %v2725 = vmul.f32 %v2721, %v990
    %v2726 = vmul.f32 %v2724, %v990
    %v2727 = vadd.f32 %v2725, 1e-05
    %v2728 = vadd.f32 %v2726, 1e-05
    %v2729 = vrsqrt.pop %v2727
    %v2730 = vrsqrt.pop %v2728
    %v2731 = vmul.f32 %v2715, %v2729
    %v2732 = vmul.f32 %v2716, %v2730
    %s2733 = scalar_lea.vmem %s9, 2
    %v2734 = vld [vmem:[%s2733] sm:$0x1]
    %v2736 = vlaneseq
    %v2737 = vshrl.u32 %v2736, 7
    %v2738 = vsub.s32 0, %v2737
    %v2739 = vrot.slane %v2734, %v2738
    %v2741 = vmul.f32 %v2731, %v2739
    %v2742 = vmul.f32 %v2732, %v2739
    %s2743 = scalar_lea.vmem %s10, 2
    %v2744 = vld [vmem:[%s2743] sm:$0x1]
    %v2746 = vlaneseq
    %v2747 = vshrl.u32 %v2746, 7
    %v2748 = vsub.s32 0, %v2747
    %v2749 = vrot.slane %v2744, %v2748
    %v2751 = vadd.f32 %v2741, %v2749
    %v2752 = vadd.f32 %v2742, %v2749
    %v2753 = vmax.f32 %v2751, 0.0
    %v2754 = vmax.f32 %v2752, 0.0
    %v2756 = vsel %vm58, 0.0625, 0
    %2758 = vmatprep.subr.mxu0 0.0
    %2759 = vmatpush1.msra.mxu0 %v2753
    %2760 = vmatprep.subr.mxu0 0.0
    %2761 = vmatpush1.msra.mxu0 %v2754
    %2762 = vmatprep.subr.mxu0 0.0
    %2763 = vmatpush1.msra.mxu0 0.0
    %2764 = vmatprep.subr.mxu0 0.0
    %2765 = vmatpush1.msra.mxu0 0.0
    %2766 = vmatprep.subr.mxu0 0.0
    %2767 = vmatpush1.msra.mxu0 0.0
    %2768 = vmatprep.subr.mxu0 0.0
    %2769 = vmatpush1.msra.mxu0 0.0
    %2770 = vmatprep.subr.mxu0 0.0
    %2771 = vmatpush1.msra.mxu0 0.0
    %2772 = vmatprep.subr.mxu0 0.0
    %2773 = vmatpush1.msra.mxu0 0.0
    %2774 = vmatprep.subr.mxu0 0.0
    %2775 = vmatpush1.msra.mxu0 0.0
    %2776 = vmatprep.subr.mxu0 0.0
    %2777 = vmatpush1.msra.mxu0 0.0
    %2778 = vmatprep.subr.mxu0 0.0
    %2779 = vmatpush1.msra.mxu0 0.0
    %2780 = vmatprep.subr.mxu0 0.0
    %2781 = vmatpush1.msra.mxu0 0.0
    %2782 = vmatprep.subr.mxu0 0.0
    %2783 = vmatpush1.msra.mxu0 0.0
    %2784 = vmatprep.subr.mxu0 0.0
    %2785 = vmatpush1.msra.mxu0 0.0
    %2786 = vmatprep.subr.mxu0 0.0
    %2787 = vmatpush1.msra.mxu0 0.0
    %2788 = vmatprep.subr.mxu0 0.0
    %2789 = vmatpush1.msra.mxu0 0.0
    %2790 = vmatprep.subr.mxu0 0.0
    %2791 = vmatpush1.msra.mxu0 0.0
    %2792 = vmatprep.subr.mxu0 0.0
    %2793 = vmatpush1.msra.mxu0 0.0
    %2794 = vmatprep.subr.mxu0 0.0
    %2795 = vmatpush1.msra.mxu0 0.0
    %2796 = vmatprep.subr.mxu0 0.0
    %2797 = vmatpush1.msra.mxu0 0.0
    %2798 = vmatprep.subr.mxu0 0.0
    %2799 = vmatpush1.msra.mxu0 0.0
    %2800 = vmatprep.subr.mxu0 0.0
    %2801 = vmatpush1.msra.mxu0 0.0
    %2802 = vmatprep.subr.mxu0 0.0
    %2803 = vmatpush1.msra.mxu0 0.0
    %2804 = vmatprep.subr.mxu0 0.0
    %2805 = vmatpush1.msra.mxu0 0.0
    %2806 = vmatprep.subr.mxu0 0.0
    %2807 = vmatpush1.msra.mxu0 0.0
    %2808 = vmatprep.subr.mxu0 0.0
    %2809 = vmatpush1.msra.mxu0 0.0
    %2810 = vmatprep.subr.mxu0 0.0
    %2811 = vmatpush1.msra.mxu0 0.0
    %2812 = vmatprep.subr.mxu0 0.0
    %2813 = vmatpush1.msra.mxu0 0.0
    %2814 = vmatprep.subr.mxu0 0.0
    %2815 = vmatpush1.msra.mxu0 0.0
    %2816 = vmatprep.subr.mxu0 0.0
    %2817 = vmatpush1.msra.mxu0 0.0
    %2818 = vmatprep.subr.mxu0 0.0
    %2819 = vmatpush1.msra.mxu0 0.0
    %2820 = vmatprep.subr.mxu0 0.0
    %2821 = vmatpush1.msra.mxu0 0.0
    %2822 = vmatprep.mubr.f32.mxu0 0.0
    %2823 = vmatmul.mubr.f32.gmra.mrb[0].mxu0 %v2756
    %v2824 = vpop.f32.mrb[0].mxu0
    %v2825 = vadd.f32 0.0, %v2824
    %v2826 = vpop.f32.mrb[0].mxu0
    %2827 = vdwg.mxu0
    %v2828 = vld [vmem:[%s11] sm:$0xff]
    %v2829 = vld [vmem:[%s11 + $0x8] sm:$0xff]
    %v2830 = vld [vmem:[%s11 + $0x10] sm:$0xff]
    %v2831 = vld [vmem:[%s11 + $0x18] sm:$0xff]
    %v2832 = vld [vmem:[%s12] sm:$0x1]
    %v2834 = vsel %vm146, %v2825, 0
    %2836 = vmatprep.subr.mxu0 0.0
    %2837 = vmatpush1.msra.mxu0 %v2828
    %2838 = vmatprep.subr.mxu0 0.0
    %2839 = vmatpush1.msra.mxu0 %v2829
    %2840 = vmatprep.subr.mxu0 0.0
    %2841 = vmatpush1.msra.mxu0 %v2830
    %2842 = vmatprep.subr.mxu0 0.0
    %2843 = vmatpush1.msra.mxu0 %v2831
    %2844 = vmatprep.subr.mxu0 0.0
    %2845 = vmatpush1.msra.mxu0 0.0
    %2846 = vmatprep.subr.mxu0 0.0
    %2847 = vmatpush1.msra.mxu0 0.0
    %2848 = vmatprep.subr.mxu0 0.0
    %2849 = vmatpush1.msra.mxu0 0.0
    %2850 = vmatprep.subr.mxu0 0.0
    %2851 = vmatpush1.msra.mxu0 0.0
    %2852 = vmatprep.subr.mxu0 0.0
    %2853 = vmatpush1.msra.mxu0 0.0
    %2854 = vmatprep.subr.mxu0 0.0
    %2855 = vmatpush1.msra.mxu0 0.0
    %2856 = vmatprep.subr.mxu0 0.0
    %2857 = vmatpush1.msra.mxu0 0.0
    %2858 = vmatprep.subr.mxu0 0.0
    %2859 = vmatpush1.msra.mxu0 0.0
    %2860 = vmatprep.subr.mxu0 0.0
    %2861 = vmatpush1.msra.mxu0 0.0
    %2862 = vmatprep.subr.mxu0 0.0
    %2863 = vmatpush1.msra.mxu0 0.0
    %2864 = vmatprep.subr.mxu0 0.0
    %2865 = vmatpush1.msra.mxu0 0.0
    %2866 = vmatprep.subr.mxu0 0.0
    %2867 = vmatpush1.msra.mxu0 0.0
    %2868 = vmatprep.subr.mxu0 0.0
    %2869 = vmatpush1.msra.mxu0 0.0
    %2870 = vmatprep.subr.mxu0 0.0
    %2871 = vmatpush1.msra.mxu0 0.0
    %2872 = vmatprep.subr.mxu0 0.0
    %2873 = vmatpush1.msra.mxu0 0.0
    %2874 = vmatprep.subr.mxu0 0.0
    %2875 = vmatpush1.msra.mxu0 0.0
    %2876 = vmatprep.subr.mxu0 0.0
    %2877 = vmatpush1.msra.mxu0 0.0
    %2878 = vmatprep.subr.mxu0 0.0
    %2879 = vmatpush1.msra.mxu0 0.0
    %2880 = vmatprep.subr.mxu0 0.0
    %2881 = vmatpush1.msra.mxu0 0.0
    %2882 = vmatprep.subr.mxu0 0.0
    %2883 = vmatpush1.msra.mxu0 0.0
    %2884 = vmatprep.subr.mxu0 0.0
    %2885 = vmatpush1.msra.mxu0 0.0
    %2886 = vmatprep.subr.mxu0 0.0
    %2887 = vmatpush1.msra.mxu0 0.0
    %2888 = vmatprep.subr.mxu0 0.0
    %2889 = vmatpush1.msra.mxu0 0.0
    %2890 = vmatprep.subr.mxu0 0.0
    %2891 = vmatpush1.msra.mxu0 0.0
    %2892 = vmatprep.subr.mxu0 0.0
    %2893 = vmatpush1.msra.mxu0 0.0
    %2894 = vmatprep.subr.mxu0 0.0
    %2895 = vmatpush1.msra.mxu0 0.0
    %2896 = vmatprep.subr.mxu0 0.0
    %2897 = vmatpush1.msra.mxu0 0.0
    %2898 = vmatprep.subr.mxu0 0.0
    %2899 = vmatpush1.msra.mxu0 0.0
    %2900 = vmatprep.mubr.f32.mxu0 0.0
    %2901 = vmatmul.mubr.f32.gmra.mrb[0].mxu0 %v2834
    %v2902 = vpop.f32.mrb[0].mxu0
    %v2903 = vadd.f32 %v2832, %v2902
    %v2904 = vpop.f32.mrb[0].mxu0
    %2905 = vdwg.mxu0
    %vm2906 = vcmask 8192
    %2907 = vst.msk [vmem:[#allocation2] sm:$0x1] %vm2906, %v2903
    // Predicated region
    $region54: #{tpu_custom_call.1} parent=1 // pred_check
      _
    $region55: #{tpu_custom_call.1} parent=1 // pred_check_branch
      %2909 = sbr.rel (0) target = $region57
    $region56: #{tpu_custom_call.1} parent=1 // pred_region
      %s2911 = ssub.s32 16, 16
      %2912 = vsyncadd [#allocation3], %s2911
      %s2914 = sshll.u32 [#allocation2], 4
      %s2915 = int_to_ptr.vmem [resolvable:$true] %s2914
      %2917 = dma.vmem_to_hbm [thread:$0]  %s2915, 16, %s13, [#allocation3]
    $region57: #{tpu_custom_call.1} parent=1 // pred_fallthru
      _
    // Predicated region
    $region58: #{tpu_custom_call.1} parent=1 // pred_check
      _
    $region59: #{tpu_custom_call.1} parent=1 // pred_check_branch
      %2919 = sbr.rel (0) target = $region61
    $region60: #{tpu_custom_call.1} parent=1 // pred_region
      %2920 = dma.done [#allocation3], 16
    $region61: #{tpu_custom_call.1} parent=1 // pred_fallthru
      _
    %2921 = vsyncpa [#allocation3], 1

</llo_original>
